<compile_context>
chip_gen: v6e
topology: v6e:2x2x1
jax: 0.10.0
libtpu: 0.0.40
codegen_flags: <defaults>
</compile_context>

<pallas_src>
import functools
import math

import jax
import jax.numpy as jnp
from jax.experimental import pallas as pl
from jax.experimental.pallas import tpu as pltpu

LN_EPS = 1e-5  # nn.LayerNorm default eps

# Row layout of the packed (8, E) bias / LayerNorm parameter input.
ROW_BQ, ROW_BK, ROW_BV, ROW_BO, ROW_GAMMA, ROW_BETA = 0, 1, 2, 3, 4, 5


def _tensorcores_per_device() -> int:
    """TensorCores addressed by a single JAX device (v7x / v4 megacore -> 2)."""
    try:
        kind = jax.devices()[0].device_kind.lower()
    except Exception:
        return 1
    return 2 if any(t in kind for t in ("v4", "v7", "7x")) else 1


def mha_ln_kernel(q_ref, k_ref, v_ref, wq_ref, wk_ref, wv_ref, wo_ref, p_ref,
                  o_ref, aw_ref, *, num_heads, head_dim):
    """One batch-block per grid step: MHA (eval mode) + residual + LayerNorm."""
    b_blk, Lq, E = q_ref.shape
    Lk = k_ref.shape[1]

    bq = p_ref[ROW_BQ:ROW_BQ + 1, :]          # already pre-scaled by 1/sqrt(Dh)
    bk = p_ref[ROW_BK:ROW_BK + 1, :]
    bv = p_ref[ROW_BV:ROW_BV + 1, :]
    bo = p_ref[ROW_BO:ROW_BO + 1, :]
    gamma = p_ref[ROW_GAMMA:ROW_GAMMA + 1, :]
    beta = p_ref[ROW_BETA:ROW_BETA + 1, :]

    q_in = q_ref[...]                         # (b_blk, Lq, E) f32, kept for residual

    # Fat, batch-blocked projections: one (b_blk*L, E) @ (E, E) matmul each,
    # bf16 operands with f32 accumulation on the MXU.  Wq (and the bq row of
    # the param block) carry the folded 1/sqrt(head_dim) scale.
    q_p = jnp.dot(q_in.reshape(b_blk * Lq, E).astype(jnp.bfloat16), wq_ref[...],
                  preferred_element_type=jnp.float32) + bq            # (b_blk*Lq, E)
    k_p = jnp.dot(k_ref[...].reshape(b_blk * Lk, E).astype(jnp.bfloat16), wk_ref[...],
                  preferred_element_type=jnp.float32) + bk            # (b_blk*Lk, E)
    v_p = jnp.dot(v_ref[...].reshape(b_blk * Lk, E).astype(jnp.bfloat16), wv_ref[...],
                  preferred_element_type=jnp.float32) + bv            # (b_blk*Lk, E)

    # Per-(batch, head) attention; both loop bounds are small static constants
    # -> fully unrolled, visible to the LLO scheduler.
    for b in range(b_blk):
        qb = q_p[b * Lq:(b + 1) * Lq, :]                              # (Lq, E)
        kb = k_p[b * Lk:(b + 1) * Lk, :]                              # (Lk, E)
        vb = v_p[b * Lk:(b + 1) * Lk, :]                              # (Lk, E)

        aw_sum = jnp.zeros((Lq, Lk), jnp.float32)
        o_heads = []
        for h in range(num_heads):
            lo = h * head_dim
            q_h = qb[:, lo:lo + head_dim].astype(jnp.bfloat16)
            k_h = kb[:, lo:lo + head_dim].astype(jnp.bfloat16)
            v_h = vb[:, lo:lo + head_dim].astype(jnp.bfloat16)

            # scores (Lq, Lk): contract the head dim of q_h and k_h.
            s = jax.lax.dot_general(q_h, k_h, (((1,), (1,)), ((), ())),
                                    preferred_element_type=jnp.float32)
            s = s - jnp.max(s, axis=-1, keepdims=True)
            e = jnp.exp(s)
            # Exact divide so the returned attention weights sum to 1.
            p = e * (1.0 / jnp.sum(e, axis=-1, keepdims=True))
            aw_sum = aw_sum + p

            # TODO(synk): attention dropout (p=0.1) is identity in eval mode;
            # the training-mode RNG mask on `p` is not implemented here.

            o_heads.append(jnp.dot(p.astype(jnp.bfloat16), v_h,
                                   preferred_element_type=jnp.float32))  # (Lq, Dh)

        # One K=E out-projection matmul instead of num_heads K=head_dim matmuls.
        o_cat = jnp.concatenate(o_heads, axis=-1)                     # (Lq, E)
        attn = jnp.dot(o_cat.astype(jnp.bfloat16), wo_ref[...],
                       preferred_element_type=jnp.float32)            # (Lq, E)

        # out_proj bias, residual, LayerNorm (all f32).
        y = attn + bo + q_in[b]
        mean = jnp.mean(y, axis=-1, keepdims=True)
        c = y - mean
        var = jnp.mean(c * c, axis=-1, keepdims=True)
        out = c * jax.lax.rsqrt(var + LN_EPS) * gamma + beta

        o_ref[b] = out.astype(o_ref.dtype)
        aw_ref[b] = (aw_sum * (1.0 / num_heads)).astype(aw_ref.dtype)


@functools.partial(jax.jit, static_argnames=("num_heads",))
def attention_mechanism(query, key, value, wq, wk, wv, wo,
                        bq, bk, bv, bo, gamma, beta, *, num_heads):
    """query: (B,Lq,E); key/value: (B,Lk,E) -> (out (B,Lq,E), attn_w (B,Lq,Lk))."""
    B, Lq, E = query.shape
    Lk = key.shape[1]
    assert E % num_heads == 0
    head_dim = E // num_heads
    scale = 1.0 / math.sqrt(head_dim)

    # Generation-aware batch blocking: 2 "parallel" grid steps when the device
    # has 2 TensorCores (v7x / megacore), otherwise one step over the whole
    # batch (v5e/v6e single TC -> extra steps are pure overhead).
    n_cores = _tensorcores_per_device()
    n_steps = n_cores if (n_cores > 1 and B % n_cores == 0) else 1
    b_blk = B // n_steps

    # Weight-side prep: fold the softmax scale into Wq/bq and ship weights as
    # bf16 (full-rate MXU on v6e/v7x, half the weight HBM traffic everywhere);
    # accumulation stays f32.
    wq_b = (wq * scale).astype(jnp.bfloat16)
    wk_b = wk.astype(jnp.bfloat16)
    wv_b = wv.astype(jnp.bfloat16)
    wo_b = wo.astype(jnp.bfloat16)

    zeros_e = jnp.zeros((E,), jnp.float32)
    params = jnp.stack([bq * scale, bk, bv, bo, gamma, beta, zeros_e, zeros_e])  # (8, E)

    kernel = functools.partial(mha_ln_kernel, num_heads=num_heads,
                               head_dim=head_dim)

    # Advisory cost estimate so XLA's scheduler can overlap this few-µs,
    # latency-bound call with neighbouring HLO.
    flops = 2 * B * ((Lq + 2 * Lk) * E * E        # Q/K/V projections
                     + 2 * Lq * Lk * E            # scores + PV over all heads
                     + Lq * E * E)                # out projection
    bytes_accessed = (4 * E * E * 2 + 8 * E * 4                       # weights/params
                      + B * (Lq + 2 * Lk) * E * 4                     # activations in
                      + B * Lq * E * 4 + B * Lq * Lk * 4)             # outputs
    cost = pl.CostEstimate(flops=flops,
                           transcendentals=B * num_heads * Lq * Lk,
                           bytes_accessed=bytes_accessed)

    return pl.pallas_call(
        kernel,
        out_shape=(
            jax.ShapeDtypeStruct((B, Lq, E), query.dtype),
            jax.ShapeDtypeStruct((B, Lq, Lk), jnp.float32),
        ),
        grid_spec=pltpu.PrefetchScalarGridSpec(
            num_scalar_prefetch=0,
            grid=(n_steps,),
            in_specs=[
                pl.BlockSpec((b_blk, Lq, E), lambda i: (i, 0, 0)),    # query
                pl.BlockSpec((b_blk, Lk, E), lambda i: (i, 0, 0)),    # key
                pl.BlockSpec((b_blk, Lk, E), lambda i: (i, 0, 0)),    # value
                pl.BlockSpec((E, E), lambda i: (0, 0)),               # Wq (resident)
                pl.BlockSpec((E, E), lambda i: (0, 0)),               # Wk (resident)
                pl.BlockSpec((E, E), lambda i: (0, 0)),               # Wv (resident)
                pl.BlockSpec((E, E), lambda i: (0, 0)),               # Wo (resident)
                pl.BlockSpec((8, E), lambda i: (0, 0)),               # biases + LN params
            ],
            out_specs=[
                pl.BlockSpec((b_blk, Lq, E), lambda i: (i, 0, 0)),    # output (lane-dense)
                pl.BlockSpec((b_blk, Lq, Lk), lambda i: (i, 0, 0)),   # attention weights
            ],
        ),
        compiler_params=pltpu.CompilerParams(
            dimension_semantics=("parallel",)),
        cost_estimate=cost,
    )(query, key, value, wq_b, wk_b, wv_b, wo_b, params)


def reference(query, key, value, wq, wk, wv, wo, bq, bk, bv, bo, gamma, beta,
              num_heads):
    """Pure-JAX f32 replica of nn.MultiheadAttention (eval) + residual LayerNorm."""
    B, Lq, E = query.shape
    Lk = key.shape[1]
    Dh = E // num_heads

    def split(x, L):
        return x.reshape(B, L, num_heads, Dh).transpose(0, 2, 1, 3)   # (B,H,L,Dh)

    qh = split(query @ wq + bq, Lq) / jnp.sqrt(jnp.float32(Dh))
    kh = split(key @ wk + bk, Lk)
    vh = split(value @ wv + bv, Lk)
    s = jnp.einsum("bhqd,bhkd->bhqk", qh, kh)
    p = jax.nn.softmax(s, axis=-1)
    attended = jnp.einsum("bhqk,bhkd->bhqd", p, vh)
    attended = attended.transpose(0, 2, 1, 3).reshape(B, Lq, E) @ wo + bo
    y = attended + query
    mean = jnp.mean(y, axis=-1, keepdims=True)
    var = jnp.mean((y - mean) ** 2, axis=-1, keepdims=True)
    out = (y - mean) / jnp.sqrt(var + LN_EPS) * gamma + beta
    return out, jnp.mean(p, axis=1)


if __name__ == "__main__":
    B, Lq, Lk = 2, 8, 128          # questions x document sections
    E, H = 256, 8                  # hidden_dim, num_heads  (head_dim = 32)

    root = jax.random.PRNGKey(0)
    ks = jax.random.split(root, 11)

    q = jax.random.normal(ks[0], (B, Lq, E), jnp.float32)
    k = jax.random.normal(ks[1], (B, Lk, E), jnp.float32)
    v = jax.random.normal(ks[2], (B, Lk, E), jnp.float32)

    s = 1.0 / math.sqrt(E)          # PyTorch-Linear-like init scale
    wq = jax.random.uniform(ks[3], (E, E), jnp.float32, -s, s)
    wk = jax.random.uniform(ks[4], (E, E), jnp.float32, -s, s)
    wv = jax.random.uniform(ks[5], (E, E), jnp.float32, -s, s)
    wo = jax.random.uniform(ks[6], (E, E), jnp.float32, -s, s)
    bq = jax.random.uniform(ks[7], (E,), jnp.float32, -s, s)
    bk = jax.random.uniform(ks[8], (E,), jnp.float32, -s, s)
    bv = jax.random.uniform(ks[9], (E,), jnp.float32, -s, s)
    bo = jax.random.uniform(ks[10], (E,), jnp.float32, -s, s)
    gamma = jnp.ones((E,), jnp.float32)    # LayerNorm weight init
    beta = jnp.zeros((E,), jnp.float32)    # LayerNorm bias init

    out, attn_w = attention_mechanism(q, k, v, wq, wk, wv, wo,
                                      bq, bk, bv, bo, gamma, beta,
                                      num_heads=H)
    out = jax.block_until_ready(out)
    attn_w = jax.block_until_ready(attn_w)

    ref_out, ref_w = reference(q, k, v, wq, wk, wv, wo, bq, bk, bv, bo,
                               gamma, beta, H)

    assert out.shape == (B, Lq, E) and attn_w.shape == (B, Lq, Lk)
    # bf16 matmul operands (f32 accumulation) vs the pure-f32 reference.
    assert jnp.allclose(out, ref_out, atol=1e-2, rtol=1e-2), "output mismatch"
    assert jnp.allclose(attn_w, ref_w, atol=2e-3, rtol=2e-3), "attn-weight mismatch"

    print("KERNEL_OK")
</pallas_src>

<mosaic_0001>
module attributes {stable_mosaic.version = 11 : i64} {
  func.func @mha_ln_kernel(%arg0: i32, %arg1: memref<2x8x256xf32, #tpu.memory_space<vmem>>, %arg2: memref<2x128x256xf32, #tpu.memory_space<vmem>>, %arg3: memref<2x128x256xf32, #tpu.memory_space<vmem>>, %arg4: memref<256x256xbf16, #tpu.memory_space<vmem>>, %arg5: memref<256x256xbf16, #tpu.memory_space<vmem>>, %arg6: memref<256x256xbf16, #tpu.memory_space<vmem>>, %arg7: memref<256x256xbf16, #tpu.memory_space<vmem>>, %arg8: memref<8x256xf32, #tpu.memory_space<vmem>>, %arg9: memref<2x8x256xf32, #tpu.memory_space<vmem>>, %arg10: memref<2x8x128xf32, #tpu.memory_space<vmem>>) attributes {dimension_semantics = [#tpu.dimension_semantics<parallel>], iteration_bounds = array<i64: 1>, scalar_prefetch = 0 : i64, scratch_operands = 0 : i64, tpu.core_type = #tpu.core_type<tc>, window_params = [{transform_indices = @transform_0, window_bounds = array<i64: 2, 8, 256>}, {transform_indices = @transform_1, window_bounds = array<i64: 2, 128, 256>}, {transform_indices = @transform_2, window_bounds = array<i64: 2, 128, 256>}, {pipeline_mode = #tpu.pipeline_mode<synchronous>, transform_indices = @transform_3, window_bounds = array<i64: 256, 256>}, {pipeline_mode = #tpu.pipeline_mode<synchronous>, transform_indices = @transform_4, window_bounds = array<i64: 256, 256>}, {pipeline_mode = #tpu.pipeline_mode<synchronous>, transform_indices = @transform_5, window_bounds = array<i64: 256, 256>}, {pipeline_mode = #tpu.pipeline_mode<synchronous>, transform_indices = @transform_6, window_bounds = array<i64: 256, 256>}, {pipeline_mode = #tpu.pipeline_mode<synchronous>, transform_indices = @transform_7, window_bounds = array<i64: 8, 256>}, {transform_indices = @transform_8, window_bounds = array<i64: 2, 8, 256>}, {transform_indices = @transform_9, window_bounds = array<i64: 2, 8, 128>}]} {
    %c0 = arith.constant 0 : index
    %c0_0 = arith.constant 0 : index
    %0 = vector.load %arg8[%c0, %c0_0] : memref<8x256xf32, #tpu.memory_space<vmem>>, vector<1x256xf32>
    %c1 = arith.constant 1 : index
    %c0_1 = arith.constant 0 : index
    %1 = vector.load %arg8[%c1, %c0_1] : memref<8x256xf32, #tpu.memory_space<vmem>>, vector<1x256xf32>
    %c2 = arith.constant 2 : index
    %c0_2 = arith.constant 0 : index
    %2 = vector.load %arg8[%c2, %c0_2] : memref<8x256xf32, #tpu.memory_space<vmem>>, vector<1x256xf32>
    %c3 = arith.constant 3 : index
    %c0_3 = arith.constant 0 : index
    %3 = vector.load %arg8[%c3, %c0_3] : memref<8x256xf32, #tpu.memory_space<vmem>>, vector<1x256xf32>
    %c4 = arith.constant 4 : index
    %c0_4 = arith.constant 0 : index
    %4 = vector.load %arg8[%c4, %c0_4] : memref<8x256xf32, #tpu.memory_space<vmem>>, vector<1x256xf32>
    %c5 = arith.constant 5 : index
    %c0_5 = arith.constant 0 : index
    %5 = vector.load %arg8[%c5, %c0_5] : memref<8x256xf32, #tpu.memory_space<vmem>>, vector<1x256xf32>
    %c0_6 = arith.constant 0 : index
    %c0_7 = arith.constant 0 : index
    %c0_8 = arith.constant 0 : index
    %6 = vector.load %arg1[%c0_6, %c0_7, %c0_8] : memref<2x8x256xf32, #tpu.memory_space<vmem>>, vector<2x8x256xf32>
    %7 = vector.shape_cast %6 : vector<2x8x256xf32> to vector<16x256xf32>
    %8 = arith.truncf %7 : vector<16x256xf32> to vector<16x256xbf16>
    %c0_9 = arith.constant 0 : index
    %c0_10 = arith.constant 0 : index
    %9 = vector.load %arg4[%c0_9, %c0_10] : memref<256x256xbf16, #tpu.memory_space<vmem>>, vector<256x256xbf16>
    %cst = arith.constant dense<0.000000e+00> : vector<16x256xf32>
    %10 = tpu.matmul %8, %9, %cst {dimension_numbers = #tpu.dot_dimension_numbers<[1], [0], [0], [1], [0, 0, 1, 1], [], []>} : vector<16x256xbf16>, vector<256x256xbf16>, vector<16x256xf32> -> vector<16x256xf32>
    %11 = vector.broadcast %0 : vector<1x256xf32> to vector<16x256xf32>
    %12 = arith.addf %10, %11 : vector<16x256xf32>
    %c0_11 = arith.constant 0 : index
    %c0_12 = arith.constant 0 : index
    %c0_13 = arith.constant 0 : index
    %13 = vector.load %arg2[%c0_11, %c0_12, %c0_13] : memref<2x128x256xf32, #tpu.memory_space<vmem>>, vector<2x128x256xf32>
    %14 = vector.shape_cast %13 : vector<2x128x256xf32> to vector<256x256xf32>
    %15 = arith.truncf %14 : vector<256x256xf32> to vector<256x256xbf16>
    %c0_14 = arith.constant 0 : index
    %c0_15 = arith.constant 0 : index
    %16 = vector.load %arg5[%c0_14, %c0_15] : memref<256x256xbf16, #tpu.memory_space<vmem>>, vector<256x256xbf16>
    %cst_16 = arith.constant dense<0.000000e+00> : vector<256x256xf32>
    %17 = tpu.matmul %15, %16, %cst_16 {dimension_numbers = #tpu.dot_dimension_numbers<[1], [0], [0], [1], [0, 0, 1, 1], [], []>} : vector<256x256xbf16>, vector<256x256xbf16>, vector<256x256xf32> -> vector<256x256xf32>
    %18 = vector.broadcast %1 : vector<1x256xf32> to vector<256x256xf32>
    %19 = arith.addf %17, %18 : vector<256x256xf32>
    %c0_17 = arith.constant 0 : index
    %c0_18 = arith.constant 0 : index
    %c0_19 = arith.constant 0 : index
    %20 = vector.load %arg3[%c0_17, %c0_18, %c0_19] : memref<2x128x256xf32, #tpu.memory_space<vmem>>, vector<2x128x256xf32>
    %21 = vector.shape_cast %20 : vector<2x128x256xf32> to vector<256x256xf32>
    %22 = arith.truncf %21 : vector<256x256xf32> to vector<256x256xbf16>
    %c0_20 = arith.constant 0 : index
    %c0_21 = arith.constant 0 : index
    %23 = vector.load %arg6[%c0_20, %c0_21] : memref<256x256xbf16, #tpu.memory_space<vmem>>, vector<256x256xbf16>
    %cst_22 = arith.constant dense<0.000000e+00> : vector<256x256xf32>
    %24 = tpu.matmul %22, %23, %cst_22 {dimension_numbers = #tpu.dot_dimension_numbers<[1], [0], [0], [1], [0, 0, 1, 1], [], []>} : vector<256x256xbf16>, vector<256x256xbf16>, vector<256x256xf32> -> vector<256x256xf32>
    %25 = vector.broadcast %2 : vector<1x256xf32> to vector<256x256xf32>
    %26 = arith.addf %24, %25 : vector<256x256xf32>
    %27 = vector.extract_strided_slice %12 {offsets = [0, 0], sizes = [8, 256], strides = [1, 1]} : vector<16x256xf32> to vector<8x256xf32>
    %28 = vector.extract_strided_slice %19 {offsets = [0, 0], sizes = [128, 256], strides = [1, 1]} : vector<256x256xf32> to vector<128x256xf32>
    %29 = vector.extract_strided_slice %26 {offsets = [0, 0], sizes = [128, 256], strides = [1, 1]} : vector<256x256xf32> to vector<128x256xf32>
    %cst_23 = arith.constant 0.000000e+00 : f32
    %30 = vector.broadcast %cst_23 : f32 to vector<8x128xf32>
    %31 = vector.extract_strided_slice %27 {offsets = [0, 0], sizes = [8, 32], strides = [1, 1]} : vector<8x256xf32> to vector<8x32xf32>
    %32 = arith.truncf %31 : vector<8x32xf32> to vector<8x32xbf16>
    %33 = vector.extract_strided_slice %28 {offsets = [0, 0], sizes = [128, 32], strides = [1, 1]} : vector<128x256xf32> to vector<128x32xf32>
    %34 = arith.truncf %33 : vector<128x32xf32> to vector<128x32xbf16>
    %35 = vector.extract_strided_slice %29 {offsets = [0, 0], sizes = [128, 32], strides = [1, 1]} : vector<128x256xf32> to vector<128x32xf32>
    %36 = arith.truncf %35 : vector<128x32xf32> to vector<128x32xbf16>
    %cst_24 = arith.constant dense<0.000000e+00> : vector<8x128xf32>
    %37 = tpu.matmul %32, %34, %cst_24 {dimension_numbers = #tpu.dot_dimension_numbers<[1], [1], [0], [0], [0, 0, 1, 0], [], []>} : vector<8x32xbf16>, vector<128x32xbf16>, vector<8x128xf32> -> vector<8x128xf32>
    %cst_25 = arith.constant dense<0xFF800000> : vector<8xf32>
    %38 = vector.multi_reduction <maximumf>, %37, %cst_25 [1] : vector<8x128xf32> to vector<8xf32>
    %39 = vector.shape_cast %38 : vector<8xf32> to vector<8x1xf32>
    %40 = vector.broadcast %39 : vector<8x1xf32> to vector<8x128xf32>
    %41 = arith.subf %37, %40 : vector<8x128xf32>
    %42 = math.exp %41 : vector<8x128xf32>
    %cst_26 = arith.constant dense<0.000000e+00> : vector<8xf32>
    %43 = vector.multi_reduction <add>, %42, %cst_26 [1] : vector<8x128xf32> to vector<8xf32>
    %44 = vector.shape_cast %43 : vector<8xf32> to vector<8x1xf32>
    %cst_27 = arith.constant 1.000000e+00 : f32
    %45 = vector.broadcast %cst_27 : f32 to vector<8x1xf32>
    %46 = arith.divf %45, %44 : vector<8x1xf32>
    %47 = vector.broadcast %46 : vector<8x1xf32> to vector<8x128xf32>
    %48 = arith.mulf %42, %47 : vector<8x128xf32>
    %49 = arith.addf %30, %48 : vector<8x128xf32>
    %50 = arith.truncf %48 : vector<8x128xf32> to vector<8x128xbf16>
    %cst_28 = arith.constant dense<0.000000e+00> : vector<8x32xf32>
    %51 = tpu.matmul %50, %36, %cst_28 {dimension_numbers = #tpu.dot_dimension_numbers<[1], [0], [0], [1], [0, 0, 1, 1], [], []>} : vector<8x128xbf16>, vector<128x32xbf16>, vector<8x32xf32> -> vector<8x32xf32>
    %52 = vector.extract_strided_slice %27 {offsets = [0, 32], sizes = [8, 32], strides = [1, 1]} : vector<8x256xf32> to vector<8x32xf32>
    %53 = arith.truncf %52 : vector<8x32xf32> to vector<8x32xbf16>
    %54 = vector.extract_strided_slice %28 {offsets = [0, 32], sizes = [128, 32], strides = [1, 1]} : vector<128x256xf32> to vector<128x32xf32>
    %55 = arith.truncf %54 : vector<128x32xf32> to vector<128x32xbf16>
    %56 = vector.extract_strided_slice %29 {offsets = [0, 32], sizes = [128, 32], strides = [1, 1]} : vector<128x256xf32> to vector<128x32xf32>
    %57 = arith.truncf %56 : vector<128x32xf32> to vector<128x32xbf16>
    %cst_29 = arith.constant dense<0.000000e+00> : vector<8x128xf32>
    %58 = tpu.matmul %53, %55, %cst_29 {dimension_numbers = #tpu.dot_dimension_numbers<[1], [1], [0], [0], [0, 0, 1, 0], [], []>} : vector<8x32xbf16>, vector<128x32xbf16>, vector<8x128xf32> -> vector<8x128xf32>
    %cst_30 = arith.constant dense<0xFF800000> : vector<8xf32>
    %59 = vector.multi_reduction <maximumf>, %58, %cst_30 [1] : vector<8x128xf32> to vector<8xf32>
    %60 = vector.shape_cast %59 : vector<8xf32> to vector<8x1xf32>
    %61 = vector.broadcast %60 : vector<8x1xf32> to vector<8x128xf32>
    %62 = arith.subf %58, %61 : vector<8x128xf32>
    %63 = math.exp %62 : vector<8x128xf32>
    %cst_31 = arith.constant dense<0.000000e+00> : vector<8xf32>
    %64 = vector.multi_reduction <add>, %63, %cst_31 [1] : vector<8x128xf32> to vector<8xf32>
    %65 = vector.shape_cast %64 : vector<8xf32> to vector<8x1xf32>
    %cst_32 = arith.constant 1.000000e+00 : f32
    %66 = vector.broadcast %cst_32 : f32 to vector<8x1xf32>
    %67 = arith.divf %66, %65 : vector<8x1xf32>
    %68 = vector.broadcast %67 : vector<8x1xf32> to vector<8x128xf32>
    %69 = arith.mulf %63, %68 : vector<8x128xf32>
    %70 = arith.addf %49, %69 : vector<8x128xf32>
    %71 = arith.truncf %69 : vector<8x128xf32> to vector<8x128xbf16>
    %cst_33 = arith.constant dense<0.000000e+00> : vector<8x32xf32>
    %72 = tpu.matmul %71, %57, %cst_33 {dimension_numbers = #tpu.dot_dimension_numbers<[1], [0], [0], [1], [0, 0, 1, 1], [], []>} : vector<8x128xbf16>, vector<128x32xbf16>, vector<8x32xf32> -> vector<8x32xf32>
    %73 = vector.extract_strided_slice %27 {offsets = [0, 64], sizes = [8, 32], strides = [1, 1]} : vector<8x256xf32> to vector<8x32xf32>
    %74 = arith.truncf %73 : vector<8x32xf32> to vector<8x32xbf16>
    %75 = vector.extract_strided_slice %28 {offsets = [0, 64], sizes = [128, 32], strides = [1, 1]} : vector<128x256xf32> to vector<128x32xf32>
    %76 = arith.truncf %75 : vector<128x32xf32> to vector<128x32xbf16>
    %77 = vector.extract_strided_slice %29 {offsets = [0, 64], sizes = [128, 32], strides = [1, 1]} : vector<128x256xf32> to vector<128x32xf32>
    %78 = arith.truncf %77 : vector<128x32xf32> to vector<128x32xbf16>
    %cst_34 = arith.constant dense<0.000000e+00> : vector<8x128xf32>
    %79 = tpu.matmul %74, %76, %cst_34 {dimension_numbers = #tpu.dot_dimension_numbers<[1], [1], [0], [0], [0, 0, 1, 0], [], []>} : vector<8x32xbf16>, vector<128x32xbf16>, vector<8x128xf32> -> vector<8x128xf32>
    %cst_35 = arith.constant dense<0xFF800000> : vector<8xf32>
    %80 = vector.multi_reduction <maximumf>, %79, %cst_35 [1] : vector<8x128xf32> to vector<8xf32>
    %81 = vector.shape_cast %80 : vector<8xf32> to vector<8x1xf32>
    %82 = vector.broadcast %81 : vector<8x1xf32> to vector<8x128xf32>
    %83 = arith.subf %79, %82 : vector<8x128xf32>
    %84 = math.exp %83 : vector<8x128xf32>
    %cst_36 = arith.constant dense<0.000000e+00> : vector<8xf32>
    %85 = vector.multi_reduction <add>, %84, %cst_36 [1] : vector<8x128xf32> to vector<8xf32>
    %86 = vector.shape_cast %85 : vector<8xf32> to vector<8x1xf32>
    %cst_37 = arith.constant 1.000000e+00 : f32
    %87 = vector.broadcast %cst_37 : f32 to vector<8x1xf32>
    %88 = arith.divf %87, %86 : vector<8x1xf32>
    %89 = vector.broadcast %88 : vector<8x1xf32> to vector<8x128xf32>
    %90 = arith.mulf %84, %89 : vector<8x128xf32>
    %91 = arith.addf %70, %90 : vector<8x128xf32>
    %92 = arith.truncf %90 : vector<8x128xf32> to vector<8x128xbf16>
    %cst_38 = arith.constant dense<0.000000e+00> : vector<8x32xf32>
    %93 = tpu.matmul %92, %78, %cst_38 {dimension_numbers = #tpu.dot_dimension_numbers<[1], [0], [0], [1], [0, 0, 1, 1], [], []>} : vector<8x128xbf16>, vector<128x32xbf16>, vector<8x32xf32> -> vector<8x32xf32>
    %94 = vector.extract_strided_slice %27 {offsets = [0, 96], sizes = [8, 32], strides = [1, 1]} : vector<8x256xf32> to vector<8x32xf32>
    %95 = arith.truncf %94 : vector<8x32xf32> to vector<8x32xbf16>
    %96 = vector.extract_strided_slice %28 {offsets = [0, 96], sizes = [128, 32], strides = [1, 1]} : vector<128x256xf32> to vector<128x32xf32>
    %97 = arith.truncf %96 : vector<128x32xf32> to vector<128x32xbf16>
    %98 = vector.extract_strided_slice %29 {offsets = [0, 96], sizes = [128, 32], strides = [1, 1]} : vector<128x256xf32> to vector<128x32xf32>
    %99 = arith.truncf %98 : vector<128x32xf32> to vector<128x32xbf16>
    %cst_39 = arith.constant dense<0.000000e+00> : vector<8x128xf32>
    %100 = tpu.matmul %95, %97, %cst_39 {dimension_numbers = #tpu.dot_dimension_numbers<[1], [1], [0], [0], [0, 0, 1, 0], [], []>} : vector<8x32xbf16>, vector<128x32xbf16>, vector<8x128xf32> -> vector<8x128xf32>
    %cst_40 = arith.constant dense<0xFF800000> : vector<8xf32>
    %101 = vector.multi_reduction <maximumf>, %100, %cst_40 [1] : vector<8x128xf32> to vector<8xf32>
    %102 = vector.shape_cast %101 : vector<8xf32> to vector<8x1xf32>
    %103 = vector.broadcast %102 : vector<8x1xf32> to vector<8x128xf32>
    %104 = arith.subf %100, %103 : vector<8x128xf32>
    %105 = math.exp %104 : vector<8x128xf32>
    %cst_41 = arith.constant dense<0.000000e+00> : vector<8xf32>
    %106 = vector.multi_reduction <add>, %105, %cst_41 [1] : vector<8x128xf32> to vector<8xf32>
    %107 = vector.shape_cast %106 : vector<8xf32> to vector<8x1xf32>
    %cst_42 = arith.constant 1.000000e+00 : f32
    %108 = vector.broadcast %cst_42 : f32 to vector<8x1xf32>
    %109 = arith.divf %108, %107 : vector<8x1xf32>
    %110 = vector.broadcast %109 : vector<8x1xf32> to vector<8x128xf32>
    %111 = arith.mulf %105, %110 : vector<8x128xf32>
    %112 = arith.addf %91, %111 : vector<8x128xf32>
    %113 = arith.truncf %111 : vector<8x128xf32> to vector<8x128xbf16>
    %cst_43 = arith.constant dense<0.000000e+00> : vector<8x32xf32>
    %114 = tpu.matmul %113, %99, %cst_43 {dimension_numbers = #tpu.dot_dimension_numbers<[1], [0], [0], [1], [0, 0, 1, 1], [], []>} : vector<8x128xbf16>, vector<128x32xbf16>, vector<8x32xf32> -> vector<8x32xf32>
    %115 = vector.extract_strided_slice %27 {offsets = [0, 128], sizes = [8, 32], strides = [1, 1]} : vector<8x256xf32> to vector<8x32xf32>
    %116 = arith.truncf %115 : vector<8x32xf32> to vector<8x32xbf16>
    %117 = vector.extract_strided_slice %28 {offsets = [0, 128], sizes = [128, 32], strides = [1, 1]} : vector<128x256xf32> to vector<128x32xf32>
    %118 = arith.truncf %117 : vector<128x32xf32> to vector<128x32xbf16>
    %119 = vector.extract_strided_slice %29 {offsets = [0, 128], sizes = [128, 32], strides = [1, 1]} : vector<128x256xf32> to vector<128x32xf32>
    %120 = arith.truncf %119 : vector<128x32xf32> to vector<128x32xbf16>
    %cst_44 = arith.constant dense<0.000000e+00> : vector<8x128xf32>
    %121 = tpu.matmul %116, %118, %cst_44 {dimension_numbers = #tpu.dot_dimension_numbers<[1], [1], [0], [0], [0, 0, 1, 0], [], []>} : vector<8x32xbf16>, vector<128x32xbf16>, vector<8x128xf32> -> vector<8x128xf32>
    %cst_45 = arith.constant dense<0xFF800000> : vector<8xf32>
    %122 = vector.multi_reduction <maximumf>, %121, %cst_45 [1] : vector<8x128xf32> to vector<8xf32>
    %123 = vector.shape_cast %122 : vector<8xf32> to vector<8x1xf32>
    %124 = vector.broadcast %123 : vector<8x1xf32> to vector<8x128xf32>
    %125 = arith.subf %121, %124 : vector<8x128xf32>
    %126 = math.exp %125 : vector<8x128xf32>
    %cst_46 = arith.constant dense<0.000000e+00> : vector<8xf32>
    %127 = vector.multi_reduction <add>, %126, %cst_46 [1] : vector<8x128xf32> to vector<8xf32>
    %128 = vector.shape_cast %127 : vector<8xf32> to vector<8x1xf32>
    %cst_47 = arith.constant 1.000000e+00 : f32
    %129 = vector.broadcast %cst_47 : f32 to vector<8x1xf32>
    %130 = arith.divf %129, %128 : vector<8x1xf32>
    %131 = vector.broadcast %130 : vector<8x1xf32> to vector<8x128xf32>
    %132 = arith.mulf %126, %131 : vector<8x128xf32>
    %133 = arith.addf %112, %132 : vector<8x128xf32>
    %134 = arith.truncf %132 : vector<8x128xf32> to vector<8x128xbf16>
    %cst_48 = arith.constant dense<0.000000e+00> : vector<8x32xf32>
    %135 = tpu.matmul %134, %120, %cst_48 {dimension_numbers = #tpu.dot_dimension_numbers<[1], [0], [0], [1], [0, 0, 1, 1], [], []>} : vector<8x128xbf16>, vector<128x32xbf16>, vector<8x32xf32> -> vector<8x32xf32>
    %136 = vector.extract_strided_slice %27 {offsets = [0, 160], sizes = [8, 32], strides = [1, 1]} : vector<8x256xf32> to vector<8x32xf32>
    %137 = arith.truncf %136 : vector<8x32xf32> to vector<8x32xbf16>
    %138 = vector.extract_strided_slice %28 {offsets = [0, 160], sizes = [128, 32], strides = [1, 1]} : vector<128x256xf32> to vector<128x32xf32>
    %139 = arith.truncf %138 : vector<128x32xf32> to vector<128x32xbf16>
    %140 = vector.extract_strided_slice %29 {offsets = [0, 160], sizes = [128, 32], strides = [1, 1]} : vector<128x256xf32> to vector<128x32xf32>
    %141 = arith.truncf %140 : vector<128x32xf32> to vector<128x32xbf16>
    %cst_49 = arith.constant dense<0.000000e+00> : vector<8x128xf32>
    %142 = tpu.matmul %137, %139, %cst_49 {dimension_numbers = #tpu.dot_dimension_numbers<[1], [1], [0], [0], [0, 0, 1, 0], [], []>} : vector<8x32xbf16>, vector<128x32xbf16>, vector<8x128xf32> -> vector<8x128xf32>
    %cst_50 = arith.constant dense<0xFF800000> : vector<8xf32>
    %143 = vector.multi_reduction <maximumf>, %142, %cst_50 [1] : vector<8x128xf32> to vector<8xf32>
    %144 = vector.shape_cast %143 : vector<8xf32> to vector<8x1xf32>
    %145 = vector.broadcast %144 : vector<8x1xf32> to vector<8x128xf32>
    %146 = arith.subf %142, %145 : vector<8x128xf32>
    %147 = math.exp %146 : vector<8x128xf32>
    %cst_51 = arith.constant dense<0.000000e+00> : vector<8xf32>
    %148 = vector.multi_reduction <add>, %147, %cst_51 [1] : vector<8x128xf32> to vector<8xf32>
    %149 = vector.shape_cast %148 : vector<8xf32> to vector<8x1xf32>
    %cst_52 = arith.constant 1.000000e+00 : f32
    %150 = vector.broadcast %cst_52 : f32 to vector<8x1xf32>
    %151 = arith.divf %150, %149 : vector<8x1xf32>
    %152 = vector.broadcast %151 : vector<8x1xf32> to vector<8x128xf32>
    %153 = arith.mulf %147, %152 : vector<8x128xf32>
    %154 = arith.addf %133, %153 : vector<8x128xf32>
    %155 = arith.truncf %153 : vector<8x128xf32> to vector<8x128xbf16>
    %cst_53 = arith.constant dense<0.000000e+00> : vector<8x32xf32>
    %156 = tpu.matmul %155, %141, %cst_53 {dimension_numbers = #tpu.dot_dimension_numbers<[1], [0], [0], [1], [0, 0, 1, 1], [], []>} : vector<8x128xbf16>, vector<128x32xbf16>, vector<8x32xf32> -> vector<8x32xf32>
    %157 = vector.extract_strided_slice %27 {offsets = [0, 192], sizes = [8, 32], strides = [1, 1]} : vector<8x256xf32> to vector<8x32xf32>
    %158 = arith.truncf %157 : vector<8x32xf32> to vector<8x32xbf16>
    %159 = vector.extract_strided_slice %28 {offsets = [0, 192], sizes = [128, 32], strides = [1, 1]} : vector<128x256xf32> to vector<128x32xf32>
    %160 = arith.truncf %159 : vector<128x32xf32> to vector<128x32xbf16>
    %161 = vector.extract_strided_slice %29 {offsets = [0, 192], sizes = [128, 32], strides = [1, 1]} : vector<128x256xf32> to vector<128x32xf32>
    %162 = arith.truncf %161 : vector<128x32xf32> to vector<128x32xbf16>
    %cst_54 = arith.constant dense<0.000000e+00> : vector<8x128xf32>
    %163 = tpu.matmul %158, %160, %cst_54 {dimension_numbers = #tpu.dot_dimension_numbers<[1], [1], [0], [0], [0, 0, 1, 0], [], []>} : vector<8x32xbf16>, vector<128x32xbf16>, vector<8x128xf32> -> vector<8x128xf32>
    %cst_55 = arith.constant dense<0xFF800000> : vector<8xf32>
    %164 = vector.multi_reduction <maximumf>, %163, %cst_55 [1] : vector<8x128xf32> to vector<8xf32>
    %165 = vector.shape_cast %164 : vector<8xf32> to vector<8x1xf32>
    %166 = vector.broadcast %165 : vector<8x1xf32> to vector<8x128xf32>
    %167 = arith.subf %163, %166 : vector<8x128xf32>
    %168 = math.exp %167 : vector<8x128xf32>
    %cst_56 = arith.constant dense<0.000000e+00> : vector<8xf32>
    %169 = vector.multi_reduction <add>, %168, %cst_56 [1] : vector<8x128xf32> to vector<8xf32>
    %170 = vector.shape_cast %169 : vector<8xf32> to vector<8x1xf32>
    %cst_57 = arith.constant 1.000000e+00 : f32
    %171 = vector.broadcast %cst_57 : f32 to vector<8x1xf32>
    %172 = arith.divf %171, %170 : vector<8x1xf32>
    %173 = vector.broadcast %172 : vector<8x1xf32> to vector<8x128xf32>
    %174 = arith.mulf %168, %173 : vector<8x128xf32>
    %175 = arith.addf %154, %174 : vector<8x128xf32>
    %176 = arith.truncf %174 : vector<8x128xf32> to vector<8x128xbf16>
    %cst_58 = arith.constant dense<0.000000e+00> : vector<8x32xf32>
    %177 = tpu.matmul %176, %162, %cst_58 {dimension_numbers = #tpu.dot_dimension_numbers<[1], [0], [0], [1], [0, 0, 1, 1], [], []>} : vector<8x128xbf16>, vector<128x32xbf16>, vector<8x32xf32> -> vector<8x32xf32>
    %178 = vector.extract_strided_slice %27 {offsets = [0, 224], sizes = [8, 32], strides = [1, 1]} : vector<8x256xf32> to vector<8x32xf32>
    %179 = arith.truncf %178 : vector<8x32xf32> to vector<8x32xbf16>
    %180 = vector.extract_strided_slice %28 {offsets = [0, 224], sizes = [128, 32], strides = [1, 1]} : vector<128x256xf32> to vector<128x32xf32>
    %181 = arith.truncf %180 : vector<128x32xf32> to vector<128x32xbf16>
    %182 = vector.extract_strided_slice %29 {offsets = [0, 224], sizes = [128, 32], strides = [1, 1]} : vector<128x256xf32> to vector<128x32xf32>
    %183 = arith.truncf %182 : vector<128x32xf32> to vector<128x32xbf16>
    %cst_59 = arith.constant dense<0.000000e+00> : vector<8x128xf32>
    %184 = tpu.matmul %179, %181, %cst_59 {dimension_numbers = #tpu.dot_dimension_numbers<[1], [1], [0], [0], [0, 0, 1, 0], [], []>} : vector<8x32xbf16>, vector<128x32xbf16>, vector<8x128xf32> -> vector<8x128xf32>
    %cst_60 = arith.constant dense<0xFF800000> : vector<8xf32>
    %185 = vector.multi_reduction <maximumf>, %184, %cst_60 [1] : vector<8x128xf32> to vector<8xf32>
    %186 = vector.shape_cast %185 : vector<8xf32> to vector<8x1xf32>
    %187 = vector.broadcast %186 : vector<8x1xf32> to vector<8x128xf32>
    %188 = arith.subf %184, %187 : vector<8x128xf32>
    %189 = math.exp %188 : vector<8x128xf32>
    %cst_61 = arith.constant dense<0.000000e+00> : vector<8xf32>
    %190 = vector.multi_reduction <add>, %189, %cst_61 [1] : vector<8x128xf32> to vector<8xf32>
    %191 = vector.shape_cast %190 : vector<8xf32> to vector<8x1xf32>
    %cst_62 = arith.constant 1.000000e+00 : f32
    %192 = vector.broadcast %cst_62 : f32 to vector<8x1xf32>
    %193 = arith.divf %192, %191 : vector<8x1xf32>
    %194 = vector.broadcast %193 : vector<8x1xf32> to vector<8x128xf32>
    %195 = arith.mulf %189, %194 : vector<8x128xf32>
    %196 = arith.addf %175, %195 : vector<8x128xf32>
    %197 = arith.truncf %195 : vector<8x128xf32> to vector<8x128xbf16>
    %cst_63 = arith.constant dense<0.000000e+00> : vector<8x32xf32>
    %198 = tpu.matmul %197, %183, %cst_63 {dimension_numbers = #tpu.dot_dimension_numbers<[1], [0], [0], [1], [0, 0, 1, 1], [], []>} : vector<8x128xbf16>, vector<128x32xbf16>, vector<8x32xf32> -> vector<8x32xf32>
    %199 = tpu.concatenate %51, %72, %93, %114, %135, %156, %177, %198 in 1 : vector<8x32xf32>, vector<8x32xf32>, vector<8x32xf32>, vector<8x32xf32>, vector<8x32xf32>, vector<8x32xf32>, vector<8x32xf32>, vector<8x32xf32> -> vector<8x256xf32>
    %200 = arith.truncf %199 : vector<8x256xf32> to vector<8x256xbf16>
    %c0_64 = arith.constant 0 : index
    %c0_65 = arith.constant 0 : index
    %201 = vector.load %arg7[%c0_64, %c0_65] : memref<256x256xbf16, #tpu.memory_space<vmem>>, vector<256x256xbf16>
    %cst_66 = arith.constant dense<0.000000e+00> : vector<8x256xf32>
    %202 = tpu.matmul %200, %201, %cst_66 {dimension_numbers = #tpu.dot_dimension_numbers<[1], [0], [0], [1], [0, 0, 1, 1], [], []>} : vector<8x256xbf16>, vector<256x256xbf16>, vector<8x256xf32> -> vector<8x256xf32>
    %203 = vector.broadcast %3 : vector<1x256xf32> to vector<8x256xf32>
    %204 = arith.addf %202, %203 : vector<8x256xf32>
    %205 = vector.extract_strided_slice %6 {offsets = [0, 0, 0], sizes = [1, 8, 256], strides = [1, 1, 1]} : vector<2x8x256xf32> to vector<1x8x256xf32>
    %206 = vector.shape_cast %205 : vector<1x8x256xf32> to vector<8x256xf32>
    %207 = arith.addf %204, %206 : vector<8x256xf32>
    %cst_67 = arith.constant dense<0.000000e+00> : vector<8xf32>
    %208 = vector.multi_reduction <add>, %207, %cst_67 [1] : vector<8x256xf32> to vector<8xf32>
    %209 = vector.shape_cast %208 : vector<8xf32> to vector<8x1xf32>
    %cst_68 = arith.constant 2.560000e+02 : f32
    %210 = vector.broadcast %cst_68 : f32 to vector<8x1xf32>
    %211 = arith.divf %209, %210 : vector<8x1xf32>
    %212 = vector.broadcast %211 : vector<8x1xf32> to vector<8x256xf32>
    %213 = arith.subf %207, %212 : vector<8x256xf32>
    %214 = arith.mulf %213, %213 : vector<8x256xf32>
    %cst_69 = arith.constant dense<0.000000e+00> : vector<8xf32>
    %215 = vector.multi_reduction <add>, %214, %cst_69 [1] : vector<8x256xf32> to vector<8xf32>
    %216 = vector.shape_cast %215 : vector<8xf32> to vector<8x1xf32>
    %cst_70 = arith.constant 2.560000e+02 : f32
    %217 = vector.broadcast %cst_70 : f32 to vector<8x1xf32>
    %218 = arith.divf %216, %217 : vector<8x1xf32>
    %cst_71 = arith.constant 9.99999974E-6 : f32
    %219 = vector.broadcast %cst_71 : f32 to vector<8x1xf32>
    %220 = arith.addf %218, %219 : vector<8x1xf32>
    %221 = math.rsqrt %220 : vector<8x1xf32>
    %222 = vector.broadcast %221 : vector<8x1xf32> to vector<8x256xf32>
    %223 = arith.mulf %213, %222 : vector<8x256xf32>
    %224 = vector.broadcast %4 : vector<1x256xf32> to vector<8x256xf32>
    %225 = arith.mulf %223, %224 : vector<8x256xf32>
    %226 = vector.broadcast %5 : vector<1x256xf32> to vector<8x256xf32>
    %227 = arith.addf %225, %226 : vector<8x256xf32>
    %c0_72 = arith.constant 0 : index
    %c0_73 = arith.constant 0 : index
    %c0_74 = arith.constant 0 : index
    %228 = vector.load %arg9[%c0_72, %c0_73, %c0_74] : memref<2x8x256xf32, #tpu.memory_space<vmem>>, vector<1x8x256xf32>
    %229 = vector.shape_cast %228 : vector<1x8x256xf32> to vector<8x256xf32>
    %230 = vector.shape_cast %227 : vector<8x256xf32> to vector<1x8x256xf32>
    tpu.vector_store %arg9[%c0_72, %c0_73, %c0_74], %230 {strides = array<i32>} : memref<2x8x256xf32, #tpu.memory_space<vmem>>, vector<1x8x256xf32>,
    %cst_75 = arith.constant 1.250000e-01 : f32
    %231 = vector.broadcast %cst_75 : f32 to vector<8x128xf32>
    %232 = arith.mulf %196, %231 : vector<8x128xf32>
    %c0_76 = arith.constant 0 : index
    %c0_77 = arith.constant 0 : index
    %c0_78 = arith.constant 0 : index
    %233 = vector.load %arg10[%c0_76, %c0_77, %c0_78] : memref<2x8x128xf32, #tpu.memory_space<vmem>>, vector<1x8x128xf32>
    %234 = vector.shape_cast %233 : vector<1x8x128xf32> to vector<8x128xf32>
    %235 = vector.shape_cast %232 : vector<8x128xf32> to vector<1x8x128xf32>
    tpu.vector_store %arg10[%c0_76, %c0_77, %c0_78], %235 {strides = array<i32>} : memref<2x8x128xf32, #tpu.memory_space<vmem>>, vector<1x8x128xf32>,
    %236 = vector.extract_strided_slice %12 {offsets = [8, 0], sizes = [8, 256], strides = [1, 1]} : vector<16x256xf32> to vector<8x256xf32>
    %237 = vector.extract_strided_slice %19 {offsets = [128, 0], sizes = [128, 256], strides = [1, 1]} : vector<256x256xf32> to vector<128x256xf32>
    %238 = vector.extract_strided_slice %26 {offsets = [128, 0], sizes = [128, 256], strides = [1, 1]} : vector<256x256xf32> to vector<128x256xf32>
    %cst_79 = arith.constant 0.000000e+00 : f32
    %239 = vector.broadcast %cst_79 : f32 to vector<8x128xf32>
    %240 = vector.extract_strided_slice %236 {offsets = [0, 0], sizes = [8, 32], strides = [1, 1]} : vector<8x256xf32> to vector<8x32xf32>
    %241 = arith.truncf %240 : vector<8x32xf32> to vector<8x32xbf16>
    %242 = vector.extract_strided_slice %237 {offsets = [0, 0], sizes = [128, 32], strides = [1, 1]} : vector<128x256xf32> to vector<128x32xf32>
    %243 = arith.truncf %242 : vector<128x32xf32> to vector<128x32xbf16>
    %244 = vector.extract_strided_slice %238 {offsets = [0, 0], sizes = [128, 32], strides = [1, 1]} : vector<128x256xf32> to vector<128x32xf32>
    %245 = arith.truncf %244 : vector<128x32xf32> to vector<128x32xbf16>
    %cst_80 = arith.constant dense<0.000000e+00> : vector<8x128xf32>
    %246 = tpu.matmul %241, %243, %cst_80 {dimension_numbers = #tpu.dot_dimension_numbers<[1], [1], [0], [0], [0, 0, 1, 0], [], []>} : vector<8x32xbf16>, vector<128x32xbf16>, vector<8x128xf32> -> vector<8x128xf32>
    %cst_81 = arith.constant dense<0xFF800000> : vector<8xf32>
    %247 = vector.multi_reduction <maximumf>, %246, %cst_81 [1] : vector<8x128xf32> to vector<8xf32>
    %248 = vector.shape_cast %247 : vector<8xf32> to vector<8x1xf32>
    %249 = vector.broadcast %248 : vector<8x1xf32> to vector<8x128xf32>
    %250 = arith.subf %246, %249 : vector<8x128xf32>
    %251 = math.exp %250 : vector<8x128xf32>
    %cst_82 = arith.constant dense<0.000000e+00> : vector<8xf32>
    %252 = vector.multi_reduction <add>, %251, %cst_82 [1] : vector<8x128xf32> to vector<8xf32>
    %253 = vector.shape_cast %252 : vector<8xf32> to vector<8x1xf32>
    %cst_83 = arith.constant 1.000000e+00 : f32
    %254 = vector.broadcast %cst_83 : f32 to vector<8x1xf32>
    %255 = arith.divf %254, %253 : vector<8x1xf32>
    %256 = vector.broadcast %255 : vector<8x1xf32> to vector<8x128xf32>
    %257 = arith.mulf %251, %256 : vector<8x128xf32>
    %258 = arith.addf %239, %257 : vector<8x128xf32>
    %259 = arith.truncf %257 : vector<8x128xf32> to vector<8x128xbf16>
    %cst_84 = arith.constant dense<0.000000e+00> : vector<8x32xf32>
    %260 = tpu.matmul %259, %245, %cst_84 {dimension_numbers = #tpu.dot_dimension_numbers<[1], [0], [0], [1], [0, 0, 1, 1], [], []>} : vector<8x128xbf16>, vector<128x32xbf16>, vector<8x32xf32> -> vector<8x32xf32>
    %261 = vector.extract_strided_slice %236 {offsets = [0, 32], sizes = [8, 32], strides = [1, 1]} : vector<8x256xf32> to vector<8x32xf32>
    %262 = arith.truncf %261 : vector<8x32xf32> to vector<8x32xbf16>
    %263 = vector.extract_strided_slice %237 {offsets = [0, 32], sizes = [128, 32], strides = [1, 1]} : vector<128x256xf32> to vector<128x32xf32>
    %264 = arith.truncf %263 : vector<128x32xf32> to vector<128x32xbf16>
    %265 = vector.extract_strided_slice %238 {offsets = [0, 32], sizes = [128, 32], strides = [1, 1]} : vector<128x256xf32> to vector<128x32xf32>
    %266 = arith.truncf %265 : vector<128x32xf32> to vector<128x32xbf16>
    %cst_85 = arith.constant dense<0.000000e+00> : vector<8x128xf32>
    %267 = tpu.matmul %262, %264, %cst_85 {dimension_numbers = #tpu.dot_dimension_numbers<[1], [1], [0], [0], [0, 0, 1, 0], [], []>} : vector<8x32xbf16>, vector<128x32xbf16>, vector<8x128xf32> -> vector<8x128xf32>
    %cst_86 = arith.constant dense<0xFF800000> : vector<8xf32>
    %268 = vector.multi_reduction <maximumf>, %267, %cst_86 [1] : vector<8x128xf32> to vector<8xf32>
    %269 = vector.shape_cast %268 : vector<8xf32> to vector<8x1xf32>
    %270 = vector.broadcast %269 : vector<8x1xf32> to vector<8x128xf32>
    %271 = arith.subf %267, %270 : vector<8x128xf32>
    %272 = math.exp %271 : vector<8x128xf32>
    %cst_87 = arith.constant dense<0.000000e+00> : vector<8xf32>
    %273 = vector.multi_reduction <add>, %272, %cst_87 [1] : vector<8x128xf32> to vector<8xf32>
    %274 = vector.shape_cast %273 : vector<8xf32> to vector<8x1xf32>
    %cst_88 = arith.constant 1.000000e+00 : f32
    %275 = vector.broadcast %cst_88 : f32 to vector<8x1xf32>
    %276 = arith.divf %275, %274 : vector<8x1xf32>
    %277 = vector.broadcast %276 : vector<8x1xf32> to vector<8x128xf32>
    %278 = arith.mulf %272, %277 : vector<8x128xf32>
    %279 = arith.addf %258, %278 : vector<8x128xf32>
    %280 = arith.truncf %278 : vector<8x128xf32> to vector<8x128xbf16>
    %cst_89 = arith.constant dense<0.000000e+00> : vector<8x32xf32>
    %281 = tpu.matmul %280, %266, %cst_89 {dimension_numbers = #tpu.dot_dimension_numbers<[1], [0], [0], [1], [0, 0, 1, 1], [], []>} : vector<8x128xbf16>, vector<128x32xbf16>, vector<8x32xf32> -> vector<8x32xf32>
    %282 = vector.extract_strided_slice %236 {offsets = [0, 64], sizes = [8, 32], strides = [1, 1]} : vector<8x256xf32> to vector<8x32xf32>
    %283 = arith.truncf %282 : vector<8x32xf32> to vector<8x32xbf16>
    %284 = vector.extract_strided_slice %237 {offsets = [0, 64], sizes = [128, 32], strides = [1, 1]} : vector<128x256xf32> to vector<128x32xf32>
    %285 = arith.truncf %284 : vector<128x32xf32> to vector<128x32xbf16>
    %286 = vector.extract_strided_slice %238 {offsets = [0, 64], sizes = [128, 32], strides = [1, 1]} : vector<128x256xf32> to vector<128x32xf32>
    %287 = arith.truncf %286 : vector<128x32xf32> to vector<128x32xbf16>
    %cst_90 = arith.constant dense<0.000000e+00> : vector<8x128xf32>
    %288 = tpu.matmul %283, %285, %cst_90 {dimension_numbers = #tpu.dot_dimension_numbers<[1], [1], [0], [0], [0, 0, 1, 0], [], []>} : vector<8x32xbf16>, vector<128x32xbf16>, vector<8x128xf32> -> vector<8x128xf32>
    %cst_91 = arith.constant dense<0xFF800000> : vector<8xf32>
    %289 = vector.multi_reduction <maximumf>, %288, %cst_91 [1] : vector<8x128xf32> to vector<8xf32>
    %290 = vector.shape_cast %289 : vector<8xf32> to vector<8x1xf32>
    %291 = vector.broadcast %290 : vector<8x1xf32> to vector<8x128xf32>
    %292 = arith.subf %288, %291 : vector<8x128xf32>
    %293 = math.exp %292 : vector<8x128xf32>
    %cst_92 = arith.constant dense<0.000000e+00> : vector<8xf32>
    %294 = vector.multi_reduction <add>, %293, %cst_92 [1] : vector<8x128xf32> to vector<8xf32>
    %295 = vector.shape_cast %294 : vector<8xf32> to vector<8x1xf32>
    %cst_93 = arith.constant 1.000000e+00 : f32
    %296 = vector.broadcast %cst_93 : f32 to vector<8x1xf32>
    %297 = arith.divf %296, %295 : vector<8x1xf32>
    %298 = vector.broadcast %297 : vector<8x1xf32> to vector<8x128xf32>
    %299 = arith.mulf %293, %298 : vector<8x128xf32>
    %300 = arith.addf %279, %299 : vector<8x128xf32>
    %301 = arith.truncf %299 : vector<8x128xf32> to vector<8x128xbf16>
    %cst_94 = arith.constant dense<0.000000e+00> : vector<8x32xf32>
    %302 = tpu.matmul %301, %287, %cst_94 {dimension_numbers = #tpu.dot_dimension_numbers<[1], [0], [0], [1], [0, 0, 1, 1], [], []>} : vector<8x128xbf16>, vector<128x32xbf16>, vector<8x32xf32> -> vector<8x32xf32>
    %303 = vector.extract_strided_slice %236 {offsets = [0, 96], sizes = [8, 32], strides = [1, 1]} : vector<8x256xf32> to vector<8x32xf32>
    %304 = arith.truncf %303 : vector<8x32xf32> to vector<8x32xbf16>
    %305 = vector.extract_strided_slice %237 {offsets = [0, 96], sizes = [128, 32], strides = [1, 1]} : vector<128x256xf32> to vector<128x32xf32>
    %306 = arith.truncf %305 : vector<128x32xf32> to vector<128x32xbf16>
    %307 = vector.extract_strided_slice %238 {offsets = [0, 96], sizes = [128, 32], strides = [1, 1]} : vector<128x256xf32> to vector<128x32xf32>
    %308 = arith.truncf %307 : vector<128x32xf32> to vector<128x32xbf16>
    %cst_95 = arith.constant dense<0.000000e+00> : vector<8x128xf32>
    %309 = tpu.matmul %304, %306, %cst_95 {dimension_numbers = #tpu.dot_dimension_numbers<[1], [1], [0], [0], [0, 0, 1, 0], [], []>} : vector<8x32xbf16>, vector<128x32xbf16>, vector<8x128xf32> -> vector<8x128xf32>
    %cst_96 = arith.constant dense<0xFF800000> : vector<8xf32>
    %310 = vector.multi_reduction <maximumf>, %309, %cst_96 [1] : vector<8x128xf32> to vector<8xf32>
    %311 = vector.shape_cast %310 : vector<8xf32> to vector<8x1xf32>
    %312 = vector.broadcast %311 : vector<8x1xf32> to vector<8x128xf32>
    %313 = arith.subf %309, %312 : vector<8x128xf32>
    %314 = math.exp %313 : vector<8x128xf32>
    %cst_97 = arith.constant dense<0.000000e+00> : vector<8xf32>
    %315 = vector.multi_reduction <add>, %314, %cst_97 [1] : vector<8x128xf32> to vector<8xf32>
    %316 = vector.shape_cast %315 : vector<8xf32> to vector<8x1xf32>
    %cst_98 = arith.constant 1.000000e+00 : f32
    %317 = vector.broadcast %cst_98 : f32 to vector<8x1xf32>
    %318 = arith.divf %317, %316 : vector<8x1xf32>
    %319 = vector.broadcast %318 : vector<8x1xf32> to vector<8x128xf32>
    %320 = arith.mulf %314, %319 : vector<8x128xf32>
    %321 = arith.addf %300, %320 : vector<8x128xf32>
    %322 = arith.truncf %320 : vector<8x128xf32> to vector<8x128xbf16>
    %cst_99 = arith.constant dense<0.000000e+00> : vector<8x32xf32>
    %323 = tpu.matmul %322, %308, %cst_99 {dimension_numbers = #tpu.dot_dimension_numbers<[1], [0], [0], [1], [0, 0, 1, 1], [], []>} : vector<8x128xbf16>, vector<128x32xbf16>, vector<8x32xf32> -> vector<8x32xf32>
    %324 = vector.extract_strided_slice %236 {offsets = [0, 128], sizes = [8, 32], strides = [1, 1]} : vector<8x256xf32> to vector<8x32xf32>
    %325 = arith.truncf %324 : vector<8x32xf32> to vector<8x32xbf16>
    %326 = vector.extract_strided_slice %237 {offsets = [0, 128], sizes = [128, 32], strides = [1, 1]} : vector<128x256xf32> to vector<128x32xf32>
    %327 = arith.truncf %326 : vector<128x32xf32> to vector<128x32xbf16>
    %328 = vector.extract_strided_slice %238 {offsets = [0, 128], sizes = [128, 32], strides = [1, 1]} : vector<128x256xf32> to vector<128x32xf32>
    %329 = arith.truncf %328 : vector<128x32xf32> to vector<128x32xbf16>
    %cst_100 = arith.constant dense<0.000000e+00> : vector<8x128xf32>
    %330 = tpu.matmul %325, %327, %cst_100 {dimension_numbers = #tpu.dot_dimension_numbers<[1], [1], [0], [0], [0, 0, 1, 0], [], []>} : vector<8x32xbf16>, vector<128x32xbf16>, vector<8x128xf32> -> vector<8x128xf32>
    %cst_101 = arith.constant dense<0xFF800000> : vector<8xf32>
    %331 = vector.multi_reduction <maximumf>, %330, %cst_101 [1] : vector<8x128xf32> to vector<8xf32>
    %332 = vector.shape_cast %331 : vector<8xf32> to vector<8x1xf32>
    %333 = vector.broadcast %332 : vector<8x1xf32> to vector<8x128xf32>
    %334 = arith.subf %330, %333 : vector<8x128xf32>
    %335 = math.exp %334 : vector<8x128xf32>
    %cst_102 = arith.constant dense<0.000000e+00> : vector<8xf32>
    %336 = vector.multi_reduction <add>, %335, %cst_102 [1] : vector<8x128xf32> to vector<8xf32>
    %337 = vector.shape_cast %336 : vector<8xf32> to vector<8x1xf32>
    %cst_103 = arith.constant 1.000000e+00 : f32
    %338 = vector.broadcast %cst_103 : f32 to vector<8x1xf32>
    %339 = arith.divf %338, %337 : vector<8x1xf32>
    %340 = vector.broadcast %339 : vector<8x1xf32> to vector<8x128xf32>
    %341 = arith.mulf %335, %340 : vector<8x128xf32>
    %342 = arith.addf %321, %341 : vector<8x128xf32>
    %343 = arith.truncf %341 : vector<8x128xf32> to vector<8x128xbf16>
    %cst_104 = arith.constant dense<0.000000e+00> : vector<8x32xf32>
    %344 = tpu.matmul %343, %329, %cst_104 {dimension_numbers = #tpu.dot_dimension_numbers<[1], [0], [0], [1], [0, 0, 1, 1], [], []>} : vector<8x128xbf16>, vector<128x32xbf16>, vector<8x32xf32> -> vector<8x32xf32>
    %345 = vector.extract_strided_slice %236 {offsets = [0, 160], sizes = [8, 32], strides = [1, 1]} : vector<8x256xf32> to vector<8x32xf32>
    %346 = arith.truncf %345 : vector<8x32xf32> to vector<8x32xbf16>
    %347 = vector.extract_strided_slice %237 {offsets = [0, 160], sizes = [128, 32], strides = [1, 1]} : vector<128x256xf32> to vector<128x32xf32>
    %348 = arith.truncf %347 : vector<128x32xf32> to vector<128x32xbf16>
    %349 = vector.extract_strided_slice %238 {offsets = [0, 160], sizes = [128, 32], strides = [1, 1]} : vector<128x256xf32> to vector<128x32xf32>
    %350 = arith.truncf %349 : vector<128x32xf32> to vector<128x32xbf16>
    %cst_105 = arith.constant dense<0.000000e+00> : vector<8x128xf32>
    %351 = tpu.matmul %346, %348, %cst_105 {dimension_numbers = #tpu.dot_dimension_numbers<[1], [1], [0], [0], [0, 0, 1, 0], [], []>} : vector<8x32xbf16>, vector<128x32xbf16>, vector<8x128xf32> -> vector<8x128xf32>
    %cst_106 = arith.constant dense<0xFF800000> : vector<8xf32>
    %352 = vector.multi_reduction <maximumf>, %351, %cst_106 [1] : vector<8x128xf32> to vector<8xf32>
    %353 = vector.shape_cast %352 : vector<8xf32> to vector<8x1xf32>
    %354 = vector.broadcast %353 : vector<8x1xf32> to vector<8x128xf32>
    %355 = arith.subf %351, %354 : vector<8x128xf32>
    %356 = math.exp %355 : vector<8x128xf32>
    %cst_107 = arith.constant dense<0.000000e+00> : vector<8xf32>
    %357 = vector.multi_reduction <add>, %356, %cst_107 [1] : vector<8x128xf32> to vector<8xf32>
    %358 = vector.shape_cast %357 : vector<8xf32> to vector<8x1xf32>
    %cst_108 = arith.constant 1.000000e+00 : f32
    %359 = vector.broadcast %cst_108 : f32 to vector<8x1xf32>
    %360 = arith.divf %359, %358 : vector<8x1xf32>
    %361 = vector.broadcast %360 : vector<8x1xf32> to vector<8x128xf32>
    %362 = arith.mulf %356, %361 : vector<8x128xf32>
    %363 = arith.addf %342, %362 : vector<8x128xf32>
    %364 = arith.truncf %362 : vector<8x128xf32> to vector<8x128xbf16>
    %cst_109 = arith.constant dense<0.000000e+00> : vector<8x32xf32>
    %365 = tpu.matmul %364, %350, %cst_109 {dimension_numbers = #tpu.dot_dimension_numbers<[1], [0], [0], [1], [0, 0, 1, 1], [], []>} : vector<8x128xbf16>, vector<128x32xbf16>, vector<8x32xf32> -> vector<8x32xf32>
    %366 = vector.extract_strided_slice %236 {offsets = [0, 192], sizes = [8, 32], strides = [1, 1]} : vector<8x256xf32> to vector<8x32xf32>
    %367 = arith.truncf %366 : vector<8x32xf32> to vector<8x32xbf16>
    %368 = vector.extract_strided_slice %237 {offsets = [0, 192], sizes = [128, 32], strides = [1, 1]} : vector<128x256xf32> to vector<128x32xf32>
    %369 = arith.truncf %368 : vector<128x32xf32> to vector<128x32xbf16>
    %370 = vector.extract_strided_slice %238 {offsets = [0, 192], sizes = [128, 32], strides = [1, 1]} : vector<128x256xf32> to vector<128x32xf32>
    %371 = arith.truncf %370 : vector<128x32xf32> to vector<128x32xbf16>
    %cst_110 = arith.constant dense<0.000000e+00> : vector<8x128xf32>
    %372 = tpu.matmul %367, %369, %cst_110 {dimension_numbers = #tpu.dot_dimension_numbers<[1], [1], [0], [0], [0, 0, 1, 0], [], []>} : vector<8x32xbf16>, vector<128x32xbf16>, vector<8x128xf32> -> vector<8x128xf32>
    %cst_111 = arith.constant dense<0xFF800000> : vector<8xf32>
    %373 = vector.multi_reduction <maximumf>, %372, %cst_111 [1] : vector<8x128xf32> to vector<8xf32>
    %374 = vector.shape_cast %373 : vector<8xf32> to vector<8x1xf32>
    %375 = vector.broadcast %374 : vector<8x1xf32> to vector<8x128xf32>
    %376 = arith.subf %372, %375 : vector<8x128xf32>
    %377 = math.exp %376 : vector<8x128xf32>
    %cst_112 = arith.constant dense<0.000000e+00> : vector<8xf32>
    %378 = vector.multi_reduction <add>, %377, %cst_112 [1] : vector<8x128xf32> to vector<8xf32>
    %379 = vector.shape_cast %378 : vector<8xf32> to vector<8x1xf32>
    %cst_113 = arith.constant 1.000000e+00 : f32
    %380 = vector.broadcast %cst_113 : f32 to vector<8x1xf32>
    %381 = arith.divf %380, %379 : vector<8x1xf32>
    %382 = vector.broadcast %381 : vector<8x1xf32> to vector<8x128xf32>
    %383 = arith.mulf %377, %382 : vector<8x128xf32>
    %384 = arith.addf %363, %383 : vector<8x128xf32>
    %385 = arith.truncf %383 : vector<8x128xf32> to vector<8x128xbf16>
    %cst_114 = arith.constant dense<0.000000e+00> : vector<8x32xf32>
    %386 = tpu.matmul %385, %371, %cst_114 {dimension_numbers = #tpu.dot_dimension_numbers<[1], [0], [0], [1], [0, 0, 1, 1], [], []>} : vector<8x128xbf16>, vector<128x32xbf16>, vector<8x32xf32> -> vector<8x32xf32>
    %387 = vector.extract_strided_slice %236 {offsets = [0, 224], sizes = [8, 32], strides = [1, 1]} : vector<8x256xf32> to vector<8x32xf32>
    %388 = arith.truncf %387 : vector<8x32xf32> to vector<8x32xbf16>
    %389 = vector.extract_strided_slice %237 {offsets = [0, 224], sizes = [128, 32], strides = [1, 1]} : vector<128x256xf32> to vector<128x32xf32>
    %390 = arith.truncf %389 : vector<128x32xf32> to vector<128x32xbf16>
    %391 = vector.extract_strided_slice %238 {offsets = [0, 224], sizes = [128, 32], strides = [1, 1]} : vector<128x256xf32> to vector<128x32xf32>
    %392 = arith.truncf %391 : vector<128x32xf32> to vector<128x32xbf16>
    %cst_115 = arith.constant dense<0.000000e+00> : vector<8x128xf32>
    %393 = tpu.matmul %388, %390, %cst_115 {dimension_numbers = #tpu.dot_dimension_numbers<[1], [1], [0], [0], [0, 0, 1, 0], [], []>} : vector<8x32xbf16>, vector<128x32xbf16>, vector<8x128xf32> -> vector<8x128xf32>
    %cst_116 = arith.constant dense<0xFF800000> : vector<8xf32>
    %394 = vector.multi_reduction <maximumf>, %393, %cst_116 [1] : vector<8x128xf32> to vector<8xf32>
    %395 = vector.shape_cast %394 : vector<8xf32> to vector<8x1xf32>
    %396 = vector.broadcast %395 : vector<8x1xf32> to vector<8x128xf32>
    %397 = arith.subf %393, %396 : vector<8x128xf32>
    %398 = math.exp %397 : vector<8x128xf32>
    %cst_117 = arith.constant dense<0.000000e+00> : vector<8xf32>
    %399 = vector.multi_reduction <add>, %398, %cst_117 [1] : vector<8x128xf32> to vector<8xf32>
    %400 = vector.shape_cast %399 : vector<8xf32> to vector<8x1xf32>
    %cst_118 = arith.constant 1.000000e+00 : f32
    %401 = vector.broadcast %cst_118 : f32 to vector<8x1xf32>
    %402 = arith.divf %401, %400 : vector<8x1xf32>
    %403 = vector.broadcast %402 : vector<8x1xf32> to vector<8x128xf32>
    %404 = arith.mulf %398, %403 : vector<8x128xf32>
    %405 = arith.addf %384, %404 : vector<8x128xf32>
    %406 = arith.truncf %404 : vector<8x128xf32> to vector<8x128xbf16>
    %cst_119 = arith.constant dense<0.000000e+00> : vector<8x32xf32>
    %407 = tpu.matmul %406, %392, %cst_119 {dimension_numbers = #tpu.dot_dimension_numbers<[1], [0], [0], [1], [0, 0, 1, 1], [], []>} : vector<8x128xbf16>, vector<128x32xbf16>, vector<8x32xf32> -> vector<8x32xf32>
    %408 = tpu.concatenate %260, %281, %302, %323, %344, %365, %386, %407 in 1 : vector<8x32xf32>, vector<8x32xf32>, vector<8x32xf32>, vector<8x32xf32>, vector<8x32xf32>, vector<8x32xf32>, vector<8x32xf32>, vector<8x32xf32> -> vector<8x256xf32>
    %409 = arith.truncf %408 : vector<8x256xf32> to vector<8x256xbf16>
    %c0_120 = arith.constant 0 : index
    %c0_121 = arith.constant 0 : index
    %410 = vector.load %arg7[%c0_120, %c0_121] : memref<256x256xbf16, #tpu.memory_space<vmem>>, vector<256x256xbf16>
    %cst_122 = arith.constant dense<0.000000e+00> : vector<8x256xf32>
    %411 = tpu.matmul %409, %410, %cst_122 {dimension_numbers = #tpu.dot_dimension_numbers<[1], [0], [0], [1], [0, 0, 1, 1], [], []>} : vector<8x256xbf16>, vector<256x256xbf16>, vector<8x256xf32> -> vector<8x256xf32>
    %412 = vector.broadcast %3 : vector<1x256xf32> to vector<8x256xf32>
    %413 = arith.addf %411, %412 : vector<8x256xf32>
    %414 = vector.extract_strided_slice %6 {offsets = [1, 0, 0], sizes = [1, 8, 256], strides = [1, 1, 1]} : vector<2x8x256xf32> to vector<1x8x256xf32>
    %415 = vector.shape_cast %414 : vector<1x8x256xf32> to vector<8x256xf32>
    %416 = arith.addf %413, %415 : vector<8x256xf32>
    %cst_123 = arith.constant dense<0.000000e+00> : vector<8xf32>
    %417 = vector.multi_reduction <add>, %416, %cst_123 [1] : vector<8x256xf32> to vector<8xf32>
    %418 = vector.shape_cast %417 : vector<8xf32> to vector<8x1xf32>
    %cst_124 = arith.constant 2.560000e+02 : f32
    %419 = vector.broadcast %cst_124 : f32 to vector<8x1xf32>
    %420 = arith.divf %418, %419 : vector<8x1xf32>
    %421 = vector.broadcast %420 : vector<8x1xf32> to vector<8x256xf32>
    %422 = arith.subf %416, %421 : vector<8x256xf32>
    %423 = arith.mulf %422, %422 : vector<8x256xf32>
    %cst_125 = arith.constant dense<0.000000e+00> : vector<8xf32>
    %424 = vector.multi_reduction <add>, %423, %cst_125 [1] : vector<8x256xf32> to vector<8xf32>
    %425 = vector.shape_cast %424 : vector<8xf32> to vector<8x1xf32>
    %cst_126 = arith.constant 2.560000e+02 : f32
    %426 = vector.broadcast %cst_126 : f32 to vector<8x1xf32>
    %427 = arith.divf %425, %426 : vector<8x1xf32>
    %cst_127 = arith.constant 9.99999974E-6 : f32
    %428 = vector.broadcast %cst_127 : f32 to vector<8x1xf32>
    %429 = arith.addf %427, %428 : vector<8x1xf32>
    %430 = math.rsqrt %429 : vector<8x1xf32>
    %431 = vector.broadcast %430 : vector<8x1xf32> to vector<8x256xf32>
    %432 = arith.mulf %422, %431 : vector<8x256xf32>
    %433 = vector.broadcast %4 : vector<1x256xf32> to vector<8x256xf32>
    %434 = arith.mulf %432, %433 : vector<8x256xf32>
    %435 = vector.broadcast %5 : vector<1x256xf32> to vector<8x256xf32>
    %436 = arith.addf %434, %435 : vector<8x256xf32>
    %c1_128 = arith.constant 1 : index
    %c0_129 = arith.constant 0 : index
    %c0_130 = arith.constant 0 : index
    %437 = vector.load %arg9[%c1_128, %c0_129, %c0_130] : memref<2x8x256xf32, #tpu.memory_space<vmem>>, vector<1x8x256xf32>
    %438 = vector.shape_cast %437 : vector<1x8x256xf32> to vector<8x256xf32>
    %439 = vector.shape_cast %436 : vector<8x256xf32> to vector<1x8x256xf32>
    tpu.vector_store %arg9[%c1_128, %c0_129, %c0_130], %439 {strides = array<i32>} : memref<2x8x256xf32, #tpu.memory_space<vmem>>, vector<1x8x256xf32>,
    %cst_131 = arith.constant 1.250000e-01 : f32
    %440 = vector.broadcast %cst_131 : f32 to vector<8x128xf32>
    %441 = arith.mulf %405, %440 : vector<8x128xf32>
    %c1_132 = arith.constant 1 : index
    %c0_133 = arith.constant 0 : index
    %c0_134 = arith.constant 0 : index
    %442 = vector.load %arg10[%c1_132, %c0_133, %c0_134] : memref<2x8x128xf32, #tpu.memory_space<vmem>>, vector<1x8x128xf32>
    %443 = vector.shape_cast %442 : vector<1x8x128xf32> to vector<8x128xf32>
    %444 = vector.shape_cast %441 : vector<8x128xf32> to vector<1x8x128xf32>
    tpu.vector_store %arg10[%c1_132, %c0_133, %c0_134], %444 {strides = array<i32>} : memref<2x8x128xf32, #tpu.memory_space<vmem>>, vector<1x8x128xf32>,
    return
  }
  func.func @transform_0(%arg0: i32) -> (i32, i32, i32) {
    %c0_i32 = arith.constant 0 : i32
    %c0_i32_0 = arith.constant 0 : i32
    %c0_i32_1 = arith.constant 0 : i32
    return %arg0, %c0_i32, %c0_i32_0 : i32, i32, i32
  }
  func.func @transform_1(%arg0: i32) -> (i32, i32, i32) {
    %c0_i32 = arith.constant 0 : i32
    %c0_i32_0 = arith.constant 0 : i32
    %c0_i32_1 = arith.constant 0 : i32
    return %arg0, %c0_i32, %c0_i32_0 : i32, i32, i32
  }
  func.func @transform_2(%arg0: i32) -> (i32, i32, i32) {
    %c0_i32 = arith.constant 0 : i32
    %c0_i32_0 = arith.constant 0 : i32
    %c0_i32_1 = arith.constant 0 : i32
    return %arg0, %c0_i32, %c0_i32_0 : i32, i32, i32
  }
  func.func @transform_3(%arg0: i32) -> (i32, i32) {
    %c0_i32 = arith.constant 0 : i32
    %c0_i32_0 = arith.constant 0 : i32
    %c0_i32_1 = arith.constant 0 : i32
    return %c0_i32, %c0_i32_0 : i32, i32
  }
  func.func @transform_4(%arg0: i32) -> (i32, i32) {
    %c0_i32 = arith.constant 0 : i32
    %c0_i32_0 = arith.constant 0 : i32
    %c0_i32_1 = arith.constant 0 : i32
    return %c0_i32, %c0_i32_0 : i32, i32
  }
  func.func @transform_5(%arg0: i32) -> (i32, i32) {
    %c0_i32 = arith.constant 0 : i32
    %c0_i32_0 = arith.constant 0 : i32
    %c0_i32_1 = arith.constant 0 : i32
    return %c0_i32, %c0_i32_0 : i32, i32
  }
  func.func @transform_6(%arg0: i32) -> (i32, i32) {
    %c0_i32 = arith.constant 0 : i32
    %c0_i32_0 = arith.constant 0 : i32
    %c0_i32_1 = arith.constant 0 : i32
    return %c0_i32, %c0_i32_0 : i32, i32
  }
  func.func @transform_7(%arg0: i32) -> (i32, i32) {
    %c0_i32 = arith.constant 0 : i32
    %c0_i32_0 = arith.constant 0 : i32
    %c0_i32_1 = arith.constant 0 : i32
    return %c0_i32, %c0_i32_0 : i32, i32
  }
  func.func @transform_8(%arg0: i32) -> (i32, i32, i32) {
    %c0_i32 = arith.constant 0 : i32
    %c0_i32_0 = arith.constant 0 : i32
    %c0_i32_1 = arith.constant 0 : i32
    return %arg0, %c0_i32, %c0_i32_0 : i32, i32, i32
  }
  func.func @transform_9(%arg0: i32) -> (i32, i32, i32) {
    %c0_i32 = arith.constant 0 : i32
    %c0_i32_0 = arith.constant 0 : i32
    %c0_i32_1 = arith.constant 0 : i32
    return %arg0, %c0_i32, %c0_i32_0 : i32, i32, i32
  }
}

</mosaic_0001>

<llo_original>
// kernel: attention_mechanism.1
$region0: #{attention_mechanism.1}
  #allocation0 [shape = 'u32[]', space=smem, size = 0x4, offset = 0x4, fixed_abs, tag = 'smem constant byte address 0x4 - core index']
  #allocation1 [shape = 'u32[144,128]{1,0:T(1,128)}', space=vmem, size = 0x12000, scoped, tag = 'internal scratch']
  %s0 = inlined_call_operand.vmem [shape: f32[2,8,256], index: 0, kind: input, shape index: {}]
  %s1 = inlined_call_operand.vmem [shape: f32[2,128,256], index: 1, kind: input, shape index: {}]
  %s2 = inlined_call_operand.vmem [shape: f32[2,128,256], index: 2, kind: input, shape index: {}]
  %s3 = inlined_call_operand.vmem [shape: bf16[256,256], index: 3, kind: input, shape index: {}]
  %s4 = inlined_call_operand.vmem [shape: bf16[256,256], index: 4, kind: input, shape index: {}]
  %s5 = inlined_call_operand.vmem [shape: bf16[256,256], index: 5, kind: input, shape index: {}]
  %s6 = inlined_call_operand.vmem [shape: bf16[256,256], index: 6, kind: input, shape index: {}]
  %s7 = inlined_call_operand.vmem [shape: f32[8,256], index: 7, kind: input, shape index: {}]
  %s8 = inlined_call_operand.hbm [shape: f32[2,8,256], index: 8, kind: output, shape index: {0}]
  %s9 = inlined_call_operand.hbm [shape: f32[2,8,128], index: 9, kind: output, shape index: {1}]
  %10 = xla_tuple %s8, %s9
  %s11 = sld [smem:[#allocation0]]
  $region50: #{attention_mechanism.1} parent=0
    _
  %s13 = ssub.s32 1, %s11
  %s14 = scalar_select 0, %s13, %s11
  $region1: #{attention_mechanism.1} parent=0
    #allocation2 [shape = 'u8[16384]{0}', space=vmem, size = 0x4000, scoped, tag = 'output window, operand 0, single buffered']
    #allocation3 [shape = 's32[1]{0}', space=sflag, size = 0x4, scoped, tag = 'scoped memory for attention_mechanism.1']
    #allocation4 [shape = 'u8[8192]{0}', space=vmem, size = 0x2000, scoped, tag = 'output window, operand 1, single buffered']
    #allocation5 [shape = 's32[1]{0}', space=sflag, size = 0x4, scoped, tag = 'scoped memory for attention_mechanism.1']
    %15 = vsyncpa [#allocation3], 0
    %16 = vsyncpa [#allocation5], 0
    // Predicated region
    $region2: #{attention_mechanism.1} parent=1 // pred_check
      _
    $region3: #{attention_mechanism.1} parent=1 // pred_check_branch
      %18 = sbr.rel (0) target = $region5
    $region4: #{attention_mechanism.1} parent=1 // pred_region
      _
    $region5: #{attention_mechanism.1} parent=1 // pred_fallthru
      _
    // Predicated region
    $region6: #{attention_mechanism.1} parent=1 // pred_check
      _
    $region7: #{attention_mechanism.1} parent=1 // pred_check_branch
      %20 = sbr.rel (0) target = $region9
    $region8: #{attention_mechanism.1} parent=1 // pred_region
      _
    $region9: #{attention_mechanism.1} parent=1 // pred_fallthru
      _
    // Predicated region
    $region10: #{attention_mechanism.1} parent=1 // pred_check
      _
    $region11: #{attention_mechanism.1} parent=1 // pred_check_branch
      %22 = sbr.rel (0) target = $region13
    $region12: #{attention_mechanism.1} parent=1 // pred_region
      _
    $region13: #{attention_mechanism.1} parent=1 // pred_fallthru
      _
    // Predicated region
    $region14: #{attention_mechanism.1} parent=1 // pred_check
      _
    $region15: #{attention_mechanism.1} parent=1 // pred_check_branch
      %24 = sbr.rel (0) target = $region17
    $region16: #{attention_mechanism.1} parent=1 // pred_region
      _
    $region17: #{attention_mechanism.1} parent=1 // pred_fallthru
      _
    // Predicated region
    $region18: #{attention_mechanism.1} parent=1 // pred_check
      _
    $region19: #{attention_mechanism.1} parent=1 // pred_check_branch
      %26 = sbr.rel (0) target = $region21
    $region20: #{attention_mechanism.1} parent=1 // pred_region
      _
    $region21: #{attention_mechanism.1} parent=1 // pred_fallthru
      _
    // Predicated region
    $region22: #{attention_mechanism.1} parent=1 // pred_check
      _
    $region23: #{attention_mechanism.1} parent=1 // pred_check_branch
      %28 = sbr.rel (0) target = $region25
    $region24: #{attention_mechanism.1} parent=1 // pred_region
      _
    $region25: #{attention_mechanism.1} parent=1 // pred_fallthru
      _
    // Predicated region
    $region26: #{attention_mechanism.1} parent=1 // pred_check
      _
    $region27: #{attention_mechanism.1} parent=1 // pred_check_branch
      %30 = sbr.rel (0) target = $region29
    $region28: #{attention_mechanism.1} parent=1 // pred_region
      _
    $region29: #{attention_mechanism.1} parent=1 // pred_fallthru
      _
    // Predicated region
    $region30: #{attention_mechanism.1} parent=1 // pred_check
      _
    $region31: #{attention_mechanism.1} parent=1 // pred_check_branch
      %32 = sbr.rel (0) target = $region33
    $region32: #{attention_mechanism.1} parent=1 // pred_region
      _
    $region33: #{attention_mechanism.1} parent=1 // pred_fallthru
      _
    %v34 = vld [vmem:[%s7] ss:$8 sm:$0x3]
    %s35 = scalar_lea.vmem %s7, 1
    %v36 = vld [vmem:[%s35] ss:$8 sm:$0x3]
    %s37 = scalar_lea.vmem %s7, 2
    %v38 = vld [vmem:[%s37] ss:$8 sm:$0x3]
    %s39 = scalar_lea.vmem %s7, 3
    %v40 = vld [vmem:[%s39] ss:$8 sm:$0x3]
    %s41 = scalar_lea.vmem %s7, 4
    %v42 = vld [vmem:[%s41] ss:$8 sm:$0x3]
    %s43 = scalar_lea.vmem %s7, 5
    %v44 = vld [vmem:[%s43] ss:$8 sm:$0x3]
    %v45 = vld [vmem:[%s0] sm:$0xff]
    %v46 = vld [vmem:[%s0 + $0x8] sm:$0xff]
    %v47 = vld [vmem:[%s0 + $0x10] sm:$0xff]
    %v48 = vld [vmem:[%s0 + $0x18] sm:$0xff]
    %v49 = vpack.c.bf16 %v47, %v45
    %v50 = vpack.c.bf16 %v48, %v46
    %v51 = vld [vmem:[%s3] sm:$0xff]
    %v52 = vld [vmem:[%s3 + $0x8] sm:$0xff]
    %v53 = vld [vmem:[%s3 + $0x10] sm:$0xff]
    %v54 = vld [vmem:[%s3 + $0x18] sm:$0xff]
    %v55 = vld [vmem:[%s3 + $0x20] sm:$0xff]
    %v56 = vld [vmem:[%s3 + $0x28] sm:$0xff]
    %v57 = vld [vmem:[%s3 + $0x30] sm:$0xff]
    %v58 = vld [vmem:[%s3 + $0x38] sm:$0xff]
    %v59 = vld [vmem:[%s3 + $0x40] sm:$0xff]
    %v60 = vld [vmem:[%s3 + $0x48] sm:$0xff]
    %v61 = vld [vmem:[%s3 + $0x50] sm:$0xff]
    %v62 = vld [vmem:[%s3 + $0x58] sm:$0xff]
    %v63 = vld [vmem:[%s3 + $0x60] sm:$0xff]
    %v64 = vld [vmem:[%s3 + $0x68] sm:$0xff]
    %v65 = vld [vmem:[%s3 + $0x70] sm:$0xff]
    %v66 = vld [vmem:[%s3 + $0x78] sm:$0xff]
    %v67 = vld [vmem:[%s3 + $0x80] sm:$0xff]
    %v68 = vld [vmem:[%s3 + $0x88] sm:$0xff]
    %v69 = vld [vmem:[%s3 + $0x90] sm:$0xff]
    %v70 = vld [vmem:[%s3 + $0x98] sm:$0xff]
    %v71 = vld [vmem:[%s3 + $0xa0] sm:$0xff]
    %v72 = vld [vmem:[%s3 + $0xa8] sm:$0xff]
    %v73 = vld [vmem:[%s3 + $0xb0] sm:$0xff]
    %v74 = vld [vmem:[%s3 + $0xb8] sm:$0xff]
    %v75 = vld [vmem:[%s3 + $0xc0] sm:$0xff]
    %v76 = vld [vmem:[%s3 + $0xc8] sm:$0xff]
    %v77 = vld [vmem:[%s3 + $0xd0] sm:$0xff]
    %v78 = vld [vmem:[%s3 + $0xd8] sm:$0xff]
    %v79 = vld [vmem:[%s3 + $0xe0] sm:$0xff]
    %v80 = vld [vmem:[%s3 + $0xe8] sm:$0xff]
    %v81 = vld [vmem:[%s3 + $0xf0] sm:$0xff]
    %v82 = vld [vmem:[%s3 + $0xf8] sm:$0xff]
    %v84 = vlaneseq
    %v85 = vshrl.u32 %v84, 7
    %v86 = vsub.s32 0, %v85
    %v87 = vrot.slane %v34, %v86
    %v88 = vlaneseq
    %v89 = vshrl.u32 %v88, 7
    %v90 = vsub.s32 1, %v89
    %v91 = vrot.slane %v34, %v90
    %v126 = vunpack.c.l.b16 %v51
    %v127 = vunpack.c.h.b16 %v51
    %v128 = vunpack.c.l.b16 %v52
    %v129 = vunpack.c.h.b16 %v52
    %v130 = vunpack.c.l.b16 %v53
    %v131 = vunpack.c.h.b16 %v53
    %v132 = vunpack.c.l.b16 %v54
    %v133 = vunpack.c.h.b16 %v54
    %v134 = vunpack.c.l.b16 %v55
    %v135 = vunpack.c.h.b16 %v55
    %v136 = vunpack.c.l.b16 %v56
    %v137 = vunpack.c.h.b16 %v56
    %v138 = vunpack.c.l.b16 %v57
    %v139 = vunpack.c.h.b16 %v57
    %v140 = vunpack.c.l.b16 %v58
    %v141 = vunpack.c.h.b16 %v58
    %v142 = vunpack.c.l.b16 %v59
    %v143 = vunpack.c.h.b16 %v59
    %v144 = vunpack.c.l.b16 %v60
    %v145 = vunpack.c.h.b16 %v60
    %v146 = vunpack.c.l.b16 %v61
    %v147 = vunpack.c.h.b16 %v61
    %v148 = vunpack.c.l.b16 %v62
    %v149 = vunpack.c.h.b16 %v62
    %v150 = vunpack.c.l.b16 %v63
    %v151 = vunpack.c.h.b16 %v63
    %v152 = vunpack.c.l.b16 %v64
    %v153 = vunpack.c.h.b16 %v64
    %v154 = vunpack.c.l.b16 %v65
    %v155 = vunpack.c.h.b16 %v65
    %v156 = vunpack.c.l.b16 %v66
    %v157 = vunpack.c.h.b16 %v66
    %v158 = vunpack.c.l.b16 %v67
    %v159 = vunpack.c.h.b16 %v67
    %v160 = vunpack.c.l.b16 %v68
    %v161 = vunpack.c.h.b16 %v68
    %v162 = vunpack.c.l.b16 %v69
    %v163 = vunpack.c.h.b16 %v69
    %v164 = vunpack.c.l.b16 %v70
    %v165 = vunpack.c.h.b16 %v70
    %v166 = vunpack.c.l.b16 %v71
    %v167 = vunpack.c.h.b16 %v71
    %v168 = vunpack.c.l.b16 %v72
    %v169 = vunpack.c.h.b16 %v72
    %v170 = vunpack.c.l.b16 %v73
    %v171 = vunpack.c.h.b16 %v73
    %v172 = vunpack.c.l.b16 %v74
    %v173 = vunpack.c.h.b16 %v74
    %v174 = vunpack.c.l.b16 %v75
    %v175 = vunpack.c.h.b16 %v75
    %v176 = vunpack.c.l.b16 %v76
    %v177 = vunpack.c.h.b16 %v76
    %v178 = vunpack.c.l.b16 %v77
    %v179 = vunpack.c.h.b16 %v77
    %v180 = vunpack.c.l.b16 %v78
    %v181 = vunpack.c.h.b16 %v78
    %v182 = vunpack.c.l.b16 %v79
    %v183 = vunpack.c.h.b16 %v79
    %v184 = vunpack.c.l.b16 %v80
    %v185 = vunpack.c.h.b16 %v80
    %v186 = vunpack.c.l.b16 %v81
    %v187 = vunpack.c.h.b16 %v81
    %v188 = vunpack.c.l.b16 %v82
    %v189 = vunpack.c.h.b16 %v82
    %v190 = vpack.c.b16 %v128, %v126
    %v191 = vpack.c.b16 %v129, %v127
    %v192 = vpack.c.b16 %v132, %v130
    %v193 = vpack.c.b16 %v133, %v131
    %v194 = vpack.c.b16 %v136, %v134
    %v195 = vpack.c.b16 %v137, %v135
    %v196 = vpack.c.b16 %v140, %v138
    %v197 = vpack.c.b16 %v141, %v139
    %v198 = vpack.c.b16 %v144, %v142
    %v199 = vpack.c.b16 %v145, %v143
    %v200 = vpack.c.b16 %v148, %v146
    %v201 = vpack.c.b16 %v149, %v147
    %v202 = vpack.c.b16 %v152, %v150
    %v203 = vpack.c.b16 %v153, %v151
    %v204 = vpack.c.b16 %v156, %v154
    %v205 = vpack.c.b16 %v157, %v155
    %v206 = vpack.c.b16 %v160, %v158
    %v207 = vpack.c.b16 %v161, %v159
    %v208 = vpack.c.b16 %v164, %v162
    %v209 = vpack.c.b16 %v165, %v163
    %v210 = vpack.c.b16 %v168, %v166
    %v211 = vpack.c.b16 %v169, %v167
    %v212 = vpack.c.b16 %v172, %v170
    %v213 = vpack.c.b16 %v173, %v171
    %v214 = vpack.c.b16 %v176, %v174
    %v215 = vpack.c.b16 %v177, %v175
    %v216 = vpack.c.b16 %v180, %v178
    %v217 = vpack.c.b16 %v181, %v179
    %v218 = vpack.c.b16 %v184, %v182
    %v219 = vpack.c.b16 %v185, %v183
    %v220 = vpack.c.b16 %v188, %v186
    %v221 = vpack.c.b16 %v189, %v187
    %254 = vmatprep.subr.bf16.mxu0 %v205
    %255 = vmatpush1.bf16.msra.mxu0 %v204
    %256 = vmatprep.subr.bf16.mxu0 %v203
    %257 = vmatpush1.bf16.msra.mxu0 %v202
    %258 = vmatprep.subr.bf16.mxu0 %v201
    %259 = vmatpush1.bf16.msra.mxu0 %v200
    %260 = vmatprep.subr.bf16.mxu0 %v199
    %261 = vmatpush1.bf16.msra.mxu0 %v198
    %262 = vmatprep.subr.bf16.mxu0 %v197
    %263 = vmatpush1.bf16.msra.mxu0 %v196
    %264 = vmatprep.subr.bf16.mxu0 %v195
    %265 = vmatpush1.bf16.msra.mxu0 %v194
    %266 = vmatprep.subr.bf16.mxu0 %v193
    %267 = vmatpush1.bf16.msra.mxu0 %v192
    %268 = vmatprep.subr.bf16.mxu0 %v191
    %269 = vmatpush1.bf16.msra.mxu0 %v190
    %270 = vmatprep.subr.bf16.mxu0 %v221
    %271 = vmatpush2.bf16.msra.mxu0 %v220
    %272 = vmatprep.subr.bf16.mxu0 %v219
    %273 = vmatpush2.bf16.msra.mxu0 %v218
    %274 = vmatprep.subr.bf16.mxu0 %v217
    %275 = vmatpush2.bf16.msra.mxu0 %v216
    %276 = vmatprep.subr.bf16.mxu0 %v215
    %277 = vmatpush2.bf16.msra.mxu0 %v214
    %278 = vmatprep.subr.bf16.mxu0 %v213
    %279 = vmatpush2.bf16.msra.mxu0 %v212
    %280 = vmatprep.subr.bf16.mxu0 %v211
    %281 = vmatpush2.bf16.msra.mxu0 %v210
    %282 = vmatprep.subr.bf16.mxu0 %v209
    %283 = vmatpush2.bf16.msra.mxu0 %v208
    %284 = vmatprep.subr.bf16.mxu0 %v207
    %285 = vmatpush2.bf16.msra.mxu0 %v206
    %286 = vmatprep.mubr.bf16.mxu0 %v50
    %287 = vmatmul.mubr.bf16.gmra.mxu0 %v49
    %v288 = vpop.f32.mrf.mxu0
    %v289 = vadd.f32 %v87, %v288
    %v290 = vpop.f32.mrf.mxu0
    %v291 = vadd.f32 %v91, %v290
    %v292 = vpop.f32.mrf.mxu0
    %v293 = vadd.f32 %v87, %v292
    %v294 = vpop.f32.mrf.mxu0
    %v295 = vadd.f32 %v91, %v294
    %296 = vdwg.mxu0
    %v297 = vld [vmem:[%s1] sm:$0xff]
    %v298 = vld [vmem:[%s1 + $0x8] sm:$0xff]
    %v299 = vld [vmem:[%s1 + $0x10] sm:$0xff]
    %v300 = vld [vmem:[%s1 + $0x18] sm:$0xff]
    %v301 = vld [vmem:[%s1 + $0x20] sm:$0xff]
    %v302 = vld [vmem:[%s1 + $0x28] sm:$0xff]
    %v303 = vld [vmem:[%s1 + $0x30] sm:$0xff]
    %v304 = vld [vmem:[%s1 + $0x38] sm:$0xff]
    %v305 = vld [vmem:[%s1 + $0x40] sm:$0xff]
    %v306 = vld [vmem:[%s1 + $0x48] sm:$0xff]
    %v307 = vld [vmem:[%s1 + $0x50] sm:$0xff]
    %v308 = vld [vmem:[%s1 + $0x58] sm:$0xff]
    %v309 = vld [vmem:[%s1 + $0x60] sm:$0xff]
    %v310 = vld [vmem:[%s1 + $0x68] sm:$0xff]
    %v311 = vld [vmem:[%s1 + $0x70] sm:$0xff]
    %v312 = vld [vmem:[%s1 + $0x78] sm:$0xff]
    %v313 = vld [vmem:[%s1 + $0x80] sm:$0xff]
    %v314 = vld [vmem:[%s1 + $0x88] sm:$0xff]
    %v315 = vld [vmem:[%s1 + $0x90] sm:$0xff]
    %v316 = vld [vmem:[%s1 + $0x98] sm:$0xff]
    %v317 = vld [vmem:[%s1 + $0xa0] sm:$0xff]
    %v318 = vld [vmem:[%s1 + $0xa8] sm:$0xff]
    %v319 = vld [vmem:[%s1 + $0xb0] sm:$0xff]
    %v320 = vld [vmem:[%s1 + $0xb8] sm:$0xff]
    %v321 = vld [vmem:[%s1 + $0xc0] sm:$0xff]
    %v322 = vld [vmem:[%s1 + $0xc8] sm:$0xff]
    %v323 = vld [vmem:[%s1 + $0xd0] sm:$0xff]
    %v324 = vld [vmem:[%s1 + $0xd8] sm:$0xff]
    %v325 = vld [vmem:[%s1 + $0xe0] sm:$0xff]
    %v326 = vld [vmem:[%s1 + $0xe8] sm:$0xff]
    %v327 = vld [vmem:[%s1 + $0xf0] sm:$0xff]
    %v328 = vld [vmem:[%s1 + $0xf8] sm:$0xff]
    %v329 = vld [vmem:[%s1 + $0x100] sm:$0xff]
    %v330 = vld [vmem:[%s1 + $0x108] sm:$0xff]
    %v331 = vld [vmem:[%s1 + $0x110] sm:$0xff]
    %v332 = vld [vmem:[%s1 + $0x118] sm:$0xff]
    %v333 = vld [vmem:[%s1 + $0x120] sm:$0xff]
    %v334 = vld [vmem:[%s1 + $0x128] sm:$0xff]
    %v335 = vld [vmem:[%s1 + $0x130] sm:$0xff]
    %v336 = vld [vmem:[%s1 + $0x138] sm:$0xff]
    %v337 = vld [vmem:[%s1 + $0x140] sm:$0xff]
    %v338 = vld [vmem:[%s1 + $0x148] sm:$0xff]
    %v339 = vld [vmem:[%s1 + $0x150] sm:$0xff]
    %v340 = vld [vmem:[%s1 + $0x158] sm:$0xff]
    %v341 = vld [vmem:[%s1 + $0x160] sm:$0xff]
    %v342 = vld [vmem:[%s1 + $0x168] sm:$0xff]
    %v343 = vld [vmem:[%s1 + $0x170] sm:$0xff]
    %v344 = vld [vmem:[%s1 + $0x178] sm:$0xff]
    %v345 = vld [vmem:[%s1 + $0x180] sm:$0xff]
    %v346 = vld [vmem:[%s1 + $0x188] sm:$0xff]
    %v347 = vld [vmem:[%s1 + $0x190] sm:$0xff]
    %v348 = vld [vmem:[%s1 + $0x198] sm:$0xff]
    %v349 = vld [vmem:[%s1 + $0x1a0] sm:$0xff]
    %v350 = vld [vmem:[%s1 + $0x1a8] sm:$0xff]
    %v351 = vld [vmem:[%s1 + $0x1b0] sm:$0xff]
    %v352 = vld [vmem:[%s1 + $0x1b8] sm:$0xff]
    %v353 = vld [vmem:[%s1 + $0x1c0] sm:$0xff]
    %v354 = vld [vmem:[%s1 + $0x1c8] sm:$0xff]
    %v355 = vld [vmem:[%s1 + $0x1d0] sm:$0xff]
    %v356 = vld [vmem:[%s1 + $0x1d8] sm:$0xff]
    %v357 = vld [vmem:[%s1 + $0x1e0] sm:$0xff]
    %v358 = vld [vmem:[%s1 + $0x1e8] sm:$0xff]
    %v359 = vld [vmem:[%s1 + $0x1f0] sm:$0xff]
    %v360 = vld [vmem:[%s1 + $0x1f8] sm:$0xff]
    %v361 = vpack.c.bf16 %v299, %v297
    %v362 = vpack.c.bf16 %v300, %v298
    %v363 = vpack.c.bf16 %v303, %v301
    %v364 = vpack.c.bf16 %v304, %v302
    %v365 = vpack.c.bf16 %v307, %v305
    %v366 = vpack.c.bf16 %v308, %v306
    %v367 = vpack.c.bf16 %v311, %v309
    %v368 = vpack.c.bf16 %v312, %v310
    %v369 = vpack.c.bf16 %v315, %v313
    %v370 = vpack.c.bf16 %v316, %v314
    %v371 = vpack.c.bf16 %v319, %v317
    %v372 = vpack.c.bf16 %v320, %v318
    %v373 = vpack.c.bf16 %v323, %v321
    %v374 = vpack.c.bf16 %v324, %v322
    %v375 = vpack.c.bf16 %v327, %v325
    %v376 = vpack.c.bf16 %v328, %v326
    %v377 = vpack.c.bf16 %v331, %v329
    %v378 = vpack.c.bf16 %v332, %v330
    %v379 = vpack.c.bf16 %v335, %v333
    %v380 = vpack.c.bf16 %v336, %v334
    %v381 = vpack.c.bf16 %v339, %v337
    %v382 = vpack.c.bf16 %v340, %v338
    %v383 = vpack.c.bf16 %v343, %v341
    %v384 = vpack.c.bf16 %v344, %v342
    %v385 = vpack.c.bf16 %v347, %v345
    %v386 = vpack.c.bf16 %v348, %v346
    %v387 = vpack.c.bf16 %v351, %v349
    %v388 = vpack.c.bf16 %v352, %v350
    %v389 = vpack.c.bf16 %v355, %v353
    %v390 = vpack.c.bf16 %v356, %v354
    %v391 = vpack.c.bf16 %v359, %v357
    %v392 = vpack.c.bf16 %v360, %v358
    %v393 = vld [vmem:[%s4] sm:$0xff]
    %v394 = vld [vmem:[%s4 + $0x8] sm:$0xff]
    %v395 = vld [vmem:[%s4 + $0x10] sm:$0xff]
    %v396 = vld [vmem:[%s4 + $0x18] sm:$0xff]
    %v397 = vld [vmem:[%s4 + $0x20] sm:$0xff]
    %v398 = vld [vmem:[%s4 + $0x28] sm:$0xff]
    %v399 = vld [vmem:[%s4 + $0x30] sm:$0xff]
    %v400 = vld [vmem:[%s4 + $0x38] sm:$0xff]
    %v401 = vld [vmem:[%s4 + $0x40] sm:$0xff]
    %v402 = vld [vmem:[%s4 + $0x48] sm:$0xff]
    %v403 = vld [vmem:[%s4 + $0x50] sm:$0xff]
    %v404 = vld [vmem:[%s4 + $0x58] sm:$0xff]
    %v405 = vld [vmem:[%s4 + $0x60] sm:$0xff]
    %v406 = vld [vmem:[%s4 + $0x68] sm:$0xff]
    %v407 = vld [vmem:[%s4 + $0x70] sm:$0xff]
    %v408 = vld [vmem:[%s4 + $0x78] sm:$0xff]
    %v409 = vld [vmem:[%s4 + $0x80] sm:$0xff]
    %v410 = vld [vmem:[%s4 + $0x88] sm:$0xff]
    %v411 = vld [vmem:[%s4 + $0x90] sm:$0xff]
    %v412 = vld [vmem:[%s4 + $0x98] sm:$0xff]
    %v413 = vld [vmem:[%s4 + $0xa0] sm:$0xff]
    %v414 = vld [vmem:[%s4 + $0xa8] sm:$0xff]
    %v415 = vld [vmem:[%s4 + $0xb0] sm:$0xff]
    %v416 = vld [vmem:[%s4 + $0xb8] sm:$0xff]
    %v417 = vld [vmem:[%s4 + $0xc0] sm:$0xff]
    %v418 = vld [vmem:[%s4 + $0xc8] sm:$0xff]
    %v419 = vld [vmem:[%s4 + $0xd0] sm:$0xff]
    %v420 = vld [vmem:[%s4 + $0xd8] sm:$0xff]
    %v421 = vld [vmem:[%s4 + $0xe0] sm:$0xff]
    %v422 = vld [vmem:[%s4 + $0xe8] sm:$0xff]
    %v423 = vld [vmem:[%s4 + $0xf0] sm:$0xff]
    %v424 = vld [vmem:[%s4 + $0xf8] sm:$0xff]
    %v426 = vlaneseq
    %v427 = vshrl.u32 %v426, 7
    %v428 = vsub.s32 0, %v427
    %v429 = vrot.slane %v36, %v428
    %v430 = vlaneseq
    %v431 = vshrl.u32 %v430, 7
    %v432 = vsub.s32 1, %v431
    %v433 = vrot.slane %v36, %v432
    %v468 = vunpack.c.l.b16 %v393
    %v469 = vunpack.c.h.b16 %v393
    %v470 = vunpack.c.l.b16 %v394
    %v471 = vunpack.c.h.b16 %v394
    %v472 = vunpack.c.l.b16 %v395
    %v473 = vunpack.c.h.b16 %v395
    %v474 = vunpack.c.l.b16 %v396
    %v475 = vunpack.c.h.b16 %v396
    %v476 = vunpack.c.l.b16 %v397
    %v477 = vunpack.c.h.b16 %v397
    %v478 = vunpack.c.l.b16 %v398
    %v479 = vunpack.c.h.b16 %v398
    %v480 = vunpack.c.l.b16 %v399
    %v481 = vunpack.c.h.b16 %v399
    %v482 = vunpack.c.l.b16 %v400
    %v483 = vunpack.c.h.b16 %v400
    %v484 = vunpack.c.l.b16 %v401
    %v485 = vunpack.c.h.b16 %v401
    %v486 = vunpack.c.l.b16 %v402
    %v487 = vunpack.c.h.b16 %v402
    %v488 = vunpack.c.l.b16 %v403
    %v489 = vunpack.c.h.b16 %v403
    %v490 = vunpack.c.l.b16 %v404
    %v491 = vunpack.c.h.b16 %v404
    %v492 = vunpack.c.l.b16 %v405
    %v493 = vunpack.c.h.b16 %v405
    %v494 = vunpack.c.l.b16 %v406
    %v495 = vunpack.c.h.b16 %v406
    %v496 = vunpack.c.l.b16 %v407
    %v497 = vunpack.c.h.b16 %v407
    %v498 = vunpack.c.l.b16 %v408
    %v499 = vunpack.c.h.b16 %v408
    %v500 = vunpack.c.l.b16 %v409
    %v501 = vunpack.c.h.b16 %v409
    %v502 = vunpack.c.l.b16 %v410
    %v503 = vunpack.c.h.b16 %v410
    %v504 = vunpack.c.l.b16 %v411
    %v505 = vunpack.c.h.b16 %v411
    %v506 = vunpack.c.l.b16 %v412
    %v507 = vunpack.c.h.b16 %v412
    %v508 = vunpack.c.l.b16 %v413
    %v509 = vunpack.c.h.b16 %v413
    %v510 = vunpack.c.l.b16 %v414
    %v511 = vunpack.c.h.b16 %v414
    %v512 = vunpack.c.l.b16 %v415
    %v513 = vunpack.c.h.b16 %v415
    %v514 = vunpack.c.l.b16 %v416
    %v515 = vunpack.c.h.b16 %v416
    %v516 = vunpack.c.l.b16 %v417
    %v517 = vunpack.c.h.b16 %v417
    %v518 = vunpack.c.l.b16 %v418
    %v519 = vunpack.c.h.b16 %v418
    %v520 = vunpack.c.l.b16 %v419
    %v521 = vunpack.c.h.b16 %v419
    %v522 = vunpack.c.l.b16 %v420
    %v523 = vunpack.c.h.b16 %v420
    %v524 = vunpack.c.l.b16 %v421
    %v525 = vunpack.c.h.b16 %v421
    %v526 = vunpack.c.l.b16 %v422
    %v527 = vunpack.c.h.b16 %v422
    %v528 = vunpack.c.l.b16 %v423
    %v529 = vunpack.c.h.b16 %v423
    %v530 = vunpack.c.l.b16 %v424
    %v531 = vunpack.c.h.b16 %v424
    %v532 = vpack.c.b16 %v470, %v468
    %v533 = vpack.c.b16 %v471, %v469
    %v534 = vpack.c.b16 %v474, %v472
    %v535 = vpack.c.b16 %v475, %v473
    %v536 = vpack.c.b16 %v478, %v476
    %v537 = vpack.c.b16 %v479, %v477
    %v538 = vpack.c.b16 %v482, %v480
    %v539 = vpack.c.b16 %v483, %v481
    %v540 = vpack.c.b16 %v486, %v484
    %v541 = vpack.c.b16 %v487, %v485
    %v542 = vpack.c.b16 %v490, %v488
    %v543 = vpack.c.b16 %v491, %v489
    %v544 = vpack.c.b16 %v494, %v492
    %v545 = vpack.c.b16 %v495, %v493
    %v546 = vpack.c.b16 %v498, %v496
    %v547 = vpack.c.b16 %v499, %v497
    %v548 = vpack.c.b16 %v502, %v500
    %v549 = vpack.c.b16 %v503, %v501
    %v550 = vpack.c.b16 %v506, %v504
    %v551 = vpack.c.b16 %v507, %v505
    %v552 = vpack.c.b16 %v510, %v508
    %v553 = vpack.c.b16 %v511, %v509
    %v554 = vpack.c.b16 %v514, %v512
    %v555 = vpack.c.b16 %v515, %v513
    %v556 = vpack.c.b16 %v518, %v516
    %v557 = vpack.c.b16 %v519, %v517
    %v558 = vpack.c.b16 %v522, %v520
    %v559 = vpack.c.b16 %v523, %v521
    %v560 = vpack.c.b16 %v526, %v524
    %v561 = vpack.c.b16 %v527, %v525
    %v562 = vpack.c.b16 %v530, %v528
    %v563 = vpack.c.b16 %v531, %v529
    %596 = vmatprep.subr.bf16.mxu0 %v547
    %597 = vmatpush1.bf16.msra.mxu0 %v546
    %598 = vmatprep.subr.bf16.mxu0 %v545
    %599 = vmatpush1.bf16.msra.mxu0 %v544
    %600 = vmatprep.subr.bf16.mxu0 %v543
    %601 = vmatpush1.bf16.msra.mxu0 %v542
    %602 = vmatprep.subr.bf16.mxu0 %v541
    %603 = vmatpush1.bf16.msra.mxu0 %v540
    %604 = vmatprep.subr.bf16.mxu0 %v539
    %605 = vmatpush1.bf16.msra.mxu0 %v538
    %606 = vmatprep.subr.bf16.mxu0 %v537
    %607 = vmatpush1.bf16.msra.mxu0 %v536
    %608 = vmatprep.subr.bf16.mxu0 %v535
    %609 = vmatpush1.bf16.msra.mxu0 %v534
    %610 = vmatprep.subr.bf16.mxu0 %v533
    %611 = vmatpush1.bf16.msra.mxu0 %v532
    %612 = vmatprep.subr.bf16.mxu0 %v563
    %613 = vmatpush2.bf16.msra.mxu0 %v562
    %614 = vmatprep.subr.bf16.mxu0 %v561
    %615 = vmatpush2.bf16.msra.mxu0 %v560
    %616 = vmatprep.subr.bf16.mxu0 %v559
    %617 = vmatpush2.bf16.msra.mxu0 %v558
    %618 = vmatprep.subr.bf16.mxu0 %v557
    %619 = vmatpush2.bf16.msra.mxu0 %v556
    %620 = vmatprep.subr.bf16.mxu0 %v555
    %621 = vmatpush2.bf16.msra.mxu0 %v554
    %622 = vmatprep.subr.bf16.mxu0 %v553
    %623 = vmatpush2.bf16.msra.mxu0 %v552
    %624 = vmatprep.subr.bf16.mxu0 %v551
    %625 = vmatpush2.bf16.msra.mxu0 %v550
    %626 = vmatprep.subr.bf16.mxu0 %v549
    %627 = vmatpush2.bf16.msra.mxu0 %v548
    %628 = vmatprep.mubr.bf16.mxu0 %v362
    %629 = vmatmul.mubr.bf16.gmra.mxu0 %v361
    %v630 = vpop.f32.mrf.mxu0
    %v631 = vadd.f32 %v429, %v630
    %v632 = vpop.f32.mrf.mxu0
    %v633 = vadd.f32 %v433, %v632
    %v634 = vpop.f32.mrf.mxu0
    %v635 = vadd.f32 %v429, %v634
    %v636 = vpop.f32.mrf.mxu0
    %v637 = vadd.f32 %v433, %v636
    %638 = vmatprep.mubr.bf16.mxu0 %v364
    %639 = vmatmul.mubr.bf16.gmra.mxu0 %v363
    %v640 = vpop.f32.mrf.mxu0
    %v641 = vadd.f32 %v429, %v640
    %v642 = vpop.f32.mrf.mxu0
    %v643 = vadd.f32 %v433, %v642
    %v644 = vpop.f32.mrf.mxu0
    %v645 = vadd.f32 %v429, %v644
    %v646 = vpop.f32.mrf.mxu0
    %v647 = vadd.f32 %v433, %v646
    %648 = vmatprep.mubr.bf16.mxu0 %v366
    %649 = vmatmul.mubr.bf16.gmra.mxu0 %v365
    %v650 = vpop.f32.mrf.mxu0
    %v651 = vadd.f32 %v429, %v650
    %v652 = vpop.f32.mrf.mxu0
    %v653 = vadd.f32 %v433, %v652
    %v654 = vpop.f32.mrf.mxu0
    %v655 = vadd.f32 %v429, %v654
    %v656 = vpop.f32.mrf.mxu0
    %v657 = vadd.f32 %v433, %v656
    %658 = vmatprep.mubr.bf16.mxu0 %v368
    %659 = vmatmul.mubr.bf16.gmra.mxu0 %v367
    %v660 = vpop.f32.mrf.mxu0
    %v661 = vadd.f32 %v429, %v660
    %v662 = vpop.f32.mrf.mxu0
    %v663 = vadd.f32 %v433, %v662
    %v664 = vpop.f32.mrf.mxu0
    %v665 = vadd.f32 %v429, %v664
    %v666 = vpop.f32.mrf.mxu0
    %v667 = vadd.f32 %v433, %v666
    %668 = vmatprep.mubr.bf16.mxu0 %v370
    %669 = vmatmul.mubr.bf16.gmra.mxu0 %v369
    %v670 = vpop.f32.mrf.mxu0
    %v671 = vadd.f32 %v429, %v670
    %v672 = vpop.f32.mrf.mxu0
    %v673 = vadd.f32 %v433, %v672
    %v674 = vpop.f32.mrf.mxu0
    %v675 = vadd.f32 %v429, %v674
    %v676 = vpop.f32.mrf.mxu0
    %v677 = vadd.f32 %v433, %v676
    %678 = vmatprep.mubr.bf16.mxu0 %v372
    %679 = vmatmul.mubr.bf16.gmra.mxu0 %v371
    %v680 = vpop.f32.mrf.mxu0
    %v681 = vadd.f32 %v429, %v680
    %v682 = vpop.f32.mrf.mxu0
    %v683 = vadd.f32 %v433, %v682
    %v684 = vpop.f32.mrf.mxu0
    %v685 = vadd.f32 %v429, %v684
    %v686 = vpop.f32.mrf.mxu0
    %v687 = vadd.f32 %v433, %v686
    %688 = vmatprep.mubr.bf16.mxu0 %v374
    %689 = vmatmul.mubr.bf16.gmra.mxu0 %v373
    %v690 = vpop.f32.mrf.mxu0
    %v691 = vadd.f32 %v429, %v690
    %v692 = vpop.f32.mrf.mxu0
    %v693 = vadd.f32 %v433, %v692
    %v694 = vpop.f32.mrf.mxu0
    %v695 = vadd.f32 %v429, %v694
    %v696 = vpop.f32.mrf.mxu0
    %v697 = vadd.f32 %v433, %v696
    %698 = vmatprep.mubr.bf16.mxu0 %v376
    %699 = vmatmul.mubr.bf16.gmra.mxu0 %v375
    %v700 = vpop.f32.mrf.mxu0
    %v701 = vadd.f32 %v429, %v700
    %v702 = vpop.f32.mrf.mxu0
    %v703 = vadd.f32 %v433, %v702
    %v704 = vpop.f32.mrf.mxu0
    %v705 = vadd.f32 %v429, %v704
    %v706 = vpop.f32.mrf.mxu0
    %v707 = vadd.f32 %v433, %v706
    %708 = vmatprep.mubr.bf16.mxu0 %v378
    %709 = vmatmul.mubr.bf16.gmra.mxu0 %v377
    %v710 = vpop.f32.mrf.mxu0
    %v711 = vadd.f32 %v429, %v710
    %v712 = vpop.f32.mrf.mxu0
    %v713 = vadd.f32 %v433, %v712
    %v714 = vpop.f32.mrf.mxu0
    %v715 = vadd.f32 %v429, %v714
    %v716 = vpop.f32.mrf.mxu0
    %v717 = vadd.f32 %v433, %v716
    %718 = vmatprep.mubr.bf16.mxu0 %v380
    %719 = vmatmul.mubr.bf16.gmra.mxu0 %v379
    %v720 = vpop.f32.mrf.mxu0
    %v721 = vadd.f32 %v429, %v720
    %v722 = vpop.f32.mrf.mxu0
    %v723 = vadd.f32 %v433, %v722
    %v724 = vpop.f32.mrf.mxu0
    %v725 = vadd.f32 %v429, %v724
    %v726 = vpop.f32.mrf.mxu0
    %v727 = vadd.f32 %v433, %v726
    %728 = vmatprep.mubr.bf16.mxu0 %v382
    %729 = vmatmul.mubr.bf16.gmra.mxu0 %v381
    %v730 = vpop.f32.mrf.mxu0
    %v731 = vadd.f32 %v429, %v730
    %v732 = vpop.f32.mrf.mxu0
    %v733 = vadd.f32 %v433, %v732
    %v734 = vpop.f32.mrf.mxu0
    %v735 = vadd.f32 %v429, %v734
    %v736 = vpop.f32.mrf.mxu0
    %v737 = vadd.f32 %v433, %v736
    %738 = vmatprep.mubr.bf16.mxu0 %v384
    %739 = vmatmul.mubr.bf16.gmra.mxu0 %v383
    %v740 = vpop.f32.mrf.mxu0
    %v741 = vadd.f32 %v429, %v740
    %v742 = vpop.f32.mrf.mxu0
    %v743 = vadd.f32 %v433, %v742
    %v744 = vpop.f32.mrf.mxu0
    %v745 = vadd.f32 %v429, %v744
    %v746 = vpop.f32.mrf.mxu0
    %v747 = vadd.f32 %v433, %v746
    %748 = vmatprep.mubr.bf16.mxu0 %v386
    %749 = vmatmul.mubr.bf16.gmra.mxu0 %v385
    %v750 = vpop.f32.mrf.mxu0
    %v751 = vadd.f32 %v429, %v750
    %v752 = vpop.f32.mrf.mxu0
    %v753 = vadd.f32 %v433, %v752
    %v754 = vpop.f32.mrf.mxu0
    %v755 = vadd.f32 %v429, %v754
    %v756 = vpop.f32.mrf.mxu0
    %v757 = vadd.f32 %v433, %v756
    %758 = vmatprep.mubr.bf16.mxu0 %v388
    %759 = vmatmul.mubr.bf16.gmra.mxu0 %v387
    %v760 = vpop.f32.mrf.mxu0
    %v761 = vadd.f32 %v429, %v760
    %v762 = vpop.f32.mrf.mxu0
    %v763 = vadd.f32 %v433, %v762
    %v764 = vpop.f32.mrf.mxu0
    %v765 = vadd.f32 %v429, %v764
    %v766 = vpop.f32.mrf.mxu0
    %v767 = vadd.f32 %v433, %v766
    %768 = vmatprep.mubr.bf16.mxu0 %v390
    %769 = vmatmul.mubr.bf16.gmra.mxu0 %v389
    %v770 = vpop.f32.mrf.mxu0
    %v771 = vadd.f32 %v429, %v770
    %v772 = vpop.f32.mrf.mxu0
    %v773 = vadd.f32 %v433, %v772
    %v774 = vpop.f32.mrf.mxu0
    %v775 = vadd.f32 %v429, %v774
    %v776 = vpop.f32.mrf.mxu0
    %v777 = vadd.f32 %v433, %v776
    %778 = vmatprep.mubr.bf16.mxu0 %v392
    %779 = vmatmul.mubr.bf16.gmra.mxu0 %v391
    %v780 = vpop.f32.mrf.mxu0
    %v781 = vadd.f32 %v429, %v780
    %v782 = vpop.f32.mrf.mxu0
    %v783 = vadd.f32 %v433, %v782
    %v784 = vpop.f32.mrf.mxu0
    %v785 = vadd.f32 %v429, %v784
    %v786 = vpop.f32.mrf.mxu0
    %v787 = vadd.f32 %v433, %v786
    %788 = vdwg.mxu0
    %v789 = vld [vmem:[%s2] sm:$0xff]
    %v790 = vld [vmem:[%s2 + $0x8] sm:$0xff]
    %v791 = vld [vmem:[%s2 + $0x10] sm:$0xff]
    %v792 = vld [vmem:[%s2 + $0x18] sm:$0xff]
    %v793 = vld [vmem:[%s2 + $0x20] sm:$0xff]
    %v794 = vld [vmem:[%s2 + $0x28] sm:$0xff]
    %v795 = vld [vmem:[%s2 + $0x30] sm:$0xff]
    %v796 = vld [vmem:[%s2 + $0x38] sm:$0xff]
    %v797 = vld [vmem:[%s2 + $0x40] sm:$0xff]
    %v798 = vld [vmem:[%s2 + $0x48] sm:$0xff]
    %v799 = vld [vmem:[%s2 + $0x50] sm:$0xff]
    %v800 = vld [vmem:[%s2 + $0x58] sm:$0xff]
    %v801 = vld [vmem:[%s2 + $0x60] sm:$0xff]
    %v802 = vld [vmem:[%s2 + $0x68] sm:$0xff]
    %v803 = vld [vmem:[%s2 + $0x70] sm:$0xff]
    %v804 = vld [vmem:[%s2 + $0x78] sm:$0xff]
    %v805 = vld [vmem:[%s2 + $0x80] sm:$0xff]
    %v806 = vld [vmem:[%s2 + $0x88] sm:$0xff]
    %v807 = vld [vmem:[%s2 + $0x90] sm:$0xff]
    %v808 = vld [vmem:[%s2 + $0x98] sm:$0xff]
    %v809 = vld [vmem:[%s2 + $0xa0] sm:$0xff]
    %v810 = vld [vmem:[%s2 + $0xa8] sm:$0xff]
    %v811 = vld [vmem:[%s2 + $0xb0] sm:$0xff]
    %v812 = vld [vmem:[%s2 + $0xb8] sm:$0xff]
    %v813 = vld [vmem:[%s2 + $0xc0] sm:$0xff]
    %v814 = vld [vmem:[%s2 + $0xc8] sm:$0xff]
    %v815 = vld [vmem:[%s2 + $0xd0] sm:$0xff]
    %v816 = vld [vmem:[%s2 + $0xd8] sm:$0xff]
    %v817 = vld [vmem:[%s2 + $0xe0] sm:$0xff]
    %v818 = vld [vmem:[%s2 + $0xe8] sm:$0xff]
    %v819 = vld [vmem:[%s2 + $0xf0] sm:$0xff]
    %v820 = vld [vmem:[%s2 + $0xf8] sm:$0xff]
    %v821 = vld [vmem:[%s2 + $0x100] sm:$0xff]
    %v822 = vld [vmem:[%s2 + $0x108] sm:$0xff]
    %v823 = vld [vmem:[%s2 + $0x110] sm:$0xff]
    %v824 = vld [vmem:[%s2 + $0x118] sm:$0xff]
    %v825 = vld [vmem:[%s2 + $0x120] sm:$0xff]
    %v826 = vld [vmem:[%s2 + $0x128] sm:$0xff]
    %v827 = vld [vmem:[%s2 + $0x130] sm:$0xff]
    %v828 = vld [vmem:[%s2 + $0x138] sm:$0xff]
    %v829 = vld [vmem:[%s2 + $0x140] sm:$0xff]
    %v830 = vld [vmem:[%s2 + $0x148] sm:$0xff]
    %v831 = vld [vmem:[%s2 + $0x150] sm:$0xff]
    %v832 = vld [vmem:[%s2 + $0x158] sm:$0xff]
    %v833 = vld [vmem:[%s2 + $0x160] sm:$0xff]
    %v834 = vld [vmem:[%s2 + $0x168] sm:$0xff]
    %v835 = vld [vmem:[%s2 + $0x170] sm:$0xff]
    %v836 = vld [vmem:[%s2 + $0x178] sm:$0xff]
    %v837 = vld [vmem:[%s2 + $0x180] sm:$0xff]
    %v838 = vld [vmem:[%s2 + $0x188] sm:$0xff]
    %v839 = vld [vmem:[%s2 + $0x190] sm:$0xff]
    %v840 = vld [vmem:[%s2 + $0x198] sm:$0xff]
    %v841 = vld [vmem:[%s2 + $0x1a0] sm:$0xff]
    %v842 = vld [vmem:[%s2 + $0x1a8] sm:$0xff]
    %v843 = vld [vmem:[%s2 + $0x1b0] sm:$0xff]
    %v844 = vld [vmem:[%s2 + $0x1b8] sm:$0xff]
    %v845 = vld [vmem:[%s2 + $0x1c0] sm:$0xff]
    %v846 = vld [vmem:[%s2 + $0x1c8] sm:$0xff]
    %v847 = vld [vmem:[%s2 + $0x1d0] sm:$0xff]
    %v848 = vld [vmem:[%s2 + $0x1d8] sm:$0xff]
    %v849 = vld [vmem:[%s2 + $0x1e0] sm:$0xff]
    %v850 = vld [vmem:[%s2 + $0x1e8] sm:$0xff]
    %v851 = vld [vmem:[%s2 + $0x1f0] sm:$0xff]
    %v852 = vld [vmem:[%s2 + $0x1f8] sm:$0xff]
    %v853 = vpack.c.bf16 %v791, %v789
    %v854 = vpack.c.bf16 %v792, %v790
    %v855 = vpack.c.bf16 %v795, %v793
    %v856 = vpack.c.bf16 %v796, %v794
    %v857 = vpack.c.bf16 %v799, %v797
    %v858 = vpack.c.bf16 %v800, %v798
    %v859 = vpack.c.bf16 %v803, %v801
    %v860 = vpack.c.bf16 %v804, %v802
    %v861 = vpack.c.bf16 %v807, %v805
    %v862 = vpack.c.bf16 %v808, %v806
    %v863 = vpack.c.bf16 %v811, %v809
    %v864 = vpack.c.bf16 %v812, %v810
    %v865 = vpack.c.bf16 %v815, %v813
    %v866 = vpack.c.bf16 %v816, %v814
    %v867 = vpack.c.bf16 %v819, %v817
    %v868 = vpack.c.bf16 %v820, %v818
    %v869 = vpack.c.bf16 %v823, %v821
    %v870 = vpack.c.bf16 %v824, %v822
    %v871 = vpack.c.bf16 %v827, %v825
    %v872 = vpack.c.bf16 %v828, %v826
    %v873 = vpack.c.bf16 %v831, %v829
    %v874 = vpack.c.bf16 %v832, %v830
    %v875 = vpack.c.bf16 %v835, %v833
    %v876 = vpack.c.bf16 %v836, %v834
    %v877 = vpack.c.bf16 %v839, %v837
    %v878 = vpack.c.bf16 %v840, %v838
    %v879 = vpack.c.bf16 %v843, %v841
    %v880 = vpack.c.bf16 %v844, %v842
    %v881 = vpack.c.bf16 %v847, %v845
    %v882 = vpack.c.bf16 %v848, %v846
    %v883 = vpack.c.bf16 %v851, %v849
    %v884 = vpack.c.bf16 %v852, %v850
    %v885 = vld [vmem:[%s5] sm:$0xff]
    %v886 = vld [vmem:[%s5 + $0x8] sm:$0xff]
    %v887 = vld [vmem:[%s5 + $0x10] sm:$0xff]
    %v888 = vld [vmem:[%s5 + $0x18] sm:$0xff]
    %v889 = vld [vmem:[%s5 + $0x20] sm:$0xff]
    %v890 = vld [vmem:[%s5 + $0x28] sm:$0xff]
    %v891 = vld [vmem:[%s5 + $0x30] sm:$0xff]
    %v892 = vld [vmem:[%s5 + $0x38] sm:$0xff]
    %v893 = vld [vmem:[%s5 + $0x40] sm:$0xff]
    %v894 = vld [vmem:[%s5 + $0x48] sm:$0xff]
    %v895 = vld [vmem:[%s5 + $0x50] sm:$0xff]
    %v896 = vld [vmem:[%s5 + $0x58] sm:$0xff]
    %v897 = vld [vmem:[%s5 + $0x60] sm:$0xff]
    %v898 = vld [vmem:[%s5 + $0x68] sm:$0xff]
    %v899 = vld [vmem:[%s5 + $0x70] sm:$0xff]
    %v900 = vld [vmem:[%s5 + $0x78] sm:$0xff]
    %v901 = vld [vmem:[%s5 + $0x80] sm:$0xff]
    %v902 = vld [vmem:[%s5 + $0x88] sm:$0xff]
    %v903 = vld [vmem:[%s5 + $0x90] sm:$0xff]
    %v904 = vld [vmem:[%s5 + $0x98] sm:$0xff]
    %v905 = vld [vmem:[%s5 + $0xa0] sm:$0xff]
    %v906 = vld [vmem:[%s5 + $0xa8] sm:$0xff]
    %v907 = vld [vmem:[%s5 + $0xb0] sm:$0xff]
    %v908 = vld [vmem:[%s5 + $0xb8] sm:$0xff]
    %v909 = vld [vmem:[%s5 + $0xc0] sm:$0xff]
    %v910 = vld [vmem:[%s5 + $0xc8] sm:$0xff]
    %v911 = vld [vmem:[%s5 + $0xd0] sm:$0xff]
    %v912 = vld [vmem:[%s5 + $0xd8] sm:$0xff]
    %v913 = vld [vmem:[%s5 + $0xe0] sm:$0xff]
    %v914 = vld [vmem:[%s5 + $0xe8] sm:$0xff]
    %v915 = vld [vmem:[%s5 + $0xf0] sm:$0xff]
    %v916 = vld [vmem:[%s5 + $0xf8] sm:$0xff]
    %v918 = vlaneseq
    %v919 = vshrl.u32 %v918, 7
    %v920 = vsub.s32 0, %v919
    %v921 = vrot.slane %v38, %v920
    %v922 = vlaneseq
    %v923 = vshrl.u32 %v922, 7
    %v924 = vsub.s32 1, %v923
    %v925 = vrot.slane %v38, %v924
    %v960 = vunpack.c.l.b16 %v885
    %v961 = vunpack.c.h.b16 %v885
    %v962 = vunpack.c.l.b16 %v886
    %v963 = vunpack.c.h.b16 %v886
    %v964 = vunpack.c.l.b16 %v887
    %v965 = vunpack.c.h.b16 %v887
    %v966 = vunpack.c.l.b16 %v888
    %v967 = vunpack.c.h.b16 %v888
    %v968 = vunpack.c.l.b16 %v889
    %v969 = vunpack.c.h.b16 %v889
    %v970 = vunpack.c.l.b16 %v890
    %v971 = vunpack.c.h.b16 %v890
    %v972 = vunpack.c.l.b16 %v891
    %v973 = vunpack.c.h.b16 %v891
    %v974 = vunpack.c.l.b16 %v892
    %v975 = vunpack.c.h.b16 %v892
    %v976 = vunpack.c.l.b16 %v893
    %v977 = vunpack.c.h.b16 %v893
    %v978 = vunpack.c.l.b16 %v894
    %v979 = vunpack.c.h.b16 %v894
    %v980 = vunpack.c.l.b16 %v895
    %v981 = vunpack.c.h.b16 %v895
    %v982 = vunpack.c.l.b16 %v896
    %v983 = vunpack.c.h.b16 %v896
    %v984 = vunpack.c.l.b16 %v897
    %v985 = vunpack.c.h.b16 %v897
    %v986 = vunpack.c.l.b16 %v898
    %v987 = vunpack.c.h.b16 %v898
    %v988 = vunpack.c.l.b16 %v899
    %v989 = vunpack.c.h.b16 %v899
    %v990 = vunpack.c.l.b16 %v900
    %v991 = vunpack.c.h.b16 %v900
    %v992 = vunpack.c.l.b16 %v901
    %v993 = vunpack.c.h.b16 %v901
    %v994 = vunpack.c.l.b16 %v902
    %v995 = vunpack.c.h.b16 %v902
    %v996 = vunpack.c.l.b16 %v903
    %v997 = vunpack.c.h.b16 %v903
    %v998 = vunpack.c.l.b16 %v904
    %v999 = vunpack.c.h.b16 %v904
    %v1000 = vunpack.c.l.b16 %v905
    %v1001 = vunpack.c.h.b16 %v905
    %v1002 = vunpack.c.l.b16 %v906
    %v1003 = vunpack.c.h.b16 %v906
    %v1004 = vunpack.c.l.b16 %v907
    %v1005 = vunpack.c.h.b16 %v907
    %v1006 = vunpack.c.l.b16 %v908
    %v1007 = vunpack.c.h.b16 %v908
    %v1008 = vunpack.c.l.b16 %v909
    %v1009 = vunpack.c.h.b16 %v909
    %v1010 = vunpack.c.l.b16 %v910
    %v1011 = vunpack.c.h.b16 %v910
    %v1012 = vunpack.c.l.b16 %v911
    %v1013 = vunpack.c.h.b16 %v911
    %v1014 = vunpack.c.l.b16 %v912
    %v1015 = vunpack.c.h.b16 %v912
    %v1016 = vunpack.c.l.b16 %v913
    %v1017 = vunpack.c.h.b16 %v913
    %v1018 = vunpack.c.l.b16 %v914
    %v1019 = vunpack.c.h.b16 %v914
    %v1020 = vunpack.c.l.b16 %v915
    %v1021 = vunpack.c.h.b16 %v915
    %v1022 = vunpack.c.l.b16 %v916
    %v1023 = vunpack.c.h.b16 %v916
    %v1024 = vpack.c.b16 %v962, %v960
    %v1025 = vpack.c.b16 %v963, %v961
    %v1026 = vpack.c.b16 %v966, %v964
    %v1027 = vpack.c.b16 %v967, %v965
    %v1028 = vpack.c.b16 %v970, %v968
    %v1029 = vpack.c.b16 %v971, %v969
    %v1030 = vpack.c.b16 %v974, %v972
    %v1031 = vpack.c.b16 %v975, %v973
    %v1032 = vpack.c.b16 %v978, %v976
    %v1033 = vpack.c.b16 %v979, %v977
    %v1034 = vpack.c.b16 %v982, %v980
    %v1035 = vpack.c.b16 %v983, %v981
    %v1036 = vpack.c.b16 %v986, %v984
    %v1037 = vpack.c.b16 %v987, %v985
    %v1038 = vpack.c.b16 %v990, %v988
    %v1039 = vpack.c.b16 %v991, %v989
    %v1040 = vpack.c.b16 %v994, %v992
    %v1041 = vpack.c.b16 %v995, %v993
    %v1042 = vpack.c.b16 %v998, %v996
    %v1043 = vpack.c.b16 %v999, %v997
    %v1044 = vpack.c.b16 %v1002, %v1000
    %v1045 = vpack.c.b16 %v1003, %v1001
    %v1046 = vpack.c.b16 %v1006, %v1004
    %v1047 = vpack.c.b16 %v1007, %v1005
    %v1048 = vpack.c.b16 %v1010, %v1008
    %v1049 = vpack.c.b16 %v1011, %v1009
    %v1050 = vpack.c.b16 %v1014, %v1012
    %v1051 = vpack.c.b16 %v1015, %v1013
    %v1052 = vpack.c.b16 %v1018, %v1016
    %v1053 = vpack.c.b16 %v1019, %v1017
    %v1054 = vpack.c.b16 %v1022, %v1020
    %v1055 = vpack.c.b16 %v1023, %v1021
    %1088 = vmatprep.subr.bf16.mxu0 %v1039
    %1089 = vmatpush1.bf16.msra.mxu0 %v1038
    %1090 = vmatprep.subr.bf16.mxu0 %v1037
    %1091 = vmatpush1.bf16.msra.mxu0 %v1036
    %1092 = vmatprep.subr.bf16.mxu0 %v1035
    %1093 = vmatpush1.bf16.msra.mxu0 %v1034
    %1094 = vmatprep.subr.bf16.mxu0 %v1033
    %1095 = vmatpush1.bf16.msra.mxu0 %v1032
    %1096 = vmatprep.subr.bf16.mxu0 %v1031
    %1097 = vmatpush1.bf16.msra.mxu0 %v1030
    %1098 = vmatprep.subr.bf16.mxu0 %v1029
    %1099 = vmatpush1.bf16.msra.mxu0 %v1028
    %1100 = vmatprep.subr.bf16.mxu0 %v1027
    %1101 = vmatpush1.bf16.msra.mxu0 %v1026
    %1102 = vmatprep.subr.bf16.mxu0 %v1025
    %1103 = vmatpush1.bf16.msra.mxu0 %v1024
    %1104 = vmatprep.subr.bf16.mxu0 %v1055
    %1105 = vmatpush2.bf16.msra.mxu0 %v1054
    %1106 = vmatprep.subr.bf16.mxu0 %v1053
    %1107 = vmatpush2.bf16.msra.mxu0 %v1052
    %1108 = vmatprep.subr.bf16.mxu0 %v1051
    %1109 = vmatpush2.bf16.msra.mxu0 %v1050
    %1110 = vmatprep.subr.bf16.mxu0 %v1049
    %1111 = vmatpush2.bf16.msra.mxu0 %v1048
    %1112 = vmatprep.subr.bf16.mxu0 %v1047
    %1113 = vmatpush2.bf16.msra.mxu0 %v1046
    %1114 = vmatprep.subr.bf16.mxu0 %v1045
    %1115 = vmatpush2.bf16.msra.mxu0 %v1044
    %1116 = vmatprep.subr.bf16.mxu0 %v1043
    %1117 = vmatpush2.bf16.msra.mxu0 %v1042
    %1118 = vmatprep.subr.bf16.mxu0 %v1041
    %1119 = vmatpush2.bf16.msra.mxu0 %v1040
    %1120 = vmatprep.mubr.bf16.mxu0 %v854
    %1121 = vmatmul.mubr.bf16.gmra.mxu0 %v853
    %v1122 = vpop.f32.mrf.mxu0
    %v1123 = vadd.f32 %v921, %v1122
    %v1124 = vpop.f32.mrf.mxu0
    %v1125 = vadd.f32 %v925, %v1124
    %v1126 = vpop.f32.mrf.mxu0
    %v1127 = vadd.f32 %v921, %v1126
    %v1128 = vpop.f32.mrf.mxu0
    %v1129 = vadd.f32 %v925, %v1128
    %1130 = vmatprep.mubr.bf16.mxu0 %v856
    %1131 = vmatmul.mubr.bf16.gmra.mxu0 %v855
    %v1132 = vpop.f32.mrf.mxu0
    %v1133 = vadd.f32 %v921, %v1132
    %v1134 = vpop.f32.mrf.mxu0
    %v1135 = vadd.f32 %v925, %v1134
    %v1136 = vpop.f32.mrf.mxu0
    %v1137 = vadd.f32 %v921, %v1136
    %v1138 = vpop.f32.mrf.mxu0
    %v1139 = vadd.f32 %v925, %v1138
    %1140 = vmatprep.mubr.bf16.mxu0 %v858
    %1141 = vmatmul.mubr.bf16.gmra.mxu0 %v857
    %v1142 = vpop.f32.mrf.mxu0
    %v1143 = vadd.f32 %v921, %v1142
    %v1144 = vpop.f32.mrf.mxu0
    %v1145 = vadd.f32 %v925, %v1144
    %v1146 = vpop.f32.mrf.mxu0
    %v1147 = vadd.f32 %v921, %v1146
    %v1148 = vpop.f32.mrf.mxu0
    %v1149 = vadd.f32 %v925, %v1148
    %1150 = vmatprep.mubr.bf16.mxu0 %v860
    %1151 = vmatmul.mubr.bf16.gmra.mxu0 %v859
    %v1152 = vpop.f32.mrf.mxu0
    %v1153 = vadd.f32 %v921, %v1152
    %v1154 = vpop.f32.mrf.mxu0
    %v1155 = vadd.f32 %v925, %v1154
    %v1156 = vpop.f32.mrf.mxu0
    %v1157 = vadd.f32 %v921, %v1156
    %v1158 = vpop.f32.mrf.mxu0
    %v1159 = vadd.f32 %v925, %v1158
    %1160 = vmatprep.mubr.bf16.mxu0 %v862
    %1161 = vmatmul.mubr.bf16.gmra.mxu0 %v861
    %v1162 = vpop.f32.mrf.mxu0
    %v1163 = vadd.f32 %v921, %v1162
    %v1164 = vpop.f32.mrf.mxu0
    %v1165 = vadd.f32 %v925, %v1164
    %v1166 = vpop.f32.mrf.mxu0
    %v1167 = vadd.f32 %v921, %v1166
    %v1168 = vpop.f32.mrf.mxu0
    %v1169 = vadd.f32 %v925, %v1168
    %1170 = vmatprep.mubr.bf16.mxu0 %v864
    %1171 = vmatmul.mubr.bf16.gmra.mxu0 %v863
    %v1172 = vpop.f32.mrf.mxu0
    %v1173 = vadd.f32 %v921, %v1172
    %v1174 = vpop.f32.mrf.mxu0
    %v1175 = vadd.f32 %v925, %v1174
    %v1176 = vpop.f32.mrf.mxu0
    %v1177 = vadd.f32 %v921, %v1176
    %v1178 = vpop.f32.mrf.mxu0
    %v1179 = vadd.f32 %v925, %v1178
    %1180 = vmatprep.mubr.bf16.mxu0 %v866
    %1181 = vmatmul.mubr.bf16.gmra.mxu0 %v865
    %v1182 = vpop.f32.mrf.mxu0
    %v1183 = vadd.f32 %v921, %v1182
    %v1184 = vpop.f32.mrf.mxu0
    %v1185 = vadd.f32 %v925, %v1184
    %v1186 = vpop.f32.mrf.mxu0
    %v1187 = vadd.f32 %v921, %v1186
    %v1188 = vpop.f32.mrf.mxu0
    %v1189 = vadd.f32 %v925, %v1188
    %1190 = vmatprep.mubr.bf16.mxu0 %v868
    %1191 = vmatmul.mubr.bf16.gmra.mxu0 %v867
    %v1192 = vpop.f32.mrf.mxu0
    %v1193 = vadd.f32 %v921, %v1192
    %v1194 = vpop.f32.mrf.mxu0
    %v1195 = vadd.f32 %v925, %v1194
    %v1196 = vpop.f32.mrf.mxu0
    %v1197 = vadd.f32 %v921, %v1196
    %v1198 = vpop.f32.mrf.mxu0
    %v1199 = vadd.f32 %v925, %v1198
    %1200 = vmatprep.mubr.bf16.mxu0 %v870
    %1201 = vmatmul.mubr.bf16.gmra.mxu0 %v869
    %v1202 = vpop.f32.mrf.mxu0
    %v1203 = vadd.f32 %v921, %v1202
    %v1204 = vpop.f32.mrf.mxu0
    %v1205 = vadd.f32 %v925, %v1204
    %v1206 = vpop.f32.mrf.mxu0
    %v1207 = vadd.f32 %v921, %v1206
    %v1208 = vpop.f32.mrf.mxu0
    %v1209 = vadd.f32 %v925, %v1208
    %1210 = vmatprep.mubr.bf16.mxu0 %v872
    %1211 = vmatmul.mubr.bf16.gmra.mxu0 %v871
    %v1212 = vpop.f32.mrf.mxu0
    %v1213 = vadd.f32 %v921, %v1212
    %v1214 = vpop.f32.mrf.mxu0
    %v1215 = vadd.f32 %v925, %v1214
    %v1216 = vpop.f32.mrf.mxu0
    %v1217 = vadd.f32 %v921, %v1216
    %v1218 = vpop.f32.mrf.mxu0
    %v1219 = vadd.f32 %v925, %v1218
    %1220 = vmatprep.mubr.bf16.mxu0 %v874
    %1221 = vmatmul.mubr.bf16.gmra.mxu0 %v873
    %v1222 = vpop.f32.mrf.mxu0
    %v1223 = vadd.f32 %v921, %v1222
    %v1224 = vpop.f32.mrf.mxu0
    %v1225 = vadd.f32 %v925, %v1224
    %v1226 = vpop.f32.mrf.mxu0
    %v1227 = vadd.f32 %v921, %v1226
    %v1228 = vpop.f32.mrf.mxu0
    %v1229 = vadd.f32 %v925, %v1228
    %1230 = vmatprep.mubr.bf16.mxu0 %v876
    %1231 = vmatmul.mubr.bf16.gmra.mxu0 %v875
    %v1232 = vpop.f32.mrf.mxu0
    %v1233 = vadd.f32 %v921, %v1232
    %v1234 = vpop.f32.mrf.mxu0
    %v1235 = vadd.f32 %v925, %v1234
    %v1236 = vpop.f32.mrf.mxu0
    %v1237 = vadd.f32 %v921, %v1236
    %v1238 = vpop.f32.mrf.mxu0
    %v1239 = vadd.f32 %v925, %v1238
    %1240 = vmatprep.mubr.bf16.mxu0 %v878
    %1241 = vmatmul.mubr.bf16.gmra.mxu0 %v877
    %v1242 = vpop.f32.mrf.mxu0
    %v1243 = vadd.f32 %v921, %v1242
    %v1244 = vpop.f32.mrf.mxu0
    %v1245 = vadd.f32 %v925, %v1244
    %v1246 = vpop.f32.mrf.mxu0
    %v1247 = vadd.f32 %v921, %v1246
    %v1248 = vpop.f32.mrf.mxu0
    %v1249 = vadd.f32 %v925, %v1248
    %1250 = vmatprep.mubr.bf16.mxu0 %v880
    %1251 = vmatmul.mubr.bf16.gmra.mxu0 %v879
    %v1252 = vpop.f32.mrf.mxu0
    %v1253 = vadd.f32 %v921, %v1252
    %v1254 = vpop.f32.mrf.mxu0
    %v1255 = vadd.f32 %v925, %v1254
    %v1256 = vpop.f32.mrf.mxu0
    %v1257 = vadd.f32 %v921, %v1256
    %v1258 = vpop.f32.mrf.mxu0
    %v1259 = vadd.f32 %v925, %v1258
    %1260 = vmatprep.mubr.bf16.mxu0 %v882
    %1261 = vmatmul.mubr.bf16.gmra.mxu0 %v881
    %v1262 = vpop.f32.mrf.mxu0
    %v1263 = vadd.f32 %v921, %v1262
    %v1264 = vpop.f32.mrf.mxu0
    %v1265 = vadd.f32 %v925, %v1264
    %v1266 = vpop.f32.mrf.mxu0
    %v1267 = vadd.f32 %v921, %v1266
    %v1268 = vpop.f32.mrf.mxu0
    %v1269 = vadd.f32 %v925, %v1268
    %1270 = vmatprep.mubr.bf16.mxu0 %v884
    %1271 = vmatmul.mubr.bf16.gmra.mxu0 %v883
    %v1272 = vpop.f32.mrf.mxu0
    %v1273 = vadd.f32 %v921, %v1272
    %v1274 = vpop.f32.mrf.mxu0
    %v1275 = vadd.f32 %v925, %v1274
    %v1276 = vpop.f32.mrf.mxu0
    %v1277 = vadd.f32 %v921, %v1276
    %v1278 = vpop.f32.mrf.mxu0
    %v1279 = vadd.f32 %v925, %v1278
    %1280 = vdwg.mxu0
    %v1281 = vpack.c.bf16 %v289, %v289
    %v1282 = vpack.c.bf16 %v635, %v631
    %v1283 = vpack.c.bf16 %v645, %v641
    %v1284 = vpack.c.bf16 %v655, %v651
    %v1285 = vpack.c.bf16 %v665, %v661
    %v1286 = vpack.c.bf16 %v675, %v671
    %v1287 = vpack.c.bf16 %v685, %v681
    %v1288 = vpack.c.bf16 %v695, %v691
    %v1289 = vpack.c.bf16 %v705, %v701
    %v1290 = vpack.c.bf16 %v1127, %v1123
    %v1291 = vpack.c.bf16 %v1137, %v1133
    %v1292 = vpack.c.bf16 %v1147, %v1143
    %v1293 = vpack.c.bf16 %v1157, %v1153
    %v1294 = vpack.c.bf16 %v1167, %v1163
    %v1295 = vpack.c.bf16 %v1177, %v1173
    %v1296 = vpack.c.bf16 %v1187, %v1183
    %v1297 = vpack.c.bf16 %v1197, %v1193
    %vm1298 = vcmask 261120
    %v1300 = vsel %vm1298, %v1281, 0
    %v1303 = vsel %vm1298, %v1282, 0
    %v1306 = vsel %vm1298, %v1283, 0
    %v1309 = vsel %vm1298, %v1284, 0
    %v1312 = vsel %vm1298, %v1285, 0
    %v1315 = vsel %vm1298, %v1286, 0
    %v1318 = vsel %vm1298, %v1287, 0
    %v1321 = vsel %vm1298, %v1288, 0
    %v1324 = vsel %vm1298, %v1289, 0
    %1326 = vmatprep.subr.bf16.mxu0 0
    %1327 = vmatpush1.bf16.xpose.msra.mxu0 %v1324
    %1328 = vmatprep.subr.bf16.mxu0 0
    %1329 = vmatpush1.bf16.xpose.msra.mxu0 %v1321
    %1330 = vmatprep.subr.bf16.mxu0 0
    %1331 = vmatpush1.bf16.xpose.msra.mxu0 %v1318
    %1332 = vmatprep.subr.bf16.mxu0 0
    %1333 = vmatpush1.bf16.xpose.msra.mxu0 %v1315
    %1334 = vmatprep.subr.bf16.mxu0 0
    %1335 = vmatpush1.bf16.xpose.msra.mxu0 %v1312
    %1336 = vmatprep.subr.bf16.mxu0 0
    %1337 = vmatpush1.bf16.xpose.msra.mxu0 %v1309
    %1338 = vmatprep.subr.bf16.mxu0 0
    %1339 = vmatpush1.bf16.xpose.msra.mxu0 %v1306
    %1340 = vmatprep.subr.bf16.mxu0 0
    %1341 = vmatpush1.bf16.xpose.msra.mxu0 %v1303
    %1342 = vmatprep.subr.bf16.mxu0 0
    %1343 = vmatpush2.bf16.xpose.msra.mxu0 0
    %1344 = vmatprep.subr.bf16.mxu0 0
    %1345 = vmatpush2.bf16.xpose.msra.mxu0 0
    %1346 = vmatprep.subr.bf16.mxu0 0
    %1347 = vmatpush2.bf16.xpose.msra.mxu0 0
    %1348 = vmatprep.subr.bf16.mxu0 0
    %1349 = vmatpush2.bf16.xpose.msra.mxu0 0
    %1350 = vmatprep.subr.bf16.mxu0 0
    %1351 = vmatpush2.bf16.xpose.msra.mxu0 0
    %1352 = vmatprep.subr.bf16.mxu0 0
    %1353 = vmatpush2.bf16.xpose.msra.mxu0 0
    %1354 = vmatprep.subr.bf16.mxu0 0
    %1355 = vmatpush2.bf16.xpose.msra.mxu0 0
    %1356 = vmatprep.subr.bf16.mxu0 0
    %1357 = vmatpush2.bf16.xpose.msra.mxu0 0
    %1358 = vmatprep.mubr.bf16.mxu0 0
    %1359 = vmatmul.mubr.bf16.gmra.mxu0 %v1300
    %v1360 = vpop.f32.mrf.mxu0
    %v1361 = vadd.f32 0.0, %v1360
    %v1362 = vpop.f32.mrf.mxu0
    %v1363 = vpop.f32.mrf.mxu0
    %v1364 = vpop.f32.mrf.mxu0
    %1365 = vdwg.mxu0
    %1366 = vmax.xlane.f32.xlu0 %v1361
    %v1367 = vpop.xlane.xlu0 %1366
    %v1368 = vsub.f32 %v1361, %v1367
    %v1369 = vmul.f32 %v1368, 1.442695
    %v1370 = vpow.pop %v1369
    %1371 = vadd.xlane.f32.xlu0 %v1370
    %v1372 = vpop.xlane.xlu0 %1371
    %v1373 = vrcp.pop %v1372
    %v1374 = vmul.f32 1.0, %v1373
    %v1375 = vmul.f32 %v1370, %v1374
    %v1376 = vadd.f32 %v1375, 0.0
    %v1377 = vpack.c.bf16 %v1375, %v1375
    %1378 = vmatprep.subr.bf16.mxu0 0
    %1379 = vmatpush1.bf16.msra.mxu0 %v1297
    %1380 = vmatprep.subr.bf16.mxu0 0
    %1381 = vmatpush1.bf16.msra.mxu0 %v1296
    %1382 = vmatprep.subr.bf16.mxu0 0
    %1383 = vmatpush1.bf16.msra.mxu0 %v1295
    %1384 = vmatprep.subr.bf16.mxu0 0
    %1385 = vmatpush1.bf16.msra.mxu0 %v1294
    %1386 = vmatprep.subr.bf16.mxu0 0
    %1387 = vmatpush1.bf16.msra.mxu0 %v1293
    %1388 = vmatprep.subr.bf16.mxu0 0
    %1389 = vmatpush1.bf16.msra.mxu0 %v1292
    %1390 = vmatprep.subr.bf16.mxu0 0
    %1391 = vmatpush1.bf16.msra.mxu0 %v1291
    %1392 = vmatprep.subr.bf16.mxu0 0
    %1393 = vmatpush1.bf16.msra.mxu0 %v1290
    %1394 = vmatprep.subr.bf16.mxu0 0
    %1395 = vmatpush2.bf16.msra.mxu0 0
    %1396 = vmatprep.subr.bf16.mxu0 0
    %1397 = vmatpush2.bf16.msra.mxu0 0
    %1398 = vmatprep.subr.bf16.mxu0 0
    %1399 = vmatpush2.bf16.msra.mxu0 0
    %1400 = vmatprep.subr.bf16.mxu0 0
    %1401 = vmatpush2.bf16.msra.mxu0 0
    %1402 = vmatprep.subr.bf16.mxu0 0
    %1403 = vmatpush2.bf16.msra.mxu0 0
    %1404 = vmatprep.subr.bf16.mxu0 0
    %1405 = vmatpush2.bf16.msra.mxu0 0
    %1406 = vmatprep.subr.bf16.mxu0 0
    %1407 = vmatpush2.bf16.msra.mxu0 0
    %1408 = vmatprep.subr.bf16.mxu0 0
    %1409 = vmatpush2.bf16.msra.mxu0 0
    %1410 = vmatprep.mubr.bf16.mxu0 0
    %1411 = vmatmul.mubr.bf16.gmra.mxu0 %v1377
    %v1412 = vpop.f32.mrf.mxu0
    %v1413 = vadd.f32 0.0, %v1412
    %v1414 = vpop.f32.mrf.mxu0
    %v1415 = vpop.f32.mrf.mxu0
    %v1416 = vpop.f32.mrf.mxu0
    %1417 = vdwg.mxu0
    %1419 = vrot.lane.b32.xlu0 %v1281, 96
    %v1420 = vpop.permute.xlu0 %1419
    %1429 = vrot.lane.b32.xlu0 %v1282, 96
    %v1430 = vpop.permute.xlu0 %1429
    %1431 = vrot.lane.b32.xlu0 %v1283, 96
    %v1432 = vpop.permute.xlu0 %1431
    %1433 = vrot.lane.b32.xlu0 %v1284, 96
    %v1434 = vpop.permute.xlu0 %1433
    %1435 = vrot.lane.b32.xlu0 %v1285, 96
    %v1436 = vpop.permute.xlu0 %1435
    %1437 = vrot.lane.b32.xlu0 %v1286, 96
    %v1438 = vpop.permute.xlu0 %1437
    %1439 = vrot.lane.b32.xlu0 %v1287, 96
    %v1440 = vpop.permute.xlu0 %1439
    %1441 = vrot.lane.b32.xlu0 %v1288, 96
    %v1442 = vpop.permute.xlu0 %1441
    %1443 = vrot.lane.b32.xlu0 %v1289, 96
    %v1444 = vpop.permute.xlu0 %1443
    %v1446 = vsel %vm1298, %v1420, 0
    %v1449 = vsel %vm1298, %v1430, 0
    %v1452 = vsel %vm1298, %v1432, 0
    %v1455 = vsel %vm1298, %v1434, 0
    %v1458 = vsel %vm1298, %v1436, 0
    %v1461 = vsel %vm1298, %v1438, 0
    %v1464 = vsel %vm1298, %v1440, 0
    %v1467 = vsel %vm1298, %v1442, 0
    %v1470 = vsel %vm1298, %v1444, 0
    %1472 = vmatprep.subr.bf16.mxu0 0
    %1473 = vmatpush1.bf16.xpose.msra.mxu0 %v1470
    %1474 = vmatprep.subr.bf16.mxu0 0
    %1475 = vmatpush1.bf16.xpose.msra.mxu0 %v1467
    %1476 = vmatprep.subr.bf16.mxu0 0
    %1477 = vmatpush1.bf16.xpose.msra.mxu0 %v1464
    %1478 = vmatprep.subr.bf16.mxu0 0
    %1479 = vmatpush1.bf16.xpose.msra.mxu0 %v1461
    %1480 = vmatprep.subr.bf16.mxu0 0
    %1481 = vmatpush1.bf16.xpose.msra.mxu0 %v1458
    %1482 = vmatprep.subr.bf16.mxu0 0
    %1483 = vmatpush1.bf16.xpose.msra.mxu0 %v1455
    %1484 = vmatprep.subr.bf16.mxu0 0
    %1485 = vmatpush1.bf16.xpose.msra.mxu0 %v1452
    %1486 = vmatprep.subr.bf16.mxu0 0
    %1487 = vmatpush1.bf16.xpose.msra.mxu0 %v1449
    %1488 = vmatprep.subr.bf16.mxu0 0
    %1489 = vmatpush2.bf16.xpose.msra.mxu0 0
    %1490 = vmatprep.subr.bf16.mxu0 0
    %1491 = vmatpush2.bf16.xpose.msra.mxu0 0
    %1492 = vmatprep.subr.bf16.mxu0 0
    %1493 = vmatpush2.bf16.xpose.msra.mxu0 0
    %1494 = vmatprep.subr.bf16.mxu0 0
    %1495 = vmatpush2.bf16.xpose.msra.mxu0 0
    %1496 = vmatprep.subr.bf16.mxu0 0
    %1497 = vmatpush2.bf16.xpose.msra.mxu0 0
    %1498 = vmatprep.subr.bf16.mxu0 0
    %1499 = vmatpush2.bf16.xpose.msra.mxu0 0
    %1500 = vmatprep.subr.bf16.mxu0 0
    %1501 = vmatpush2.bf16.xpose.msra.mxu0 0
    %1502 = vmatprep.subr.bf16.mxu0 0
    %1503 = vmatpush2.bf16.xpose.msra.mxu0 0
    %1504 = vmatprep.mubr.bf16.mxu0 0
    %1505 = vmatmul.mubr.bf16.gmra.mxu0 %v1446
    %v1506 = vpop.f32.mrf.mxu0
    %v1507 = vadd.f32 0.0, %v1506
    %v1508 = vpop.f32.mrf.mxu0
    %v1509 = vpop.f32.mrf.mxu0
    %v1510 = vpop.f32.mrf.mxu0
    %1511 = vdwg.mxu0
    %1512 = vmax.xlane.f32.xlu0 %v1507
    %v1513 = vpop.xlane.xlu0 %1512
    %v1514 = vsub.f32 %v1507, %v1513
    %v1515 = vmul.f32 %v1514, 1.442695
    %v1516 = vpow.pop %v1515
    %1517 = vadd.xlane.f32.xlu0 %v1516
    %v1518 = vpop.xlane.xlu0 %1517
    %v1519 = vrcp.pop %v1518
    %v1520 = vmul.f32 1.0, %v1519
    %v1521 = vmul.f32 %v1516, %v1520
    %v1522 = vadd.f32 %v1376, %v1521
    %v1523 = vpack.c.bf16 %v1521, %v1521
    %1532 = vrot.lane.b32.xlu0 %v1290, 96
    %v1533 = vpop.permute.xlu0 %1532
    %1534 = vrot.lane.b32.xlu0 %v1291, 96
    %v1535 = vpop.permute.xlu0 %1534
    %1536 = vrot.lane.b32.xlu0 %v1292, 96
    %v1537 = vpop.permute.xlu0 %1536
    %1538 = vrot.lane.b32.xlu0 %v1293, 96
    %v1539 = vpop.permute.xlu0 %1538
    %1540 = vrot.lane.b32.xlu0 %v1294, 96
    %v1541 = vpop.permute.xlu0 %1540
    %1542 = vrot.lane.b32.xlu0 %v1295, 96
    %v1543 = vpop.permute.xlu0 %1542
    %1544 = vrot.lane.b32.xlu0 %v1296, 96
    %v1545 = vpop.permute.xlu0 %1544
    %1546 = vrot.lane.b32.xlu0 %v1297, 96
    %v1547 = vpop.permute.xlu0 %1546
    %1556 = vmatprep.subr.bf16.mxu0 0
    %1557 = vmatpush1.bf16.msra.mxu0 %v1547
    %1558 = vmatprep.subr.bf16.mxu0 0
    %1559 = vmatpush1.bf16.msra.mxu0 %v1545
    %1560 = vmatprep.subr.bf16.mxu0 0
    %1561 = vmatpush1.bf16.msra.mxu0 %v1543
    %1562 = vmatprep.subr.bf16.mxu0 0
    %1563 = vmatpush1.bf16.msra.mxu0 %v1541
    %1564 = vmatprep.subr.bf16.mxu0 0
    %1565 = vmatpush1.bf16.msra.mxu0 %v1539
    %1566 = vmatprep.subr.bf16.mxu0 0
    %1567 = vmatpush1.bf16.msra.mxu0 %v1537
    %1568 = vmatprep.subr.bf16.mxu0 0
    %1569 = vmatpush1.bf16.msra.mxu0 %v1535
    %1570 = vmatprep.subr.bf16.mxu0 0
    %1571 = vmatpush1.bf16.msra.mxu0 %v1533
    %1572 = vmatprep.subr.bf16.mxu0 0
    %1573 = vmatpush2.bf16.msra.mxu0 0
    %1574 = vmatprep.subr.bf16.mxu0 0
    %1575 = vmatpush2.bf16.msra.mxu0 0
    %1576 = vmatprep.subr.bf16.mxu0 0
    %1577 = vmatpush2.bf16.msra.mxu0 0
    %1578 = vmatprep.subr.bf16.mxu0 0
    %1579 = vmatpush2.bf16.msra.mxu0 0
    %1580 = vmatprep.subr.bf16.mxu0 0
    %1581 = vmatpush2.bf16.msra.mxu0 0
    %1582 = vmatprep.subr.bf16.mxu0 0
    %1583 = vmatpush2.bf16.msra.mxu0 0
    %1584 = vmatprep.subr.bf16.mxu0 0
    %1585 = vmatpush2.bf16.msra.mxu0 0
    %1586 = vmatprep.subr.bf16.mxu0 0
    %1587 = vmatpush2.bf16.msra.mxu0 0
    %1588 = vmatprep.mubr.bf16.mxu0 0
    %1589 = vmatmul.mubr.bf16.gmra.mxu0 %v1523
    %v1590 = vpop.f32.mrf.mxu0
    %v1591 = vadd.f32 0.0, %v1590
    %v1592 = vpop.f32.mrf.mxu0
    %v1593 = vpop.f32.mrf.mxu0
    %v1594 = vpop.f32.mrf.mxu0
    %1595 = vdwg.mxu0
    %1596 = vrot.lane.b32.xlu0 %v1281, 64
    %v1597 = vpop.permute.xlu0 %1596
    %1598 = vrot.lane.b32.xlu0 %v1282, 64
    %v1599 = vpop.permute.xlu0 %1598
    %1600 = vrot.lane.b32.xlu0 %v1283, 64
    %v1601 = vpop.permute.xlu0 %1600
    %1602 = vrot.lane.b32.xlu0 %v1284, 64
    %v1603 = vpop.permute.xlu0 %1602
    %1604 = vrot.lane.b32.xlu0 %v1285, 64
    %v1605 = vpop.permute.xlu0 %1604
    %1606 = vrot.lane.b32.xlu0 %v1286, 64
    %v1607 = vpop.permute.xlu0 %1606
    %1608 = vrot.lane.b32.xlu0 %v1287, 64
    %v1609 = vpop.permute.xlu0 %1608
    %1610 = vrot.lane.b32.xlu0 %v1288, 64
    %v1611 = vpop.permute.xlu0 %1610
    %1612 = vrot.lane.b32.xlu0 %v1289, 64
    %v1613 = vpop.permute.xlu0 %1612
    %v1615 = vsel %vm1298, %v1597, 0
    %v1618 = vsel %vm1298, %v1599, 0
    %v1621 = vsel %vm1298, %v1601, 0
    %v1624 = vsel %vm1298, %v1603, 0
    %v1627 = vsel %vm1298, %v1605, 0
    %v1630 = vsel %vm1298, %v1607, 0
    %v1633 = vsel %vm1298, %v1609, 0
    %v1636 = vsel %vm1298, %v1611, 0
    %v1639 = vsel %vm1298, %v1613, 0
    %1641 = vmatprep.subr.bf16.mxu0 0
    %1642 = vmatpush1.bf16.xpose.msra.mxu0 %v1639
    %1643 = vmatprep.subr.bf16.mxu0 0
    %1644 = vmatpush1.bf16.xpose.msra.mxu0 %v1636
    %1645 = vmatprep.subr.bf16.mxu0 0
    %1646 = vmatpush1.bf16.xpose.msra.mxu0 %v1633
    %1647 = vmatprep.subr.bf16.mxu0 0
    %1648 = vmatpush1.bf16.xpose.msra.mxu0 %v1630
    %1649 = vmatprep.subr.bf16.mxu0 0
    %1650 = vmatpush1.bf16.xpose.msra.mxu0 %v1627
    %1651 = vmatprep.subr.bf16.mxu0 0
    %1652 = vmatpush1.bf16.xpose.msra.mxu0 %v1624
    %1653 = vmatprep.subr.bf16.mxu0 0
    %1654 = vmatpush1.bf16.xpose.msra.mxu0 %v1621
    %1655 = vmatprep.subr.bf16.mxu0 0
    %1656 = vmatpush1.bf16.xpose.msra.mxu0 %v1618
    %1657 = vmatprep.subr.bf16.mxu0 0
    %1658 = vmatpush2.bf16.xpose.msra.mxu0 0
    %1659 = vmatprep.subr.bf16.mxu0 0
    %1660 = vmatpush2.bf16.xpose.msra.mxu0 0
    %1661 = vmatprep.subr.bf16.mxu0 0
    %1662 = vmatpush2.bf16.xpose.msra.mxu0 0
    %1663 = vmatprep.subr.bf16.mxu0 0
    %1664 = vmatpush2.bf16.xpose.msra.mxu0 0
    %1665 = vmatprep.subr.bf16.mxu0 0
    %1666 = vmatpush2.bf16.xpose.msra.mxu0 0
    %1667 = vmatprep.subr.bf16.mxu0 0
    %1668 = vmatpush2.bf16.xpose.msra.mxu0 0
    %1669 = vmatprep.subr.bf16.mxu0 0
    %1670 = vmatpush2.bf16.xpose.msra.mxu0 0
    %1671 = vmatprep.subr.bf16.mxu0 0
    %1672 = vmatpush2.bf16.xpose.msra.mxu0 0
    %1673 = vmatprep.mubr.bf16.mxu0 0
    %1674 = vmatmul.mubr.bf16.gmra.mxu0 %v1615
    %v1675 = vpop.f32.mrf.mxu0
    %v1676 = vadd.f32 0.0, %v1675
    %v1677 = vpop.f32.mrf.mxu0
    %v1678 = vpop.f32.mrf.mxu0
    %v1679 = vpop.f32.mrf.mxu0
    %1680 = vdwg.mxu0
    %1681 = vmax.xlane.f32.xlu0 %v1676
    %v1682 = vpop.xlane.xlu0 %1681
    %v1683 = vsub.f32 %v1676, %v1682
    %v1684 = vmul.f32 %v1683, 1.442695
    %v1685 = vpow.pop %v1684
    %1686 = vadd.xlane.f32.xlu0 %v1685
    %v1687 = vpop.xlane.xlu0 %1686
    %v1688 = vrcp.pop %v1687
    %v1689 = vmul.f32 1.0, %v1688
    %v1690 = vmul.f32 %v1685, %v1689
    %v1691 = vadd.f32 %v1522, %v1690
    %v1692 = vpack.c.bf16 %v1690, %v1690
    %1693 = vrot.lane.b32.xlu0 %v1290, 64
    %v1694 = vpop.permute.xlu0 %1693
    %1695 = vrot.lane.b32.xlu0 %v1291, 64
    %v1696 = vpop.permute.xlu0 %1695
    %1697 = vrot.lane.b32.xlu0 %v1292, 64
    %v1698 = vpop.permute.xlu0 %1697
    %1699 = vrot.lane.b32.xlu0 %v1293, 64
    %v1700 = vpop.permute.xlu0 %1699
    %1701 = vrot.lane.b32.xlu0 %v1294, 64
    %v1702 = vpop.permute.xlu0 %1701
    %1703 = vrot.lane.b32.xlu0 %v1295, 64
    %v1704 = vpop.permute.xlu0 %1703
    %1705 = vrot.lane.b32.xlu0 %v1296, 64
    %v1706 = vpop.permute.xlu0 %1705
    %1707 = vrot.lane.b32.xlu0 %v1297, 64
    %v1708 = vpop.permute.xlu0 %1707
    %1717 = vmatprep.subr.bf16.mxu0 0
    %1718 = vmatpush1.bf16.msra.mxu0 %v1708
    %1719 = vmatprep.subr.bf16.mxu0 0
    %1720 = vmatpush1.bf16.msra.mxu0 %v1706
    %1721 = vmatprep.subr.bf16.mxu0 0
    %1722 = vmatpush1.bf16.msra.mxu0 %v1704
    %1723 = vmatprep.subr.bf16.mxu0 0
    %1724 = vmatpush1.bf16.msra.mxu0 %v1702
    %1725 = vmatprep.subr.bf16.mxu0 0
    %1726 = vmatpush1.bf16.msra.mxu0 %v1700
    %1727 = vmatprep.subr.bf16.mxu0 0
    %1728 = vmatpush1.bf16.msra.mxu0 %v1698
    %1729 = vmatprep.subr.bf16.mxu0 0
    %1730 = vmatpush1.bf16.msra.mxu0 %v1696
    %1731 = vmatprep.subr.bf16.mxu0 0
    %1732 = vmatpush1.bf16.msra.mxu0 %v1694
    %1733 = vmatprep.subr.bf16.mxu0 0
    %1734 = vmatpush2.bf16.msra.mxu0 0
    %1735 = vmatprep.subr.bf16.mxu0 0
    %1736 = vmatpush2.bf16.msra.mxu0 0
    %1737 = vmatprep.subr.bf16.mxu0 0
    %1738 = vmatpush2.bf16.msra.mxu0 0
    %1739 = vmatprep.subr.bf16.mxu0 0
    %1740 = vmatpush2.bf16.msra.mxu0 0
    %1741 = vmatprep.subr.bf16.mxu0 0
    %1742 = vmatpush2.bf16.msra.mxu0 0
    %1743 = vmatprep.subr.bf16.mxu0 0
    %1744 = vmatpush2.bf16.msra.mxu0 0
    %1745 = vmatprep.subr.bf16.mxu0 0
    %1746 = vmatpush2.bf16.msra.mxu0 0
    %1747 = vmatprep.subr.bf16.mxu0 0
    %1748 = vmatpush2.bf16.msra.mxu0 0
    %1749 = vmatprep.mubr.bf16.mxu0 0
    %1750 = vmatmul.mubr.bf16.gmra.mxu0 %v1692
    %v1751 = vpop.f32.mrf.mxu0
    %v1752 = vadd.f32 0.0, %v1751
    %v1753 = vpop.f32.mrf.mxu0
    %v1754 = vpop.f32.mrf.mxu0
    %v1755 = vpop.f32.mrf.mxu0
    %1756 = vdwg.mxu0
    %1757 = vrot.lane.b32.xlu0 %v1281, 32
    %v1758 = vpop.permute.xlu0 %1757
    %1759 = vrot.lane.b32.xlu0 %v1282, 32
    %v1760 = vpop.permute.xlu0 %1759
    %1761 = vrot.lane.b32.xlu0 %v1283, 32
    %v1762 = vpop.permute.xlu0 %1761
    %1763 = vrot.lane.b32.xlu0 %v1284, 32
    %v1764 = vpop.permute.xlu0 %1763
    %1765 = vrot.lane.b32.xlu0 %v1285, 32
    %v1766 = vpop.permute.xlu0 %1765
    %1767 = vrot.lane.b32.xlu0 %v1286, 32
    %v1768 = vpop.permute.xlu0 %1767
    %1769 = vrot.lane.b32.xlu0 %v1287, 32
    %v1770 = vpop.permute.xlu0 %1769
    %1771 = vrot.lane.b32.xlu0 %v1288, 32
    %v1772 = vpop.permute.xlu0 %1771
    %1773 = vrot.lane.b32.xlu0 %v1289, 32
    %v1774 = vpop.permute.xlu0 %1773
    %v1776 = vsel %vm1298, %v1758, 0
    %v1779 = vsel %vm1298, %v1760, 0
    %v1782 = vsel %vm1298, %v1762, 0
    %v1785 = vsel %vm1298, %v1764, 0
    %v1788 = vsel %vm1298, %v1766, 0
    %v1791 = vsel %vm1298, %v1768, 0
    %v1794 = vsel %vm1298, %v1770, 0
    %v1797 = vsel %vm1298, %v1772, 0
    %v1800 = vsel %vm1298, %v1774, 0
    %1802 = vmatprep.subr.bf16.mxu0 0
    %1803 = vmatpush1.bf16.xpose.msra.mxu0 %v1800
    %1804 = vmatprep.subr.bf16.mxu0 0
    %1805 = vmatpush1.bf16.xpose.msra.mxu0 %v1797
    %1806 = vmatprep.subr.bf16.mxu0 0
    %1807 = vmatpush1.bf16.xpose.msra.mxu0 %v1794
    %1808 = vmatprep.subr.bf16.mxu0 0
    %1809 = vmatpush1.bf16.xpose.msra.mxu0 %v1791
    %1810 = vmatprep.subr.bf16.mxu0 0
    %1811 = vmatpush1.bf16.xpose.msra.mxu0 %v1788
    %1812 = vmatprep.subr.bf16.mxu0 0
    %1813 = vmatpush1.bf16.xpose.msra.mxu0 %v1785
    %1814 = vmatprep.subr.bf16.mxu0 0
    %1815 = vmatpush1.bf16.xpose.msra.mxu0 %v1782
    %1816 = vmatprep.subr.bf16.mxu0 0
    %1817 = vmatpush1.bf16.xpose.msra.mxu0 %v1779
    %1818 = vmatprep.subr.bf16.mxu0 0
    %1819 = vmatpush2.bf16.xpose.msra.mxu0 0
    %1820 = vmatprep.subr.bf16.mxu0 0
    %1821 = vmatpush2.bf16.xpose.msra.mxu0 0
    %1822 = vmatprep.subr.bf16.mxu0 0
    %1823 = vmatpush2.bf16.xpose.msra.mxu0 0
    %1824 = vmatprep.subr.bf16.mxu0 0
    %1825 = vmatpush2.bf16.xpose.msra.mxu0 0
    %1826 = vmatprep.subr.bf16.mxu0 0
    %1827 = vmatpush2.bf16.xpose.msra.mxu0 0
    %1828 = vmatprep.subr.bf16.mxu0 0
    %1829 = vmatpush2.bf16.xpose.msra.mxu0 0
    %1830 = vmatprep.subr.bf16.mxu0 0
    %1831 = vmatpush2.bf16.xpose.msra.mxu0 0
    %1832 = vmatprep.subr.bf16.mxu0 0
    %1833 = vmatpush2.bf16.xpose.msra.mxu0 0
    %1834 = vmatprep.mubr.bf16.mxu0 0
    %1835 = vmatmul.mubr.bf16.gmra.mxu0 %v1776
    %v1836 = vpop.f32.mrf.mxu0
    %v1837 = vadd.f32 0.0, %v1836
    %v1838 = vpop.f32.mrf.mxu0
    %v1839 = vpop.f32.mrf.mxu0
    %v1840 = vpop.f32.mrf.mxu0
    %1841 = vdwg.mxu0
    %1842 = vmax.xlane.f32.xlu0 %v1837
    %v1843 = vpop.xlane.xlu0 %1842
    %v1844 = vsub.f32 %v1837, %v1843
    %v1845 = vmul.f32 %v1844, 1.442695
    %v1846 = vpow.pop %v1845
    %1847 = vadd.xlane.f32.xlu0 %v1846
    %v1848 = vpop.xlane.xlu0 %1847
    %v1849 = vrcp.pop %v1848
    %v1850 = vmul.f32 1.0, %v1849
    %v1851 = vmul.f32 %v1846, %v1850
    %v1852 = vadd.f32 %v1691, %v1851
    %v1853 = vpack.c.bf16 %v1851, %v1851
    %1854 = vrot.lane.b32.xlu0 %v1290, 32
    %v1855 = vpop.permute.xlu0 %1854
    %1856 = vrot.lane.b32.xlu0 %v1291, 32
    %v1857 = vpop.permute.xlu0 %1856
    %1858 = vrot.lane.b32.xlu0 %v1292, 32
    %v1859 = vpop.permute.xlu0 %1858
    %1860 = vrot.lane.b32.xlu0 %v1293, 32
    %v1861 = vpop.permute.xlu0 %1860
    %1862 = vrot.lane.b32.xlu0 %v1294, 32
    %v1863 = vpop.permute.xlu0 %1862
    %1864 = vrot.lane.b32.xlu0 %v1295, 32
    %v1865 = vpop.permute.xlu0 %1864
    %1866 = vrot.lane.b32.xlu0 %v1296, 32
    %v1867 = vpop.permute.xlu0 %1866
    %1868 = vrot.lane.b32.xlu0 %v1297, 32
    %v1869 = vpop.permute.xlu0 %1868
    %1878 = vmatprep.subr.bf16.mxu0 0
    %1879 = vmatpush1.bf16.msra.mxu0 %v1869
    %1880 = vmatprep.subr.bf16.mxu0 0
    %1881 = vmatpush1.bf16.msra.mxu0 %v1867
    %1882 = vmatprep.subr.bf16.mxu0 0
    %1883 = vmatpush1.bf16.msra.mxu0 %v1865
    %1884 = vmatprep.subr.bf16.mxu0 0
    %1885 = vmatpush1.bf16.msra.mxu0 %v1863
    %1886 = vmatprep.subr.bf16.mxu0 0
    %1887 = vmatpush1.bf16.msra.mxu0 %v1861
    %1888 = vmatprep.subr.bf16.mxu0 0
    %1889 = vmatpush1.bf16.msra.mxu0 %v1859
    %1890 = vmatprep.subr.bf16.mxu0 0
    %1891 = vmatpush1.bf16.msra.mxu0 %v1857
    %1892 = vmatprep.subr.bf16.mxu0 0
    %1893 = vmatpush1.bf16.msra.mxu0 %v1855
    %1894 = vmatprep.subr.bf16.mxu0 0
    %1895 = vmatpush2.bf16.msra.mxu0 0
    %1896 = vmatprep.subr.bf16.mxu0 0
    %1897 = vmatpush2.bf16.msra.mxu0 0
    %1898 = vmatprep.subr.bf16.mxu0 0
    %1899 = vmatpush2.bf16.msra.mxu0 0
    %1900 = vmatprep.subr.bf16.mxu0 0
    %1901 = vmatpush2.bf16.msra.mxu0 0
    %1902 = vmatprep.subr.bf16.mxu0 0
    %1903 = vmatpush2.bf16.msra.mxu0 0
    %1904 = vmatprep.subr.bf16.mxu0 0
    %1905 = vmatpush2.bf16.msra.mxu0 0
    %1906 = vmatprep.subr.bf16.mxu0 0
    %1907 = vmatpush2.bf16.msra.mxu0 0
    %1908 = vmatprep.subr.bf16.mxu0 0
    %1909 = vmatpush2.bf16.msra.mxu0 0
    %1910 = vmatprep.mubr.bf16.mxu0 0
    %1911 = vmatmul.mubr.bf16.gmra.mxu0 %v1853
    %v1912 = vpop.f32.mrf.mxu0
    %v1913 = vadd.f32 0.0, %v1912
    %v1914 = vpop.f32.mrf.mxu0
    %v1915 = vpop.f32.mrf.mxu0
    %v1916 = vpop.f32.mrf.mxu0
    %1917 = vdwg.mxu0
    %v1918 = vpack.c.bf16 %v291, %v291
    %v1919 = vpack.c.bf16 %v637, %v633
    %v1920 = vpack.c.bf16 %v647, %v643
    %v1921 = vpack.c.bf16 %v657, %v653
    %v1922 = vpack.c.bf16 %v667, %v663
    %v1923 = vpack.c.bf16 %v677, %v673
    %v1924 = vpack.c.bf16 %v687, %v683
    %v1925 = vpack.c.bf16 %v697, %v693
    %v1926 = vpack.c.bf16 %v707, %v703
    %v1927 = vpack.c.bf16 %v1129, %v1125
    %v1928 = vpack.c.bf16 %v1139, %v1135
    %v1929 = vpack.c.bf16 %v1149, %v1145
    %v1930 = vpack.c.bf16 %v1159, %v1155
    %v1931 = vpack.c.bf16 %v1169, %v1165
    %v1932 = vpack.c.bf16 %v1179, %v1175
    %v1933 = vpack.c.bf16 %v1189, %v1185
    %v1934 = vpack.c.bf16 %v1199, %v1195
    %v1936 = vsel %vm1298, %v1918, 0
    %v1939 = vsel %vm1298, %v1919, 0
    %v1942 = vsel %vm1298, %v1920, 0
    %v1945 = vsel %vm1298, %v1921, 0
    %v1948 = vsel %vm1298, %v1922, 0
    %v1951 = vsel %vm1298, %v1923, 0
    %v1954 = vsel %vm1298, %v1924, 0
    %v1957 = vsel %vm1298, %v1925, 0
    %v1960 = vsel %vm1298, %v1926, 0
    %1962 = vmatprep.subr.bf16.mxu0 0
    %1963 = vmatpush1.bf16.xpose.msra.mxu0 %v1960
    %1964 = vmatprep.subr.bf16.mxu0 0
    %1965 = vmatpush1.bf16.xpose.msra.mxu0 %v1957
    %1966 = vmatprep.subr.bf16.mxu0 0
    %1967 = vmatpush1.bf16.xpose.msra.mxu0 %v1954
    %1968 = vmatprep.subr.bf16.mxu0 0
    %1969 = vmatpush1.bf16.xpose.msra.mxu0 %v1951
    %1970 = vmatprep.subr.bf16.mxu0 0
    %1971 = vmatpush1.bf16.xpose.msra.mxu0 %v1948
    %1972 = vmatprep.subr.bf16.mxu0 0
    %1973 = vmatpush1.bf16.xpose.msra.mxu0 %v1945
    %1974 = vmatprep.subr.bf16.mxu0 0
    %1975 = vmatpush1.bf16.xpose.msra.mxu0 %v1942
    %1976 = vmatprep.subr.bf16.mxu0 0
    %1977 = vmatpush1.bf16.xpose.msra.mxu0 %v1939
    %1978 = vmatprep.subr.bf16.mxu0 0
    %1979 = vmatpush2.bf16.xpose.msra.mxu0 0
    %1980 = vmatprep.subr.bf16.mxu0 0
    %1981 = vmatpush2.bf16.xpose.msra.mxu0 0
    %1982 = vmatprep.subr.bf16.mxu0 0
    %1983 = vmatpush2.bf16.xpose.msra.mxu0 0
    %1984 = vmatprep.subr.bf16.mxu0 0
    %1985 = vmatpush2.bf16.xpose.msra.mxu0 0
    %1986 = vmatprep.subr.bf16.mxu0 0
    %1987 = vmatpush2.bf16.xpose.msra.mxu0 0
    %1988 = vmatprep.subr.bf16.mxu0 0
    %1989 = vmatpush2.bf16.xpose.msra.mxu0 0
    %1990 = vmatprep.subr.bf16.mxu0 0
    %1991 = vmatpush2.bf16.xpose.msra.mxu0 0
    %1992 = vmatprep.subr.bf16.mxu0 0
    %1993 = vmatpush2.bf16.xpose.msra.mxu0 0
    %1994 = vmatprep.mubr.bf16.mxu0 0
    %1995 = vmatmul.mubr.bf16.gmra.mxu0 %v1936
    %v1996 = vpop.f32.mrf.mxu0
    %v1997 = vadd.f32 0.0, %v1996
    %v1998 = vpop.f32.mrf.mxu0
    %v1999 = vpop.f32.mrf.mxu0
    %v2000 = vpop.f32.mrf.mxu0
    %2001 = vdwg.mxu0
    %2002 = vmax.xlane.f32.xlu0 %v1997
    %v2003 = vpop.xlane.xlu0 %2002
    %v2004 = vsub.f32 %v1997, %v2003
    %v2005 = vmul.f32 %v2004, 1.442695
    %v2006 = vpow.pop %v2005
    %2007 = vadd.xlane.f32.xlu0 %v2006
    %v2008 = vpop.xlane.xlu0 %2007
    %v2009 = vrcp.pop %v2008
    %v2010 = vmul.f32 1.0, %v2009
    %v2011 = vmul.f32 %v2006, %v2010
    %v2012 = vadd.f32 %v1852, %v2011
    %v2013 = vpack.c.bf16 %v2011, %v2011
    %2014 = vmatprep.subr.bf16.mxu0 0
    %2015 = vmatpush1.bf16.msra.mxu0 %v1934
    %2016 = vmatprep.subr.bf16.mxu0 0
    %2017 = vmatpush1.bf16.msra.mxu0 %v1933
    %2018 = vmatprep.subr.bf16.mxu0 0
    %2019 = vmatpush1.bf16.msra.mxu0 %v1932
    %2020 = vmatprep.subr.bf16.mxu0 0
    %2021 = vmatpush1.bf16.msra.mxu0 %v1931
    %2022 = vmatprep.subr.bf16.mxu0 0
    %2023 = vmatpush1.bf16.msra.mxu0 %v1930
    %2024 = vmatprep.subr.bf16.mxu0 0
    %2025 = vmatpush1.bf16.msra.mxu0 %v1929
    %2026 = vmatprep.subr.bf16.mxu0 0
    %2027 = vmatpush1.bf16.msra.mxu0 %v1928
    %2028 = vmatprep.subr.bf16.mxu0 0
    %2029 = vmatpush1.bf16.msra.mxu0 %v1927
    %2030 = vmatprep.subr.bf16.mxu0 0
    %2031 = vmatpush2.bf16.msra.mxu0 0
    %2032 = vmatprep.subr.bf16.mxu0 0
    %2033 = vmatpush2.bf16.msra.mxu0 0
    %2034 = vmatprep.subr.bf16.mxu0 0
    %2035 = vmatpush2.bf16.msra.mxu0 0
    %2036 = vmatprep.subr.bf16.mxu0 0
    %2037 = vmatpush2.bf16.msra.mxu0 0
    %2038 = vmatprep.subr.bf16.mxu0 0
    %2039 = vmatpush2.bf16.msra.mxu0 0
    %2040 = vmatprep.subr.bf16.mxu0 0
    %2041 = vmatpush2.bf16.msra.mxu0 0
    %2042 = vmatprep.subr.bf16.mxu0 0
    %2043 = vmatpush2.bf16.msra.mxu0 0
    %2044 = vmatprep.subr.bf16.mxu0 0
    %2045 = vmatpush2.bf16.msra.mxu0 0
    %2046 = vmatprep.mubr.bf16.mxu0 0
    %2047 = vmatmul.mubr.bf16.gmra.mxu0 %v2013
    %v2048 = vpop.f32.mrf.mxu0
    %v2049 = vadd.f32 0.0, %v2048
    %v2050 = vpop.f32.mrf.mxu0
    %v2051 = vpop.f32.mrf.mxu0
    %v2052 = vpop.f32.mrf.mxu0
    %2053 = vdwg.mxu0
    %2055 = vrot.lane.b32.xlu0 %v1918, 96
    %v2056 = vpop.permute.xlu0 %2055
    %2065 = vrot.lane.b32.xlu0 %v1919, 96
    %v2066 = vpop.permute.xlu0 %2065
    %2067 = vrot.lane.b32.xlu0 %v1920, 96
    %v2068 = vpop.permute.xlu0 %2067
    %2069 = vrot.lane.b32.xlu0 %v1921, 96
    %v2070 = vpop.permute.xlu0 %2069
    %2071 = vrot.lane.b32.xlu0 %v1922, 96
    %v2072 = vpop.permute.xlu0 %2071
    %2073 = vrot.lane.b32.xlu0 %v1923, 96
    %v2074 = vpop.permute.xlu0 %2073
    %2075 = vrot.lane.b32.xlu0 %v1924, 96
    %v2076 = vpop.permute.xlu0 %2075
    %2077 = vrot.lane.b32.xlu0 %v1925, 96
    %v2078 = vpop.permute.xlu0 %2077
    %2079 = vrot.lane.b32.xlu0 %v1926, 96
    %v2080 = vpop.permute.xlu0 %2079
    %v2082 = vsel %vm1298, %v2056, 0
    %v2085 = vsel %vm1298, %v2066, 0
    %v2088 = vsel %vm1298, %v2068, 0
    %v2091 = vsel %vm1298, %v2070, 0
    %v2094 = vsel %vm1298, %v2072, 0
    %v2097 = vsel %vm1298, %v2074, 0
    %v2100 = vsel %vm1298, %v2076, 0
    %v2103 = vsel %vm1298, %v2078, 0
    %v2106 = vsel %vm1298, %v2080, 0
    %2108 = vmatprep.subr.bf16.mxu0 0
    %2109 = vmatpush1.bf16.xpose.msra.mxu0 %v2106
    %2110 = vmatprep.subr.bf16.mxu0 0
    %2111 = vmatpush1.bf16.xpose.msra.mxu0 %v2103
    %2112 = vmatprep.subr.bf16.mxu0 0
    %2113 = vmatpush1.bf16.xpose.msra.mxu0 %v2100
    %2114 = vmatprep.subr.bf16.mxu0 0
    %2115 = vmatpush1.bf16.xpose.msra.mxu0 %v2097
    %2116 = vmatprep.subr.bf16.mxu0 0
    %2117 = vmatpush1.bf16.xpose.msra.mxu0 %v2094
    %2118 = vmatprep.subr.bf16.mxu0 0
    %2119 = vmatpush1.bf16.xpose.msra.mxu0 %v2091
    %2120 = vmatprep.subr.bf16.mxu0 0
    %2121 = vmatpush1.bf16.xpose.msra.mxu0 %v2088
    %2122 = vmatprep.subr.bf16.mxu0 0
    %2123 = vmatpush1.bf16.xpose.msra.mxu0 %v2085
    %2124 = vmatprep.subr.bf16.mxu0 0
    %2125 = vmatpush2.bf16.xpose.msra.mxu0 0
    %2126 = vmatprep.subr.bf16.mxu0 0
    %2127 = vmatpush2.bf16.xpose.msra.mxu0 0
    %2128 = vmatprep.subr.bf16.mxu0 0
    %2129 = vmatpush2.bf16.xpose.msra.mxu0 0
    %2130 = vmatprep.subr.bf16.mxu0 0
    %2131 = vmatpush2.bf16.xpose.msra.mxu0 0
    %2132 = vmatprep.subr.bf16.mxu0 0
    %2133 = vmatpush2.bf16.xpose.msra.mxu0 0
    %2134 = vmatprep.subr.bf16.mxu0 0
    %2135 = vmatpush2.bf16.xpose.msra.mxu0 0
    %2136 = vmatprep.subr.bf16.mxu0 0
    %2137 = vmatpush2.bf16.xpose.msra.mxu0 0
    %2138 = vmatprep.subr.bf16.mxu0 0
    %2139 = vmatpush2.bf16.xpose.msra.mxu0 0
    %2140 = vmatprep.mubr.bf16.mxu0 0
    %2141 = vmatmul.mubr.bf16.gmra.mxu0 %v2082
    %v2142 = vpop.f32.mrf.mxu0
    %v2143 = vadd.f32 0.0, %v2142
    %v2144 = vpop.f32.mrf.mxu0
    %v2145 = vpop.f32.mrf.mxu0
    %v2146 = vpop.f32.mrf.mxu0
    %2147 = vdwg.mxu0
    %2148 = vmax.xlane.f32.xlu0 %v2143
    %v2149 = vpop.xlane.xlu0 %2148
    %v2150 = vsub.f32 %v2143, %v2149
    %v2151 = vmul.f32 %v2150, 1.442695
    %v2152 = vpow.pop %v2151
    %2153 = vadd.xlane.f32.xlu0 %v2152
    %v2154 = vpop.xlane.xlu0 %2153
    %v2155 = vrcp.pop %v2154
    %v2156 = vmul.f32 1.0, %v2155
    %v2157 = vmul.f32 %v2152, %v2156
    %v2158 = vadd.f32 %v2012, %v2157
    %v2159 = vpack.c.bf16 %v2157, %v2157
    %2168 = vrot.lane.b32.xlu0 %v1927, 96
    %v2169 = vpop.permute.xlu0 %2168
    %2170 = vrot.lane.b32.xlu0 %v1928, 96
    %v2171 = vpop.permute.xlu0 %2170
    %2172 = vrot.lane.b32.xlu0 %v1929, 96
    %v2173 = vpop.permute.xlu0 %2172
    %2174 = vrot.lane.b32.xlu0 %v1930, 96
    %v2175 = vpop.permute.xlu0 %2174
    %2176 = vrot.lane.b32.xlu0 %v1931, 96
    %v2177 = vpop.permute.xlu0 %2176
    %2178 = vrot.lane.b32.xlu0 %v1932, 96
    %v2179 = vpop.permute.xlu0 %2178
    %2180 = vrot.lane.b32.xlu0 %v1933, 96
    %v2181 = vpop.permute.xlu0 %2180
    %2182 = vrot.lane.b32.xlu0 %v1934, 96
    %v2183 = vpop.permute.xlu0 %2182
    %2192 = vmatprep.subr.bf16.mxu0 0
    %2193 = vmatpush1.bf16.msra.mxu0 %v2183
    %2194 = vmatprep.subr.bf16.mxu0 0
    %2195 = vmatpush1.bf16.msra.mxu0 %v2181
    %2196 = vmatprep.subr.bf16.mxu0 0
    %2197 = vmatpush1.bf16.msra.mxu0 %v2179
    %2198 = vmatprep.subr.bf16.mxu0 0
    %2199 = vmatpush1.bf16.msra.mxu0 %v2177
    %2200 = vmatprep.subr.bf16.mxu0 0
    %2201 = vmatpush1.bf16.msra.mxu0 %v2175
    %2202 = vmatprep.subr.bf16.mxu0 0
    %2203 = vmatpush1.bf16.msra.mxu0 %v2173
    %2204 = vmatprep.subr.bf16.mxu0 0
    %2205 = vmatpush1.bf16.msra.mxu0 %v2171
    %2206 = vmatprep.subr.bf16.mxu0 0
    %2207 = vmatpush1.bf16.msra.mxu0 %v2169
    %2208 = vmatprep.subr.bf16.mxu0 0
    %2209 = vmatpush2.bf16.msra.mxu0 0
    %2210 = vmatprep.subr.bf16.mxu0 0
    %2211 = vmatpush2.bf16.msra.mxu0 0
    %2212 = vmatprep.subr.bf16.mxu0 0
    %2213 = vmatpush2.bf16.msra.mxu0 0
    %2214 = vmatprep.subr.bf16.mxu0 0
    %2215 = vmatpush2.bf16.msra.mxu0 0
    %2216 = vmatprep.subr.bf16.mxu0 0
    %2217 = vmatpush2.bf16.msra.mxu0 0
    %2218 = vmatprep.subr.bf16.mxu0 0
    %2219 = vmatpush2.bf16.msra.mxu0 0
    %2220 = vmatprep.subr.bf16.mxu0 0
    %2221 = vmatpush2.bf16.msra.mxu0 0
    %2222 = vmatprep.subr.bf16.mxu0 0
    %2223 = vmatpush2.bf16.msra.mxu0 0
    %2224 = vmatprep.mubr.bf16.mxu0 0
    %2225 = vmatmul.mubr.bf16.gmra.mxu0 %v2159
    %v2226 = vpop.f32.mrf.mxu0
    %v2227 = vadd.f32 0.0, %v2226
    %v2228 = vpop.f32.mrf.mxu0
    %v2229 = vpop.f32.mrf.mxu0
    %v2230 = vpop.f32.mrf.mxu0
    %2231 = vdwg.mxu0
    %2232 = vrot.lane.b32.xlu0 %v1918, 64
    %v2233 = vpop.permute.xlu0 %2232
    %2234 = vrot.lane.b32.xlu0 %v1919, 64
    %v2235 = vpop.permute.xlu0 %2234
    %2236 = vrot.lane.b32.xlu0 %v1920, 64
    %v2237 = vpop.permute.xlu0 %2236
    %2238 = vrot.lane.b32.xlu0 %v1921, 64
    %v2239 = vpop.permute.xlu0 %2238
    %2240 = vrot.lane.b32.xlu0 %v1922, 64
    %v2241 = vpop.permute.xlu0 %2240
    %2242 = vrot.lane.b32.xlu0 %v1923, 64
    %v2243 = vpop.permute.xlu0 %2242
    %2244 = vrot.lane.b32.xlu0 %v1924, 64
    %v2245 = vpop.permute.xlu0 %2244
    %2246 = vrot.lane.b32.xlu0 %v1925, 64
    %v2247 = vpop.permute.xlu0 %2246
    %2248 = vrot.lane.b32.xlu0 %v1926, 64
    %v2249 = vpop.permute.xlu0 %2248
    %v2251 = vsel %vm1298, %v2233, 0
    %v2254 = vsel %vm1298, %v2235, 0
    %v2257 = vsel %vm1298, %v2237, 0
    %v2260 = vsel %vm1298, %v2239, 0
    %v2263 = vsel %vm1298, %v2241, 0
    %v2266 = vsel %vm1298, %v2243, 0
    %v2269 = vsel %vm1298, %v2245, 0
    %v2272 = vsel %vm1298, %v2247, 0
    %v2275 = vsel %vm1298, %v2249, 0
    %2277 = vmatprep.subr.bf16.mxu0 0
    %2278 = vmatpush1.bf16.xpose.msra.mxu0 %v2275
    %2279 = vmatprep.subr.bf16.mxu0 0
    %2280 = vmatpush1.bf16.xpose.msra.mxu0 %v2272
    %2281 = vmatprep.subr.bf16.mxu0 0
    %2282 = vmatpush1.bf16.xpose.msra.mxu0 %v2269
    %2283 = vmatprep.subr.bf16.mxu0 0
    %2284 = vmatpush1.bf16.xpose.msra.mxu0 %v2266
    %2285 = vmatprep.subr.bf16.mxu0 0
    %2286 = vmatpush1.bf16.xpose.msra.mxu0 %v2263
    %2287 = vmatprep.subr.bf16.mxu0 0
    %2288 = vmatpush1.bf16.xpose.msra.mxu0 %v2260
    %2289 = vmatprep.subr.bf16.mxu0 0
    %2290 = vmatpush1.bf16.xpose.msra.mxu0 %v2257
    %2291 = vmatprep.subr.bf16.mxu0 0
    %2292 = vmatpush1.bf16.xpose.msra.mxu0 %v2254
    %2293 = vmatprep.subr.bf16.mxu0 0
    %2294 = vmatpush2.bf16.xpose.msra.mxu0 0
    %2295 = vmatprep.subr.bf16.mxu0 0
    %2296 = vmatpush2.bf16.xpose.msra.mxu0 0
    %2297 = vmatprep.subr.bf16.mxu0 0
    %2298 = vmatpush2.bf16.xpose.msra.mxu0 0
    %2299 = vmatprep.subr.bf16.mxu0 0
    %2300 = vmatpush2.bf16.xpose.msra.mxu0 0
    %2301 = vmatprep.subr.bf16.mxu0 0
    %2302 = vmatpush2.bf16.xpose.msra.mxu0 0
    %2303 = vmatprep.subr.bf16.mxu0 0
    %2304 = vmatpush2.bf16.xpose.msra.mxu0 0
    %2305 = vmatprep.subr.bf16.mxu0 0
    %2306 = vmatpush2.bf16.xpose.msra.mxu0 0
    %2307 = vmatprep.subr.bf16.mxu0 0
    %2308 = vmatpush2.bf16.xpose.msra.mxu0 0
    %2309 = vmatprep.mubr.bf16.mxu0 0
    %2310 = vmatmul.mubr.bf16.gmra.mxu0 %v2251
    %v2311 = vpop.f32.mrf.mxu0
    %v2312 = vadd.f32 0.0, %v2311
    %v2313 = vpop.f32.mrf.mxu0
    %v2314 = vpop.f32.mrf.mxu0
    %v2315 = vpop.f32.mrf.mxu0
    %2316 = vdwg.mxu0
    %2317 = vmax.xlane.f32.xlu0 %v2312
    %v2318 = vpop.xlane.xlu0 %2317
    %v2319 = vsub.f32 %v2312, %v2318
    %v2320 = vmul.f32 %v2319, 1.442695
    %v2321 = vpow.pop %v2320
    %2322 = vadd.xlane.f32.xlu0 %v2321
    %v2323 = vpop.xlane.xlu0 %2322
    %v2324 = vrcp.pop %v2323
    %v2325 = vmul.f32 1.0, %v2324
    %v2326 = vmul.f32 %v2321, %v2325
    %v2327 = vadd.f32 %v2158, %v2326
    %v2328 = vpack.c.bf16 %v2326, %v2326
    %2329 = vrot.lane.b32.xlu0 %v1927, 64
    %v2330 = vpop.permute.xlu0 %2329
    %2331 = vrot.lane.b32.xlu0 %v1928, 64
    %v2332 = vpop.permute.xlu0 %2331
    %2333 = vrot.lane.b32.xlu0 %v1929, 64
    %v2334 = vpop.permute.xlu0 %2333
    %2335 = vrot.lane.b32.xlu0 %v1930, 64
    %v2336 = vpop.permute.xlu0 %2335
    %2337 = vrot.lane.b32.xlu0 %v1931, 64
    %v2338 = vpop.permute.xlu0 %2337
    %2339 = vrot.lane.b32.xlu0 %v1932, 64
    %v2340 = vpop.permute.xlu0 %2339
    %2341 = vrot.lane.b32.xlu0 %v1933, 64
    %v2342 = vpop.permute.xlu0 %2341
    %2343 = vrot.lane.b32.xlu0 %v1934, 64
    %v2344 = vpop.permute.xlu0 %2343
    %2353 = vmatprep.subr.bf16.mxu0 0
    %2354 = vmatpush1.bf16.msra.mxu0 %v2344
    %2355 = vmatprep.subr.bf16.mxu0 0
    %2356 = vmatpush1.bf16.msra.mxu0 %v2342
    %2357 = vmatprep.subr.bf16.mxu0 0
    %2358 = vmatpush1.bf16.msra.mxu0 %v2340
    %2359 = vmatprep.subr.bf16.mxu0 0
    %2360 = vmatpush1.bf16.msra.mxu0 %v2338
    %2361 = vmatprep.subr.bf16.mxu0 0
    %2362 = vmatpush1.bf16.msra.mxu0 %v2336
    %2363 = vmatprep.subr.bf16.mxu0 0
    %2364 = vmatpush1.bf16.msra.mxu0 %v2334
    %2365 = vmatprep.subr.bf16.mxu0 0
    %2366 = vmatpush1.bf16.msra.mxu0 %v2332
    %2367 = vmatprep.subr.bf16.mxu0 0
    %2368 = vmatpush1.bf16.msra.mxu0 %v2330
    %2369 = vmatprep.subr.bf16.mxu0 0
    %2370 = vmatpush2.bf16.msra.mxu0 0
    %2371 = vmatprep.subr.bf16.mxu0 0
    %2372 = vmatpush2.bf16.msra.mxu0 0
    %2373 = vmatprep.subr.bf16.mxu0 0
    %2374 = vmatpush2.bf16.msra.mxu0 0
    %2375 = vmatprep.subr.bf16.mxu0 0
    %2376 = vmatpush2.bf16.msra.mxu0 0
    %2377 = vmatprep.subr.bf16.mxu0 0
    %2378 = vmatpush2.bf16.msra.mxu0 0
    %2379 = vmatprep.subr.bf16.mxu0 0
    %2380 = vmatpush2.bf16.msra.mxu0 0
    %2381 = vmatprep.subr.bf16.mxu0 0
    %2382 = vmatpush2.bf16.msra.mxu0 0
    %2383 = vmatprep.subr.bf16.mxu0 0
    %2384 = vmatpush2.bf16.msra.mxu0 0
    %2385 = vmatprep.mubr.bf16.mxu0 0
    %2386 = vmatmul.mubr.bf16.gmra.mxu0 %v2328
    %v2387 = vpop.f32.mrf.mxu0
    %v2388 = vadd.f32 0.0, %v2387
    %v2389 = vpop.f32.mrf.mxu0
    %v2390 = vpop.f32.mrf.mxu0
    %v2391 = vpop.f32.mrf.mxu0
    %2392 = vdwg.mxu0
    %2393 = vrot.lane.b32.xlu0 %v1918, 32
    %v2394 = vpop.permute.xlu0 %2393
    %2395 = vrot.lane.b32.xlu0 %v1919, 32
    %v2396 = vpop.permute.xlu0 %2395
    %2397 = vrot.lane.b32.xlu0 %v1920, 32
    %v2398 = vpop.permute.xlu0 %2397
    %2399 = vrot.lane.b32.xlu0 %v1921, 32
    %v2400 = vpop.permute.xlu0 %2399
    %2401 = vrot.lane.b32.xlu0 %v1922, 32
    %v2402 = vpop.permute.xlu0 %2401
    %2403 = vrot.lane.b32.xlu0 %v1923, 32
    %v2404 = vpop.permute.xlu0 %2403
    %2405 = vrot.lane.b32.xlu0 %v1924, 32
    %v2406 = vpop.permute.xlu0 %2405
    %2407 = vrot.lane.b32.xlu0 %v1925, 32
    %v2408 = vpop.permute.xlu0 %2407
    %2409 = vrot.lane.b32.xlu0 %v1926, 32
    %v2410 = vpop.permute.xlu0 %2409
    %v2412 = vsel %vm1298, %v2394, 0
    %v2415 = vsel %vm1298, %v2396, 0
    %v2418 = vsel %vm1298, %v2398, 0
    %v2421 = vsel %vm1298, %v2400, 0
    %v2424 = vsel %vm1298, %v2402, 0
    %v2427 = vsel %vm1298, %v2404, 0
    %v2430 = vsel %vm1298, %v2406, 0
    %v2433 = vsel %vm1298, %v2408, 0
    %v2436 = vsel %vm1298, %v2410, 0
    %2438 = vmatprep.subr.bf16.mxu0 0
    %2439 = vmatpush1.bf16.xpose.msra.mxu0 %v2436
    %2440 = vmatprep.subr.bf16.mxu0 0
    %2441 = vmatpush1.bf16.xpose.msra.mxu0 %v2433
    %2442 = vmatprep.subr.bf16.mxu0 0
    %2443 = vmatpush1.bf16.xpose.msra.mxu0 %v2430
    %2444 = vmatprep.subr.bf16.mxu0 0
    %2445 = vmatpush1.bf16.xpose.msra.mxu0 %v2427
    %2446 = vmatprep.subr.bf16.mxu0 0
    %2447 = vmatpush1.bf16.xpose.msra.mxu0 %v2424
    %2448 = vmatprep.subr.bf16.mxu0 0
    %2449 = vmatpush1.bf16.xpose.msra.mxu0 %v2421
    %2450 = vmatprep.subr.bf16.mxu0 0
    %2451 = vmatpush1.bf16.xpose.msra.mxu0 %v2418
    %2452 = vmatprep.subr.bf16.mxu0 0
    %2453 = vmatpush1.bf16.xpose.msra.mxu0 %v2415
    %2454 = vmatprep.subr.bf16.mxu0 0
    %2455 = vmatpush2.bf16.xpose.msra.mxu0 0
    %2456 = vmatprep.subr.bf16.mxu0 0
    %2457 = vmatpush2.bf16.xpose.msra.mxu0 0
    %2458 = vmatprep.subr.bf16.mxu0 0
    %2459 = vmatpush2.bf16.xpose.msra.mxu0 0
    %2460 = vmatprep.subr.bf16.mxu0 0
    %2461 = vmatpush2.bf16.xpose.msra.mxu0 0
    %2462 = vmatprep.subr.bf16.mxu0 0
    %2463 = vmatpush2.bf16.xpose.msra.mxu0 0
    %2464 = vmatprep.subr.bf16.mxu0 0
    %2465 = vmatpush2.bf16.xpose.msra.mxu0 0
    %2466 = vmatprep.subr.bf16.mxu0 0
    %2467 = vmatpush2.bf16.xpose.msra.mxu0 0
    %2468 = vmatprep.subr.bf16.mxu0 0
    %2469 = vmatpush2.bf16.xpose.msra.mxu0 0
    %2470 = vmatprep.mubr.bf16.mxu0 0
    %2471 = vmatmul.mubr.bf16.gmra.mxu0 %v2412
    %v2472 = vpop.f32.mrf.mxu0
    %v2473 = vadd.f32 0.0, %v2472
    %v2474 = vpop.f32.mrf.mxu0
    %v2475 = vpop.f32.mrf.mxu0
    %v2476 = vpop.f32.mrf.mxu0
    %2477 = vdwg.mxu0
    %2478 = vmax.xlane.f32.xlu0 %v2473
    %v2479 = vpop.xlane.xlu0 %2478
    %v2480 = vsub.f32 %v2473, %v2479
    %v2481 = vmul.f32 %v2480, 1.442695
    %v2482 = vpow.pop %v2481
    %2483 = vadd.xlane.f32.xlu0 %v2482
    %v2484 = vpop.xlane.xlu0 %2483
    %v2485 = vrcp.pop %v2484
    %v2486 = vmul.f32 1.0, %v2485
    %v2487 = vmul.f32 %v2482, %v2486
    %v2488 = vadd.f32 %v2327, %v2487
    %v2489 = vpack.c.bf16 %v2487, %v2487
    %2490 = vrot.lane.b32.xlu0 %v1927, 32
    %v2491 = vpop.permute.xlu0 %2490
    %2492 = vrot.lane.b32.xlu0 %v1928, 32
    %v2493 = vpop.permute.xlu0 %2492
    %2494 = vrot.lane.b32.xlu0 %v1929, 32
    %v2495 = vpop.permute.xlu0 %2494
    %2496 = vrot.lane.b32.xlu0 %v1930, 32
    %v2497 = vpop.permute.xlu0 %2496
    %2498 = vrot.lane.b32.xlu0 %v1931, 32
    %v2499 = vpop.permute.xlu0 %2498
    %2500 = vrot.lane.b32.xlu0 %v1932, 32
    %v2501 = vpop.permute.xlu0 %2500
    %2502 = vrot.lane.b32.xlu0 %v1933, 32
    %v2503 = vpop.permute.xlu0 %2502
    %2504 = vrot.lane.b32.xlu0 %v1934, 32
    %v2505 = vpop.permute.xlu0 %2504
    %2514 = vmatprep.subr.bf16.mxu0 0
    %2515 = vmatpush1.bf16.msra.mxu0 %v2505
    %2516 = vmatprep.subr.bf16.mxu0 0
    %2517 = vmatpush1.bf16.msra.mxu0 %v2503
    %2518 = vmatprep.subr.bf16.mxu0 0
    %2519 = vmatpush1.bf16.msra.mxu0 %v2501
    %2520 = vmatprep.subr.bf16.mxu0 0
    %2521 = vmatpush1.bf16.msra.mxu0 %v2499
    %2522 = vmatprep.subr.bf16.mxu0 0
    %2523 = vmatpush1.bf16.msra.mxu0 %v2497
    %2524 = vmatprep.subr.bf16.mxu0 0
    %2525 = vmatpush1.bf16.msra.mxu0 %v2495
    %2526 = vmatprep.subr.bf16.mxu0 0
    %2527 = vmatpush1.bf16.msra.mxu0 %v2493
    %2528 = vmatprep.subr.bf16.mxu0 0
    %2529 = vmatpush1.bf16.msra.mxu0 %v2491
    %2530 = vmatprep.subr.bf16.mxu0 0
    %2531 = vmatpush2.bf16.msra.mxu0 0
    %2532 = vmatprep.subr.bf16.mxu0 0
    %2533 = vmatpush2.bf16.msra.mxu0 0
    %2534 = vmatprep.subr.bf16.mxu0 0
    %2535 = vmatpush2.bf16.msra.mxu0 0
    %2536 = vmatprep.subr.bf16.mxu0 0
    %2537 = vmatpush2.bf16.msra.mxu0 0
    %2538 = vmatprep.subr.bf16.mxu0 0
    %2539 = vmatpush2.bf16.msra.mxu0 0
    %2540 = vmatprep.subr.bf16.mxu0 0
    %2541 = vmatpush2.bf16.msra.mxu0 0
    %2542 = vmatprep.subr.bf16.mxu0 0
    %2543 = vmatpush2.bf16.msra.mxu0 0
    %2544 = vmatprep.subr.bf16.mxu0 0
    %2545 = vmatpush2.bf16.msra.mxu0 0
    %2546 = vmatprep.mubr.bf16.mxu0 0
    %2547 = vmatmul.mubr.bf16.gmra.mxu0 %v2489
    %v2548 = vpop.f32.mrf.mxu0
    %v2549 = vadd.f32 0.0, %v2548
    %v2550 = vpop.f32.mrf.mxu0
    %v2551 = vpop.f32.mrf.mxu0
    %v2552 = vpop.f32.mrf.mxu0
    %2553 = vdwg.mxu0
    %2555 = vrot.lane.b32.xlu0 %v1591, 32
    %v2556 = vpop.permute.xlu0 %2555
    %2559 = vrot.lane.b32.xlu0 %v1752, 64
    %v2560 = vpop.permute.xlu0 %2559
    %2563 = vrot.lane.b32.xlu0 %v1913, 96
    %v2564 = vpop.permute.xlu0 %2563
    %2567 = vrot.lane.b32.xlu0 %v2227, 32
    %v2568 = vpop.permute.xlu0 %2567
    %2571 = vrot.lane.b32.xlu0 %v2388, 64
    %v2572 = vpop.permute.xlu0 %2571
    %2575 = vrot.lane.b32.xlu0 %v2549, 96
    %v2576 = vpop.permute.xlu0 %2575
    %v2578 = vsel %vm1298, %v1413, %v2556
    %vm2579 = vcmask 523264
    %v2580 = vsel %vm2579, %v2578, %v2560
    %vm2581 = vcmask 785408
    %v2582 = vsel %vm2581, %v2580, %v2564
    %v2583 = vsel %vm1298, %v2049, %v2568
    %v2584 = vsel %vm2579, %v2583, %v2572
    %v2585 = vsel %vm2581, %v2584, %v2576
    %v2586 = vpack.c.bf16 %v2582, %v2582
    %v2587 = vpack.c.bf16 %v2585, %v2585
    %v2588 = vld [vmem:[%s6] sm:$0xff]
    %v2589 = vld [vmem:[%s6 + $0x8] sm:$0xff]
    %v2590 = vld [vmem:[%s6 + $0x10] sm:$0xff]
    %v2591 = vld [vmem:[%s6 + $0x18] sm:$0xff]
    %v2592 = vld [vmem:[%s6 + $0x20] sm:$0xff]
    %v2593 = vld [vmem:[%s6 + $0x28] sm:$0xff]
    %v2594 = vld [vmem:[%s6 + $0x30] sm:$0xff]
    %v2595 = vld [vmem:[%s6 + $0x38] sm:$0xff]
    %v2596 = vld [vmem:[%s6 + $0x40] sm:$0xff]
    %v2597 = vld [vmem:[%s6 + $0x48] sm:$0xff]
    %v2598 = vld [vmem:[%s6 + $0x50] sm:$0xff]
    %v2599 = vld [vmem:[%s6 + $0x58] sm:$0xff]
    %v2600 = vld [vmem:[%s6 + $0x60] sm:$0xff]
    %v2601 = vld [vmem:[%s6 + $0x68] sm:$0xff]
    %v2602 = vld [vmem:[%s6 + $0x70] sm:$0xff]
    %v2603 = vld [vmem:[%s6 + $0x78] sm:$0xff]
    %v2604 = vld [vmem:[%s6 + $0x80] sm:$0xff]
    %v2605 = vld [vmem:[%s6 + $0x88] sm:$0xff]
    %v2606 = vld [vmem:[%s6 + $0x90] sm:$0xff]
    %v2607 = vld [vmem:[%s6 + $0x98] sm:$0xff]
    %v2608 = vld [vmem:[%s6 + $0xa0] sm:$0xff]
    %v2609 = vld [vmem:[%s6 + $0xa8] sm:$0xff]
    %v2610 = vld [vmem:[%s6 + $0xb0] sm:$0xff]
    %v2611 = vld [vmem:[%s6 + $0xb8] sm:$0xff]
    %v2612 = vld [vmem:[%s6 + $0xc0] sm:$0xff]
    %v2613 = vld [vmem:[%s6 + $0xc8] sm:$0xff]
    %v2614 = vld [vmem:[%s6 + $0xd0] sm:$0xff]
    %v2615 = vld [vmem:[%s6 + $0xd8] sm:$0xff]
    %v2616 = vld [vmem:[%s6 + $0xe0] sm:$0xff]
    %v2617 = vld [vmem:[%s6 + $0xe8] sm:$0xff]
    %v2618 = vld [vmem:[%s6 + $0xf0] sm:$0xff]
    %v2619 = vld [vmem:[%s6 + $0xf8] sm:$0xff]
    %v2621 = vlaneseq
    %v2622 = vshrl.u32 %v2621, 7
    %v2623 = vsub.s32 0, %v2622
    %v2624 = vrot.slane %v40, %v2623
    %v2625 = vlaneseq
    %v2626 = vshrl.u32 %v2625, 7
    %v2627 = vsub.s32 1, %v2626
    %v2628 = vrot.slane %v40, %v2627
    %v2663 = vunpack.c.l.b16 %v2588
    %v2664 = vunpack.c.h.b16 %v2588
    %v2665 = vunpack.c.l.b16 %v2589
    %v2666 = vunpack.c.h.b16 %v2589
    %v2667 = vunpack.c.l.b16 %v2590
    %v2668 = vunpack.c.h.b16 %v2590
    %v2669 = vunpack.c.l.b16 %v2591
    %v2670 = vunpack.c.h.b16 %v2591
    %v2671 = vunpack.c.l.b16 %v2592
    %v2672 = vunpack.c.h.b16 %v2592
    %v2673 = vunpack.c.l.b16 %v2593
    %v2674 = vunpack.c.h.b16 %v2593
    %v2675 = vunpack.c.l.b16 %v2594
    %v2676 = vunpack.c.h.b16 %v2594
    %v2677 = vunpack.c.l.b16 %v2595
    %v2678 = vunpack.c.h.b16 %v2595
    %v2679 = vunpack.c.l.b16 %v2596
    %v2680 = vunpack.c.h.b16 %v2596
    %v2681 = vunpack.c.l.b16 %v2597
    %v2682 = vunpack.c.h.b16 %v2597
    %v2683 = vunpack.c.l.b16 %v2598
    %v2684 = vunpack.c.h.b16 %v2598
    %v2685 = vunpack.c.l.b16 %v2599
    %v2686 = vunpack.c.h.b16 %v2599
    %v2687 = vunpack.c.l.b16 %v2600
    %v2688 = vunpack.c.h.b16 %v2600
    %v2689 = vunpack.c.l.b16 %v2601
    %v2690 = vunpack.c.h.b16 %v2601
    %v2691 = vunpack.c.l.b16 %v2602
    %v2692 = vunpack.c.h.b16 %v2602
    %v2693 = vunpack.c.l.b16 %v2603
    %v2694 = vunpack.c.h.b16 %v2603
    %v2695 = vunpack.c.l.b16 %v2604
    %v2696 = vunpack.c.h.b16 %v2604
    %v2697 = vunpack.c.l.b16 %v2605
    %v2698 = vunpack.c.h.b16 %v2605
    %v2699 = vunpack.c.l.b16 %v2606
    %v2700 = vunpack.c.h.b16 %v2606
    %v2701 = vunpack.c.l.b16 %v2607
    %v2702 = vunpack.c.h.b16 %v2607
    %v2703 = vunpack.c.l.b16 %v2608
    %v2704 = vunpack.c.h.b16 %v2608
    %v2705 = vunpack.c.l.b16 %v2609
    %v2706 = vunpack.c.h.b16 %v2609
    %v2707 = vunpack.c.l.b16 %v2610
    %v2708 = vunpack.c.h.b16 %v2610
    %v2709 = vunpack.c.l.b16 %v2611
    %v2710 = vunpack.c.h.b16 %v2611
    %v2711 = vunpack.c.l.b16 %v2612
    %v2712 = vunpack.c.h.b16 %v2612
    %v2713 = vunpack.c.l.b16 %v2613
    %v2714 = vunpack.c.h.b16 %v2613
    %v2715 = vunpack.c.l.b16 %v2614
    %v2716 = vunpack.c.h.b16 %v2614
    %v2717 = vunpack.c.l.b16 %v2615
    %v2718 = vunpack.c.h.b16 %v2615
    %v2719 = vunpack.c.l.b16 %v2616
    %v2720 = vunpack.c.h.b16 %v2616
    %v2721 = vunpack.c.l.b16 %v2617
    %v2722 = vunpack.c.h.b16 %v2617
    %v2723 = vunpack.c.l.b16 %v2618
    %v2724 = vunpack.c.h.b16 %v2618
    %v2725 = vunpack.c.l.b16 %v2619
    %v2726 = vunpack.c.h.b16 %v2619
    %v2727 = vpack.c.b16 %v2665, %v2663
    %v2728 = vpack.c.b16 %v2666, %v2664
    %v2729 = vpack.c.b16 %v2669, %v2667
    %v2730 = vpack.c.b16 %v2670, %v2668
    %v2731 = vpack.c.b16 %v2673, %v2671
    %v2732 = vpack.c.b16 %v2674, %v2672
    %v2733 = vpack.c.b16 %v2677, %v2675
    %v2734 = vpack.c.b16 %v2678, %v2676
    %v2735 = vpack.c.b16 %v2681, %v2679
    %v2736 = vpack.c.b16 %v2682, %v2680
    %v2737 = vpack.c.b16 %v2685, %v2683
    %v2738 = vpack.c.b16 %v2686, %v2684
    %v2739 = vpack.c.b16 %v2689, %v2687
    %v2740 = vpack.c.b16 %v2690, %v2688
    %v2741 = vpack.c.b16 %v2693, %v2691
    %v2742 = vpack.c.b16 %v2694, %v2692
    %v2743 = vpack.c.b16 %v2697, %v2695
    %v2744 = vpack.c.b16 %v2698, %v2696
    %v2745 = vpack.c.b16 %v2701, %v2699
    %v2746 = vpack.c.b16 %v2702, %v2700
    %v2747 = vpack.c.b16 %v2705, %v2703
    %v2748 = vpack.c.b16 %v2706, %v2704
    %v2749 = vpack.c.b16 %v2709, %v2707
    %v2750 = vpack.c.b16 %v2710, %v2708
    %v2751 = vpack.c.b16 %v2713, %v2711
    %v2752 = vpack.c.b16 %v2714, %v2712
    %v2753 = vpack.c.b16 %v2717, %v2715
    %v2754 = vpack.c.b16 %v2718, %v2716
    %v2755 = vpack.c.b16 %v2721, %v2719
    %v2756 = vpack.c.b16 %v2722, %v2720
    %v2757 = vpack.c.b16 %v2725, %v2723
    %v2758 = vpack.c.b16 %v2726, %v2724
    %2791 = vmatprep.subr.bf16.mxu0 %v2742
    %2792 = vmatpush1.bf16.msra.mxu0 %v2741
    %2793 = vmatprep.subr.bf16.mxu0 %v2740
    %2794 = vmatpush1.bf16.msra.mxu0 %v2739
    %2795 = vmatprep.subr.bf16.mxu0 %v2738
    %2796 = vmatpush1.bf16.msra.mxu0 %v2737
    %2797 = vmatprep.subr.bf16.mxu0 %v2736
    %2798 = vmatpush1.bf16.msra.mxu0 %v2735
    %2799 = vmatprep.subr.bf16.mxu0 %v2734
    %2800 = vmatpush1.bf16.msra.mxu0 %v2733
    %2801 = vmatprep.subr.bf16.mxu0 %v2732
    %2802 = vmatpush1.bf16.msra.mxu0 %v2731
    %2803 = vmatprep.subr.bf16.mxu0 %v2730
    %2804 = vmatpush1.bf16.msra.mxu0 %v2729
    %2805 = vmatprep.subr.bf16.mxu0 %v2728
    %2806 = vmatpush1.bf16.msra.mxu0 %v2727
    %2807 = vmatprep.subr.bf16.mxu0 %v2758
    %2808 = vmatpush2.bf16.msra.mxu0 %v2757
    %2809 = vmatprep.subr.bf16.mxu0 %v2756
    %2810 = vmatpush2.bf16.msra.mxu0 %v2755
    %2811 = vmatprep.subr.bf16.mxu0 %v2754
    %2812 = vmatpush2.bf16.msra.mxu0 %v2753
    %2813 = vmatprep.subr.bf16.mxu0 %v2752
    %2814 = vmatpush2.bf16.msra.mxu0 %v2751
    %2815 = vmatprep.subr.bf16.mxu0 %v2750
    %2816 = vmatpush2.bf16.msra.mxu0 %v2749
    %2817 = vmatprep.subr.bf16.mxu0 %v2748
    %2818 = vmatpush2.bf16.msra.mxu0 %v2747
    %2819 = vmatprep.subr.bf16.mxu0 %v2746
    %2820 = vmatpush2.bf16.msra.mxu0 %v2745
    %2821 = vmatprep.subr.bf16.mxu0 %v2744
    %2822 = vmatpush2.bf16.msra.mxu0 %v2743
    %2823 = vmatprep.mubr.bf16.mxu0 %v2587
    %2824 = vmatmul.mubr.bf16.gmra.mxu0 %v2586
    %v2825 = vpop.f32.mrf.mxu0
    %v2826 = vadd.f32 %v2624, %v2825
    %v2827 = vpop.f32.mrf.mxu0
    %v2828 = vadd.f32 %v2628, %v2827
    %v2829 = vpop.f32.mrf.mxu0
    %v2830 = vpop.f32.mrf.mxu0
    %2831 = vdwg.mxu0
    %v2832 = vadd.f32 %v2826, %v45
    %v2833 = vadd.f32 %v2828, %v46
    %v2834 = vadd.f32 %v2832, %v2833
    %2835 = vadd.xlane.f32.xlu0 %v2834
    %v2836 = vpop.xlane.xlu0 %2835
    %v2837 = vrcp.pop 256.0
    %v2838 = vmul.f32 %v2836, %v2837
    %v2839 = vsub.f32 %v2832, %v2838
    %v2840 = vsub.f32 %v2833, %v2838
    %v2841 = vmul.f32 %v2839, %v2839
    %v2842 = vmul.f32 %v2840, %v2840
    %v2843 = vadd.f32 %v2841, %v2842
    %2844 = vadd.xlane.f32.xlu0 %v2843
    %v2845 = vpop.xlane.xlu0 %2844
    %v2846 = vmul.f32 %v2845, %v2837
    %v2847 = vadd.f32 %v2846, 1e-05
    %v2848 = vrsqrt.pop %v2847
    %v2849 = vmul.f32 %v2839, %v2848
    %v2850 = vmul.f32 %v2840, %v2848
    %v2852 = vlaneseq
    %v2853 = vshrl.u32 %v2852, 7
    %v2854 = vsub.s32 0, %v2853
    %v2855 = vrot.slane %v42, %v2854
    %v2856 = vlaneseq
    %v2857 = vshrl.u32 %v2856, 7
    %v2858 = vsub.s32 1, %v2857
    %v2859 = vrot.slane %v42, %v2858
    %v2862 = vmul.f32 %v2849, %v2855
    %v2863 = vmul.f32 %v2850, %v2859
    %v2865 = vlaneseq
    %v2866 = vshrl.u32 %v2865, 7
    %v2867 = vsub.s32 0, %v2866
    %v2868 = vrot.slane %v44, %v2867
    %v2869 = vlaneseq
    %v2870 = vshrl.u32 %v2869, 7
    %v2871 = vsub.s32 1, %v2870
    %v2872 = vrot.slane %v44, %v2871
    %v2875 = vadd.f32 %v2862, %v2868
    %v2876 = vadd.f32 %v2863, %v2872
    %2877 = vst [vmem:[#allocation2] sm:$0xff] %v2875
    %2878 = vst [vmem:[#allocation2 + $0x8] sm:$0xff] %v2876
    %v2879 = vmul.f32 %v2488, 0.125
    %2880 = vst [vmem:[#allocation4] sm:$0xff] %v2879
    %v2881 = vpack.c.bf16 %v293, %v293
    %v2882 = vpack.c.bf16 %v715, %v711
    %v2883 = vpack.c.bf16 %v725, %v721
    %v2884 = vpack.c.bf16 %v735, %v731
    %v2885 = vpack.c.bf16 %v745, %v741
    %v2886 = vpack.c.bf16 %v755, %v751
    %v2887 = vpack.c.bf16 %v765, %v761
    %v2888 = vpack.c.bf16 %v775, %v771
    %v2889 = vpack.c.bf16 %v785, %v781
    %v2890 = vpack.c.bf16 %v1207, %v1203
    %v2891 = vpack.c.bf16 %v1217, %v1213
    %v2892 = vpack.c.bf16 %v1227, %v1223
    %v2893 = vpack.c.bf16 %v1237, %v1233
    %v2894 = vpack.c.bf16 %v1247, %v1243
    %v2895 = vpack.c.bf16 %v1257, %v1253
    %v2896 = vpack.c.bf16 %v1267, %v1263
    %v2897 = vpack.c.bf16 %v1277, %v1273
    %v2899 = vsel %vm1298, %v2881, 0
    %v2902 = vsel %vm1298, %v2882, 0
    %v2905 = vsel %vm1298, %v2883, 0
    %v2908 = vsel %vm1298, %v2884, 0
    %v2911 = vsel %vm1298, %v2885, 0
    %v2914 = vsel %vm1298, %v2886, 0
    %v2917 = vsel %vm1298, %v2887, 0
    %v2920 = vsel %vm1298, %v2888, 0
    %v2923 = vsel %vm1298, %v2889, 0
    %2925 = vmatprep.subr.bf16.mxu0 0
    %2926 = vmatpush1.bf16.xpose.msra.mxu0 %v2923
    %2927 = vmatprep.subr.bf16.mxu0 0
    %2928 = vmatpush1.bf16.xpose.msra.mxu0 %v2920
    %2929 = vmatprep.subr.bf16.mxu0 0
    %2930 = vmatpush1.bf16.xpose.msra.mxu0 %v2917
    %2931 = vmatprep.subr.bf16.mxu0 0
    %2932 = vmatpush1.bf16.xpose.msra.mxu0 %v2914
    %2933 = vmatprep.subr.bf16.mxu0 0
    %2934 = vmatpush1.bf16.xpose.msra.mxu0 %v2911
    %2935 = vmatprep.subr.bf16.mxu0 0
    %2936 = vmatpush1.bf16.xpose.msra.mxu0 %v2908
    %2937 = vmatprep.subr.bf16.mxu0 0
    %2938 = vmatpush1.bf16.xpose.msra.mxu0 %v2905
    %2939 = vmatprep.subr.bf16.mxu0 0
    %2940 = vmatpush1.bf16.xpose.msra.mxu0 %v2902
    %2941 = vmatprep.subr.bf16.mxu0 0
    %2942 = vmatpush2.bf16.xpose.msra.mxu0 0
    %2943 = vmatprep.subr.bf16.mxu0 0
    %2944 = vmatpush2.bf16.xpose.msra.mxu0 0
    %2945 = vmatprep.subr.bf16.mxu0 0
    %2946 = vmatpush2.bf16.xpose.msra.mxu0 0
    %2947 = vmatprep.subr.bf16.mxu0 0
    %2948 = vmatpush2.bf16.xpose.msra.mxu0 0
    %2949 = vmatprep.subr.bf16.mxu0 0
    %2950 = vmatpush2.bf16.xpose.msra.mxu0 0
    %2951 = vmatprep.subr.bf16.mxu0 0
    %2952 = vmatpush2.bf16.xpose.msra.mxu0 0
    %2953 = vmatprep.subr.bf16.mxu0 0
    %2954 = vmatpush2.bf16.xpose.msra.mxu0 0
    %2955 = vmatprep.subr.bf16.mxu0 0
    %2956 = vmatpush2.bf16.xpose.msra.mxu0 0
    %2957 = vmatprep.mubr.bf16.mxu0 0
    %2958 = vmatmul.mubr.bf16.gmra.mxu0 %v2899
    %v2959 = vpop.f32.mrf.mxu0
    %v2960 = vadd.f32 0.0, %v2959
    %v2961 = vpop.f32.mrf.mxu0
    %v2962 = vpop.f32.mrf.mxu0
    %v2963 = vpop.f32.mrf.mxu0
    %2964 = vdwg.mxu0
    %2965 = vmax.xlane.f32.xlu0 %v2960
    %v2966 = vpop.xlane.xlu0 %2965
    %v2967 = vsub.f32 %v2960, %v2966
    %v2968 = vmul.f32 %v2967, 1.442695
    %v2969 = vpow.pop %v2968
    %2970 = vadd.xlane.f32.xlu0 %v2969
    %v2971 = vpop.xlane.xlu0 %2970
    %v2972 = vrcp.pop %v2971
    %v2973 = vmul.f32 1.0, %v2972
    %v2974 = vmul.f32 %v2969, %v2973
    %v2975 = vadd.f32 %v2974, 0.0
    %v2976 = vpack.c.bf16 %v2974, %v2974
    %2977 = vmatprep.subr.bf16.mxu0 0
    %2978 = vmatpush1.bf16.msra.mxu0 %v2897
    %2979 = vmatprep.subr.bf16.mxu0 0
    %2980 = vmatpush1.bf16.msra.mxu0 %v2896
    %2981 = vmatprep.subr.bf16.mxu0 0
    %2982 = vmatpush1.bf16.msra.mxu0 %v2895
    %2983 = vmatprep.subr.bf16.mxu0 0
    %2984 = vmatpush1.bf16.msra.mxu0 %v2894
    %2985 = vmatprep.subr.bf16.mxu0 0
    %2986 = vmatpush1.bf16.msra.mxu0 %v2893
    %2987 = vmatprep.subr.bf16.mxu0 0
    %2988 = vmatpush1.bf16.msra.mxu0 %v2892
    %2989 = vmatprep.subr.bf16.mxu0 0
    %2990 = vmatpush1.bf16.msra.mxu0 %v2891
    %2991 = vmatprep.subr.bf16.mxu0 0
    %2992 = vmatpush1.bf16.msra.mxu0 %v2890
    %2993 = vmatprep.subr.bf16.mxu0 0
    %2994 = vmatpush2.bf16.msra.mxu0 0
    %2995 = vmatprep.subr.bf16.mxu0 0
    %2996 = vmatpush2.bf16.msra.mxu0 0
    %2997 = vmatprep.subr.bf16.mxu0 0
    %2998 = vmatpush2.bf16.msra.mxu0 0
    %2999 = vmatprep.subr.bf16.mxu0 0
    %3000 = vmatpush2.bf16.msra.mxu0 0
    %3001 = vmatprep.subr.bf16.mxu0 0
    %3002 = vmatpush2.bf16.msra.mxu0 0
    %3003 = vmatprep.subr.bf16.mxu0 0
    %3004 = vmatpush2.bf16.msra.mxu0 0
    %3005 = vmatprep.subr.bf16.mxu0 0
    %3006 = vmatpush2.bf16.msra.mxu0 0
    %3007 = vmatprep.subr.bf16.mxu0 0
    %3008 = vmatpush2.bf16.msra.mxu0 0
    %3009 = vmatprep.mubr.bf16.mxu0 0
    %3010 = vmatmul.mubr.bf16.gmra.mxu0 %v2976
    %v3011 = vpop.f32.mrf.mxu0
    %v3012 = vadd.f32 0.0, %v3011
    %v3013 = vpop.f32.mrf.mxu0
    %v3014 = vpop.f32.mrf.mxu0
    %v3015 = vpop.f32.mrf.mxu0
    %3016 = vdwg.mxu0
    %3018 = vrot.lane.b32.xlu0 %v2881, 96
    %v3019 = vpop.permute.xlu0 %3018
    %3028 = vrot.lane.b32.xlu0 %v2882, 96
    %v3029 = vpop.permute.xlu0 %3028
    %3030 = vrot.lane.b32.xlu0 %v2883, 96
    %v3031 = vpop.permute.xlu0 %3030
    %3032 = vrot.lane.b32.xlu0 %v2884, 96
    %v3033 = vpop.permute.xlu0 %3032
    %3034 = vrot.lane.b32.xlu0 %v2885, 96
    %v3035 = vpop.permute.xlu0 %3034
    %3036 = vrot.lane.b32.xlu0 %v2886, 96
    %v3037 = vpop.permute.xlu0 %3036
    %3038 = vrot.lane.b32.xlu0 %v2887, 96
    %v3039 = vpop.permute.xlu0 %3038
    %3040 = vrot.lane.b32.xlu0 %v2888, 96
    %v3041 = vpop.permute.xlu0 %3040
    %3042 = vrot.lane.b32.xlu0 %v2889, 96
    %v3043 = vpop.permute.xlu0 %3042
    %v3045 = vsel %vm1298, %v3019, 0
    %v3048 = vsel %vm1298, %v3029, 0
    %v3051 = vsel %vm1298, %v3031, 0
    %v3054 = vsel %vm1298, %v3033, 0
    %v3057 = vsel %vm1298, %v3035, 0
    %v3060 = vsel %vm1298, %v3037, 0
    %v3063 = vsel %vm1298, %v3039, 0
    %v3066 = vsel %vm1298, %v3041, 0
    %v3069 = vsel %vm1298, %v3043, 0
    %3071 = vmatprep.subr.bf16.mxu0 0
    %3072 = vmatpush1.bf16.xpose.msra.mxu0 %v3069
    %3073 = vmatprep.subr.bf16.mxu0 0
    %3074 = vmatpush1.bf16.xpose.msra.mxu0 %v3066
    %3075 = vmatprep.subr.bf16.mxu0 0
    %3076 = vmatpush1.bf16.xpose.msra.mxu0 %v3063
    %3077 = vmatprep.subr.bf16.mxu0 0
    %3078 = vmatpush1.bf16.xpose.msra.mxu0 %v3060
    %3079 = vmatprep.subr.bf16.mxu0 0
    %3080 = vmatpush1.bf16.xpose.msra.mxu0 %v3057
    %3081 = vmatprep.subr.bf16.mxu0 0
    %3082 = vmatpush1.bf16.xpose.msra.mxu0 %v3054
    %3083 = vmatprep.subr.bf16.mxu0 0
    %3084 = vmatpush1.bf16.xpose.msra.mxu0 %v3051
    %3085 = vmatprep.subr.bf16.mxu0 0
    %3086 = vmatpush1.bf16.xpose.msra.mxu0 %v3048
    %3087 = vmatprep.subr.bf16.mxu0 0
    %3088 = vmatpush2.bf16.xpose.msra.mxu0 0
    %3089 = vmatprep.subr.bf16.mxu0 0
    %3090 = vmatpush2.bf16.xpose.msra.mxu0 0
    %3091 = vmatprep.subr.bf16.mxu0 0
    %3092 = vmatpush2.bf16.xpose.msra.mxu0 0
    %3093 = vmatprep.subr.bf16.mxu0 0
    %3094 = vmatpush2.bf16.xpose.msra.mxu0 0
    %3095 = vmatprep.subr.bf16.mxu0 0
    %3096 = vmatpush2.bf16.xpose.msra.mxu0 0
    %3097 = vmatprep.subr.bf16.mxu0 0
    %3098 = vmatpush2.bf16.xpose.msra.mxu0 0
    %3099 = vmatprep.subr.bf16.mxu0 0
    %3100 = vmatpush2.bf16.xpose.msra.mxu0 0
    %3101 = vmatprep.subr.bf16.mxu0 0
    %3102 = vmatpush2.bf16.xpose.msra.mxu0 0
    %3103 = vmatprep.mubr.bf16.mxu0 0
    %3104 = vmatmul.mubr.bf16.gmra.mxu0 %v3045
    %v3105 = vpop.f32.mrf.mxu0
    %v3106 = vadd.f32 0.0, %v3105
    %v3107 = vpop.f32.mrf.mxu0
    %v3108 = vpop.f32.mrf.mxu0
    %v3109 = vpop.f32.mrf.mxu0
    %3110 = vdwg.mxu0
    %3111 = vmax.xlane.f32.xlu0 %v3106
    %v3112 = vpop.xlane.xlu0 %3111
    %v3113 = vsub.f32 %v3106, %v3112
    %v3114 = vmul.f32 %v3113, 1.442695
    %v3115 = vpow.pop %v3114
    %3116 = vadd.xlane.f32.xlu0 %v3115
    %v3117 = vpop.xlane.xlu0 %3116
    %v3118 = vrcp.pop %v3117
    %v3119 = vmul.f32 1.0, %v3118
    %v3120 = vmul.f32 %v3115, %v3119
    %v3121 = vadd.f32 %v2975, %v3120
    %v3122 = vpack.c.bf16 %v3120, %v3120
    %3131 = vrot.lane.b32.xlu0 %v2890, 96
    %v3132 = vpop.permute.xlu0 %3131
    %3133 = vrot.lane.b32.xlu0 %v2891, 96
    %v3134 = vpop.permute.xlu0 %3133
    %3135 = vrot.lane.b32.xlu0 %v2892, 96
    %v3136 = vpop.permute.xlu0 %3135
    %3137 = vrot.lane.b32.xlu0 %v2893, 96
    %v3138 = vpop.permute.xlu0 %3137
    %3139 = vrot.lane.b32.xlu0 %v2894, 96
    %v3140 = vpop.permute.xlu0 %3139
    %3141 = vrot.lane.b32.xlu0 %v2895, 96
    %v3142 = vpop.permute.xlu0 %3141
    %3143 = vrot.lane.b32.xlu0 %v2896, 96
    %v3144 = vpop.permute.xlu0 %3143
    %3145 = vrot.lane.b32.xlu0 %v2897, 96
    %v3146 = vpop.permute.xlu0 %3145
    %3155 = vmatprep.subr.bf16.mxu0 0
    %3156 = vmatpush1.bf16.msra.mxu0 %v3146
    %3157 = vmatprep.subr.bf16.mxu0 0
    %3158 = vmatpush1.bf16.msra.mxu0 %v3144
    %3159 = vmatprep.subr.bf16.mxu0 0
    %3160 = vmatpush1.bf16.msra.mxu0 %v3142
    %3161 = vmatprep.subr.bf16.mxu0 0
    %3162 = vmatpush1.bf16.msra.mxu0 %v3140
    %3163 = vmatprep.subr.bf16.mxu0 0
    %3164 = vmatpush1.bf16.msra.mxu0 %v3138
    %3165 = vmatprep.subr.bf16.mxu0 0
    %3166 = vmatpush1.bf16.msra.mxu0 %v3136
    %3167 = vmatprep.subr.bf16.mxu0 0
    %3168 = vmatpush1.bf16.msra.mxu0 %v3134
    %3169 = vmatprep.subr.bf16.mxu0 0
    %3170 = vmatpush1.bf16.msra.mxu0 %v3132
    %3171 = vmatprep.subr.bf16.mxu0 0
    %3172 = vmatpush2.bf16.msra.mxu0 0
    %3173 = vmatprep.subr.bf16.mxu0 0
    %3174 = vmatpush2.bf16.msra.mxu0 0
    %3175 = vmatprep.subr.bf16.mxu0 0
    %3176 = vmatpush2.bf16.msra.mxu0 0
    %3177 = vmatprep.subr.bf16.mxu0 0
    %3178 = vmatpush2.bf16.msra.mxu0 0
    %3179 = vmatprep.subr.bf16.mxu0 0
    %3180 = vmatpush2.bf16.msra.mxu0 0
    %3181 = vmatprep.subr.bf16.mxu0 0
    %3182 = vmatpush2.bf16.msra.mxu0 0
    %3183 = vmatprep.subr.bf16.mxu0 0
    %3184 = vmatpush2.bf16.msra.mxu0 0
    %3185 = vmatprep.subr.bf16.mxu0 0
    %3186 = vmatpush2.bf16.msra.mxu0 0
    %3187 = vmatprep.mubr.bf16.mxu0 0
    %3188 = vmatmul.mubr.bf16.gmra.mxu0 %v3122
    %v3189 = vpop.f32.mrf.mxu0
    %v3190 = vadd.f32 0.0, %v3189
    %v3191 = vpop.f32.mrf.mxu0
    %v3192 = vpop.f32.mrf.mxu0
    %v3193 = vpop.f32.mrf.mxu0
    %3194 = vdwg.mxu0
    %3195 = vrot.lane.b32.xlu0 %v2881, 64
    %v3196 = vpop.permute.xlu0 %3195
    %3197 = vrot.lane.b32.xlu0 %v2882, 64
    %v3198 = vpop.permute.xlu0 %3197
    %3199 = vrot.lane.b32.xlu0 %v2883, 64
    %v3200 = vpop.permute.xlu0 %3199
    %3201 = vrot.lane.b32.xlu0 %v2884, 64
    %v3202 = vpop.permute.xlu0 %3201
    %3203 = vrot.lane.b32.xlu0 %v2885, 64
    %v3204 = vpop.permute.xlu0 %3203
    %3205 = vrot.lane.b32.xlu0 %v2886, 64
    %v3206 = vpop.permute.xlu0 %3205
    %3207 = vrot.lane.b32.xlu0 %v2887, 64
    %v3208 = vpop.permute.xlu0 %3207
    %3209 = vrot.lane.b32.xlu0 %v2888, 64
    %v3210 = vpop.permute.xlu0 %3209
    %3211 = vrot.lane.b32.xlu0 %v2889, 64
    %v3212 = vpop.permute.xlu0 %3211
    %v3214 = vsel %vm1298, %v3196, 0
    %v3217 = vsel %vm1298, %v3198, 0
    %v3220 = vsel %vm1298, %v3200, 0
    %v3223 = vsel %vm1298, %v3202, 0
    %v3226 = vsel %vm1298, %v3204, 0
    %v3229 = vsel %vm1298, %v3206, 0
    %v3232 = vsel %vm1298, %v3208, 0
    %v3235 = vsel %vm1298, %v3210, 0
    %v3238 = vsel %vm1298, %v3212, 0
    %3240 = vmatprep.subr.bf16.mxu0 0
    %3241 = vmatpush1.bf16.xpose.msra.mxu0 %v3238
    %3242 = vmatprep.subr.bf16.mxu0 0
    %3243 = vmatpush1.bf16.xpose.msra.mxu0 %v3235
    %3244 = vmatprep.subr.bf16.mxu0 0
    %3245 = vmatpush1.bf16.xpose.msra.mxu0 %v3232
    %3246 = vmatprep.subr.bf16.mxu0 0
    %3247 = vmatpush1.bf16.xpose.msra.mxu0 %v3229
    %3248 = vmatprep.subr.bf16.mxu0 0
    %3249 = vmatpush1.bf16.xpose.msra.mxu0 %v3226
    %3250 = vmatprep.subr.bf16.mxu0 0
    %3251 = vmatpush1.bf16.xpose.msra.mxu0 %v3223
    %3252 = vmatprep.subr.bf16.mxu0 0
    %3253 = vmatpush1.bf16.xpose.msra.mxu0 %v3220
    %3254 = vmatprep.subr.bf16.mxu0 0
    %3255 = vmatpush1.bf16.xpose.msra.mxu0 %v3217
    %3256 = vmatprep.subr.bf16.mxu0 0
    %3257 = vmatpush2.bf16.xpose.msra.mxu0 0
    %3258 = vmatprep.subr.bf16.mxu0 0
    %3259 = vmatpush2.bf16.xpose.msra.mxu0 0
    %3260 = vmatprep.subr.bf16.mxu0 0
    %3261 = vmatpush2.bf16.xpose.msra.mxu0 0
    %3262 = vmatprep.subr.bf16.mxu0 0
    %3263 = vmatpush2.bf16.xpose.msra.mxu0 0
    %3264 = vmatprep.subr.bf16.mxu0 0
    %3265 = vmatpush2.bf16.xpose.msra.mxu0 0
    %3266 = vmatprep.subr.bf16.mxu0 0
    %3267 = vmatpush2.bf16.xpose.msra.mxu0 0
    %3268 = vmatprep.subr.bf16.mxu0 0
    %3269 = vmatpush2.bf16.xpose.msra.mxu0 0
    %3270 = vmatprep.subr.bf16.mxu0 0
    %3271 = vmatpush2.bf16.xpose.msra.mxu0 0
    %3272 = vmatprep.mubr.bf16.mxu0 0
    %3273 = vmatmul.mubr.bf16.gmra.mxu0 %v3214
    %v3274 = vpop.f32.mrf.mxu0
    %v3275 = vadd.f32 0.0, %v3274
    %v3276 = vpop.f32.mrf.mxu0
    %v3277 = vpop.f32.mrf.mxu0
    %v3278 = vpop.f32.mrf.mxu0
    %3279 = vdwg.mxu0
    %3280 = vmax.xlane.f32.xlu0 %v3275
    %v3281 = vpop.xlane.xlu0 %3280
    %v3282 = vsub.f32 %v3275, %v3281
    %v3283 = vmul.f32 %v3282, 1.442695
    %v3284 = vpow.pop %v3283
    %3285 = vadd.xlane.f32.xlu0 %v3284
    %v3286 = vpop.xlane.xlu0 %3285
    %v3287 = vrcp.pop %v3286
    %v3288 = vmul.f32 1.0, %v3287
    %v3289 = vmul.f32 %v3284, %v3288
    %v3290 = vadd.f32 %v3121, %v3289
    %v3291 = vpack.c.bf16 %v3289, %v3289
    %3292 = vrot.lane.b32.xlu0 %v2890, 64
    %v3293 = vpop.permute.xlu0 %3292
    %3294 = vrot.lane.b32.xlu0 %v2891, 64
    %v3295 = vpop.permute.xlu0 %3294
    %3296 = vrot.lane.b32.xlu0 %v2892, 64
    %v3297 = vpop.permute.xlu0 %3296
    %3298 = vrot.lane.b32.xlu0 %v2893, 64
    %v3299 = vpop.permute.xlu0 %3298
    %3300 = vrot.lane.b32.xlu0 %v2894, 64
    %v3301 = vpop.permute.xlu0 %3300
    %3302 = vrot.lane.b32.xlu0 %v2895, 64
    %v3303 = vpop.permute.xlu0 %3302
    %3304 = vrot.lane.b32.xlu0 %v2896, 64
    %v3305 = vpop.permute.xlu0 %3304
    %3306 = vrot.lane.b32.xlu0 %v2897, 64
    %v3307 = vpop.permute.xlu0 %3306
    %3316 = vmatprep.subr.bf16.mxu0 0
    %3317 = vmatpush1.bf16.msra.mxu0 %v3307
    %3318 = vmatprep.subr.bf16.mxu0 0
    %3319 = vmatpush1.bf16.msra.mxu0 %v3305
    %3320 = vmatprep.subr.bf16.mxu0 0
    %3321 = vmatpush1.bf16.msra.mxu0 %v3303
    %3322 = vmatprep.subr.bf16.mxu0 0
    %3323 = vmatpush1.bf16.msra.mxu0 %v3301
    %3324 = vmatprep.subr.bf16.mxu0 0
    %3325 = vmatpush1.bf16.msra.mxu0 %v3299
    %3326 = vmatprep.subr.bf16.mxu0 0
    %3327 = vmatpush1.bf16.msra.mxu0 %v3297
    %3328 = vmatprep.subr.bf16.mxu0 0
    %3329 = vmatpush1.bf16.msra.mxu0 %v3295
    %3330 = vmatprep.subr.bf16.mxu0 0
    %3331 = vmatpush1.bf16.msra.mxu0 %v3293
    %3332 = vmatprep.subr.bf16.mxu0 0
    %3333 = vmatpush2.bf16.msra.mxu0 0
    %3334 = vmatprep.subr.bf16.mxu0 0
    %3335 = vmatpush2.bf16.msra.mxu0 0
    %3336 = vmatprep.subr.bf16.mxu0 0
    %3337 = vmatpush2.bf16.msra.mxu0 0
    %3338 = vmatprep.subr.bf16.mxu0 0
    %3339 = vmatpush2.bf16.msra.mxu0 0
    %3340 = vmatprep.subr.bf16.mxu0 0
    %3341 = vmatpush2.bf16.msra.mxu0 0
    %3342 = vmatprep.subr.bf16.mxu0 0
    %3343 = vmatpush2.bf16.msra.mxu0 0
    %3344 = vmatprep.subr.bf16.mxu0 0
    %3345 = vmatpush2.bf16.msra.mxu0 0
    %3346 = vmatprep.subr.bf16.mxu0 0
    %3347 = vmatpush2.bf16.msra.mxu0 0
    %3348 = vmatprep.mubr.bf16.mxu0 0
    %3349 = vmatmul.mubr.bf16.gmra.mxu0 %v3291
    %v3350 = vpop.f32.mrf.mxu0
    %v3351 = vadd.f32 0.0, %v3350
    %v3352 = vpop.f32.mrf.mxu0
    %v3353 = vpop.f32.mrf.mxu0
    %v3354 = vpop.f32.mrf.mxu0
    %3355 = vdwg.mxu0
    %3356 = vrot.lane.b32.xlu0 %v2881, 32
    %v3357 = vpop.permute.xlu0 %3356
    %3358 = vrot.lane.b32.xlu0 %v2882, 32
    %v3359 = vpop.permute.xlu0 %3358
    %3360 = vrot.lane.b32.xlu0 %v2883, 32
    %v3361 = vpop.permute.xlu0 %3360
    %3362 = vrot.lane.b32.xlu0 %v2884, 32
    %v3363 = vpop.permute.xlu0 %3362
    %3364 = vrot.lane.b32.xlu0 %v2885, 32
    %v3365 = vpop.permute.xlu0 %3364
    %3366 = vrot.lane.b32.xlu0 %v2886, 32
    %v3367 = vpop.permute.xlu0 %3366
    %3368 = vrot.lane.b32.xlu0 %v2887, 32
    %v3369 = vpop.permute.xlu0 %3368
    %3370 = vrot.lane.b32.xlu0 %v2888, 32
    %v3371 = vpop.permute.xlu0 %3370
    %3372 = vrot.lane.b32.xlu0 %v2889, 32
    %v3373 = vpop.permute.xlu0 %3372
    %v3375 = vsel %vm1298, %v3357, 0
    %v3378 = vsel %vm1298, %v3359, 0
    %v3381 = vsel %vm1298, %v3361, 0
    %v3384 = vsel %vm1298, %v3363, 0
    %v3387 = vsel %vm1298, %v3365, 0
    %v3390 = vsel %vm1298, %v3367, 0
    %v3393 = vsel %vm1298, %v3369, 0
    %v3396 = vsel %vm1298, %v3371, 0
    %v3399 = vsel %vm1298, %v3373, 0
    %3401 = vmatprep.subr.bf16.mxu0 0
    %3402 = vmatpush1.bf16.xpose.msra.mxu0 %v3399
    %3403 = vmatprep.subr.bf16.mxu0 0
    %3404 = vmatpush1.bf16.xpose.msra.mxu0 %v3396
    %3405 = vmatprep.subr.bf16.mxu0 0
    %3406 = vmatpush1.bf16.xpose.msra.mxu0 %v3393
    %3407 = vmatprep.subr.bf16.mxu0 0
    %3408 = vmatpush1.bf16.xpose.msra.mxu0 %v3390
    %3409 = vmatprep.subr.bf16.mxu0 0
    %3410 = vmatpush1.bf16.xpose.msra.mxu0 %v3387
    %3411 = vmatprep.subr.bf16.mxu0 0
    %3412 = vmatpush1.bf16.xpose.msra.mxu0 %v3384
    %3413 = vmatprep.subr.bf16.mxu0 0
    %3414 = vmatpush1.bf16.xpose.msra.mxu0 %v3381
    %3415 = vmatprep.subr.bf16.mxu0 0
    %3416 = vmatpush1.bf16.xpose.msra.mxu0 %v3378
    %3417 = vmatprep.subr.bf16.mxu0 0
    %3418 = vmatpush2.bf16.xpose.msra.mxu0 0
    %3419 = vmatprep.subr.bf16.mxu0 0
    %3420 = vmatpush2.bf16.xpose.msra.mxu0 0
    %3421 = vmatprep.subr.bf16.mxu0 0
    %3422 = vmatpush2.bf16.xpose.msra.mxu0 0
    %3423 = vmatprep.subr.bf16.mxu0 0
    %3424 = vmatpush2.bf16.xpose.msra.mxu0 0
    %3425 = vmatprep.subr.bf16.mxu0 0
    %3426 = vmatpush2.bf16.xpose.msra.mxu0 0
    %3427 = vmatprep.subr.bf16.mxu0 0
    %3428 = vmatpush2.bf16.xpose.msra.mxu0 0
    %3429 = vmatprep.subr.bf16.mxu0 0
    %3430 = vmatpush2.bf16.xpose.msra.mxu0 0
    %3431 = vmatprep.subr.bf16.mxu0 0
    %3432 = vmatpush2.bf16.xpose.msra.mxu0 0
    %3433 = vmatprep.mubr.bf16.mxu0 0
    %3434 = vmatmul.mubr.bf16.gmra.mxu0 %v3375
    %v3435 = vpop.f32.mrf.mxu0
    %v3436 = vadd.f32 0.0, %v3435
    %v3437 = vpop.f32.mrf.mxu0
    %v3438 = vpop.f32.mrf.mxu0
    %v3439 = vpop.f32.mrf.mxu0
    %3440 = vdwg.mxu0
    %3441 = vmax.xlane.f32.xlu0 %v3436
    %v3442 = vpop.xlane.xlu0 %3441
    %v3443 = vsub.f32 %v3436, %v3442
    %v3444 = vmul.f32 %v3443, 1.442695
    %v3445 = vpow.pop %v3444
    %3446 = vadd.xlane.f32.xlu0 %v3445
    %v3447 = vpop.xlane.xlu0 %3446
    %v3448 = vrcp.pop %v3447
    %v3449 = vmul.f32 1.0, %v3448
    %v3450 = vmul.f32 %v3445, %v3449
    %v3451 = vadd.f32 %v3290, %v3450
    %v3452 = vpack.c.bf16 %v3450, %v3450
    %3453 = vrot.lane.b32.xlu0 %v2890, 32
    %v3454 = vpop.permute.xlu0 %3453
    %3455 = vrot.lane.b32.xlu0 %v2891, 32
    %v3456 = vpop.permute.xlu0 %3455
    %3457 = vrot.lane.b32.xlu0 %v2892, 32
    %v3458 = vpop.permute.xlu0 %3457
    %3459 = vrot.lane.b32.xlu0 %v2893, 32
    %v3460 = vpop.permute.xlu0 %3459
    %3461 = vrot.lane.b32.xlu0 %v2894, 32
    %v3462 = vpop.permute.xlu0 %3461
    %3463 = vrot.lane.b32.xlu0 %v2895, 32
    %v3464 = vpop.permute.xlu0 %3463
    %3465 = vrot.lane.b32.xlu0 %v2896, 32
    %v3466 = vpop.permute.xlu0 %3465
    %3467 = vrot.lane.b32.xlu0 %v2897, 32
    %v3468 = vpop.permute.xlu0 %3467
    %3477 = vmatprep.subr.bf16.mxu0 0
    %3478 = vmatpush1.bf16.msra.mxu0 %v3468
    %3479 = vmatprep.subr.bf16.mxu0 0
    %3480 = vmatpush1.bf16.msra.mxu0 %v3466
    %3481 = vmatprep.subr.bf16.mxu0 0
    %3482 = vmatpush1.bf16.msra.mxu0 %v3464
    %3483 = vmatprep.subr.bf16.mxu0 0
    %3484 = vmatpush1.bf16.msra.mxu0 %v3462
    %3485 = vmatprep.subr.bf16.mxu0 0
    %3486 = vmatpush1.bf16.msra.mxu0 %v3460
    %3487 = vmatprep.subr.bf16.mxu0 0
    %3488 = vmatpush1.bf16.msra.mxu0 %v3458
    %3489 = vmatprep.subr.bf16.mxu0 0
    %3490 = vmatpush1.bf16.msra.mxu0 %v3456
    %3491 = vmatprep.subr.bf16.mxu0 0
    %3492 = vmatpush1.bf16.msra.mxu0 %v3454
    %3493 = vmatprep.subr.bf16.mxu0 0
    %3494 = vmatpush2.bf16.msra.mxu0 0
    %3495 = vmatprep.subr.bf16.mxu0 0
    %3496 = vmatpush2.bf16.msra.mxu0 0
    %3497 = vmatprep.subr.bf16.mxu0 0
    %3498 = vmatpush2.bf16.msra.mxu0 0
    %3499 = vmatprep.subr.bf16.mxu0 0
    %3500 = vmatpush2.bf16.msra.mxu0 0
    %3501 = vmatprep.subr.bf16.mxu0 0
    %3502 = vmatpush2.bf16.msra.mxu0 0
    %3503 = vmatprep.subr.bf16.mxu0 0
    %3504 = vmatpush2.bf16.msra.mxu0 0
    %3505 = vmatprep.subr.bf16.mxu0 0
    %3506 = vmatpush2.bf16.msra.mxu0 0
    %3507 = vmatprep.subr.bf16.mxu0 0
    %3508 = vmatpush2.bf16.msra.mxu0 0
    %3509 = vmatprep.mubr.bf16.mxu0 0
    %3510 = vmatmul.mubr.bf16.gmra.mxu0 %v3452
    %v3511 = vpop.f32.mrf.mxu0
    %v3512 = vadd.f32 0.0, %v3511
    %v3513 = vpop.f32.mrf.mxu0
    %v3514 = vpop.f32.mrf.mxu0
    %v3515 = vpop.f32.mrf.mxu0
    %3516 = vdwg.mxu0
    %v3517 = vpack.c.bf16 %v295, %v295
    %v3518 = vpack.c.bf16 %v717, %v713
    %v3519 = vpack.c.bf16 %v727, %v723
    %v3520 = vpack.c.bf16 %v737, %v733
    %v3521 = vpack.c.bf16 %v747, %v743
    %v3522 = vpack.c.bf16 %v757, %v753
    %v3523 = vpack.c.bf16 %v767, %v763
    %v3524 = vpack.c.bf16 %v777, %v773
    %v3525 = vpack.c.bf16 %v787, %v783
    %v3526 = vpack.c.bf16 %v1209, %v1205
    %v3527 = vpack.c.bf16 %v1219, %v1215
    %v3528 = vpack.c.bf16 %v1229, %v1225
    %v3529 = vpack.c.bf16 %v1239, %v1235
    %v3530 = vpack.c.bf16 %v1249, %v1245
    %v3531 = vpack.c.bf16 %v1259, %v1255
    %v3532 = vpack.c.bf16 %v1269, %v1265
    %v3533 = vpack.c.bf16 %v1279, %v1275
    %v3535 = vsel %vm1298, %v3517, 0
    %v3538 = vsel %vm1298, %v3518, 0
    %v3541 = vsel %vm1298, %v3519, 0
    %v3544 = vsel %vm1298, %v3520, 0
    %v3547 = vsel %vm1298, %v3521, 0
    %v3550 = vsel %vm1298, %v3522, 0
    %v3553 = vsel %vm1298, %v3523, 0
    %v3556 = vsel %vm1298, %v3524, 0
    %v3559 = vsel %vm1298, %v3525, 0
    %3561 = vmatprep.subr.bf16.mxu0 0
    %3562 = vmatpush1.bf16.xpose.msra.mxu0 %v3559
    %3563 = vmatprep.subr.bf16.mxu0 0
    %3564 = vmatpush1.bf16.xpose.msra.mxu0 %v3556
    %3565 = vmatprep.subr.bf16.mxu0 0
    %3566 = vmatpush1.bf16.xpose.msra.mxu0 %v3553
    %3567 = vmatprep.subr.bf16.mxu0 0
    %3568 = vmatpush1.bf16.xpose.msra.mxu0 %v3550
    %3569 = vmatprep.subr.bf16.mxu0 0
    %3570 = vmatpush1.bf16.xpose.msra.mxu0 %v3547
    %3571 = vmatprep.subr.bf16.mxu0 0
    %3572 = vmatpush1.bf16.xpose.msra.mxu0 %v3544
    %3573 = vmatprep.subr.bf16.mxu0 0
    %3574 = vmatpush1.bf16.xpose.msra.mxu0 %v3541
    %3575 = vmatprep.subr.bf16.mxu0 0
    %3576 = vmatpush1.bf16.xpose.msra.mxu0 %v3538
    %3577 = vmatprep.subr.bf16.mxu0 0
    %3578 = vmatpush2.bf16.xpose.msra.mxu0 0
    %3579 = vmatprep.subr.bf16.mxu0 0
    %3580 = vmatpush2.bf16.xpose.msra.mxu0 0
    %3581 = vmatprep.subr.bf16.mxu0 0
    %3582 = vmatpush2.bf16.xpose.msra.mxu0 0
    %3583 = vmatprep.subr.bf16.mxu0 0
    %3584 = vmatpush2.bf16.xpose.msra.mxu0 0
    %3585 = vmatprep.subr.bf16.mxu0 0
    %3586 = vmatpush2.bf16.xpose.msra.mxu0 0
    %3587 = vmatprep.subr.bf16.mxu0 0
    %3588 = vmatpush2.bf16.xpose.msra.mxu0 0
    %3589 = vmatprep.subr.bf16.mxu0 0
    %3590 = vmatpush2.bf16.xpose.msra.mxu0 0
    %3591 = vmatprep.subr.bf16.mxu0 0
    %3592 = vmatpush2.bf16.xpose.msra.mxu0 0
    %3593 = vmatprep.mubr.bf16.mxu0 0
    %3594 = vmatmul.mubr.bf16.gmra.mxu0 %v3535
    %v3595 = vpop.f32.mrf.mxu0
    %v3596 = vadd.f32 0.0, %v3595
    %v3597 = vpop.f32.mrf.mxu0
    %v3598 = vpop.f32.mrf.mxu0
    %v3599 = vpop.f32.mrf.mxu0
    %3600 = vdwg.mxu0
    %3601 = vmax.xlane.f32.xlu0 %v3596
    %v3602 = vpop.xlane.xlu0 %3601
    %v3603 = vsub.f32 %v3596, %v3602
    %v3604 = vmul.f32 %v3603, 1.442695
    %v3605 = vpow.pop %v3604
    %3606 = vadd.xlane.f32.xlu0 %v3605
    %v3607 = vpop.xlane.xlu0 %3606
    %v3608 = vrcp.pop %v3607
    %v3609 = vmul.f32 1.0, %v3608
    %v3610 = vmul.f32 %v3605, %v3609
    %v3611 = vadd.f32 %v3451, %v3610
    %v3612 = vpack.c.bf16 %v3610, %v3610
    %3613 = vmatprep.subr.bf16.mxu0 0
    %3614 = vmatpush1.bf16.msra.mxu0 %v3533
    %3615 = vmatprep.subr.bf16.mxu0 0
    %3616 = vmatpush1.bf16.msra.mxu0 %v3532
    %3617 = vmatprep.subr.bf16.mxu0 0
    %3618 = vmatpush1.bf16.msra.mxu0 %v3531
    %3619 = vmatprep.subr.bf16.mxu0 0
    %3620 = vmatpush1.bf16.msra.mxu0 %v3530
    %3621 = vmatprep.subr.bf16.mxu0 0
    %3622 = vmatpush1.bf16.msra.mxu0 %v3529
    %3623 = vmatprep.subr.bf16.mxu0 0
    %3624 = vmatpush1.bf16.msra.mxu0 %v3528
    %3625 = vmatprep.subr.bf16.mxu0 0
    %3626 = vmatpush1.bf16.msra.mxu0 %v3527
    %3627 = vmatprep.subr.bf16.mxu0 0
    %3628 = vmatpush1.bf16.msra.mxu0 %v3526
    %3629 = vmatprep.subr.bf16.mxu0 0
    %3630 = vmatpush2.bf16.msra.mxu0 0
    %3631 = vmatprep.subr.bf16.mxu0 0
    %3632 = vmatpush2.bf16.msra.mxu0 0
    %3633 = vmatprep.subr.bf16.mxu0 0
    %3634 = vmatpush2.bf16.msra.mxu0 0
    %3635 = vmatprep.subr.bf16.mxu0 0
    %3636 = vmatpush2.bf16.msra.mxu0 0
    %3637 = vmatprep.subr.bf16.mxu0 0
    %3638 = vmatpush2.bf16.msra.mxu0 0
    %3639 = vmatprep.subr.bf16.mxu0 0
    %3640 = vmatpush2.bf16.msra.mxu0 0
    %3641 = vmatprep.subr.bf16.mxu0 0
    %3642 = vmatpush2.bf16.msra.mxu0 0
    %3643 = vmatprep.subr.bf16.mxu0 0
    %3644 = vmatpush2.bf16.msra.mxu0 0
    %3645 = vmatprep.mubr.bf16.mxu0 0
    %3646 = vmatmul.mubr.bf16.gmra.mxu0 %v3612
    %v3647 = vpop.f32.mrf.mxu0
    %v3648 = vadd.f32 0.0, %v3647
    %v3649 = vpop.f32.mrf.mxu0
    %v3650 = vpop.f32.mrf.mxu0
    %v3651 = vpop.f32.mrf.mxu0
    %3652 = vdwg.mxu0
    %3654 = vrot.lane.b32.xlu0 %v3517, 96
    %v3655 = vpop.permute.xlu0 %3654
    %3664 = vrot.lane.b32.xlu0 %v3518, 96
    %v3665 = vpop.permute.xlu0 %3664
    %3666 = vrot.lane.b32.xlu0 %v3519, 96
    %v3667 = vpop.permute.xlu0 %3666
    %3668 = vrot.lane.b32.xlu0 %v3520, 96
    %v3669 = vpop.permute.xlu0 %3668
    %3670 = vrot.lane.b32.xlu0 %v3521, 96
    %v3671 = vpop.permute.xlu0 %3670
    %3672 = vrot.lane.b32.xlu0 %v3522, 96
    %v3673 = vpop.permute.xlu0 %3672
    %3674 = vrot.lane.b32.xlu0 %v3523, 96
    %v3675 = vpop.permute.xlu0 %3674
    %3676 = vrot.lane.b32.xlu0 %v3524, 96
    %v3677 = vpop.permute.xlu0 %3676
    %3678 = vrot.lane.b32.xlu0 %v3525, 96
    %v3679 = vpop.permute.xlu0 %3678
    %v3681 = vsel %vm1298, %v3655, 0
    %v3684 = vsel %vm1298, %v3665, 0
    %v3687 = vsel %vm1298, %v3667, 0
    %v3690 = vsel %vm1298, %v3669, 0
    %v3693 = vsel %vm1298, %v3671, 0
    %v3696 = vsel %vm1298, %v3673, 0
    %v3699 = vsel %vm1298, %v3675, 0
    %v3702 = vsel %vm1298, %v3677, 0
    %v3705 = vsel %vm1298, %v3679, 0
    %3707 = vmatprep.subr.bf16.mxu0 0
    %3708 = vmatpush1.bf16.xpose.msra.mxu0 %v3705
    %3709 = vmatprep.subr.bf16.mxu0 0
    %3710 = vmatpush1.bf16.xpose.msra.mxu0 %v3702
    %3711 = vmatprep.subr.bf16.mxu0 0
    %3712 = vmatpush1.bf16.xpose.msra.mxu0 %v3699
    %3713 = vmatprep.subr.bf16.mxu0 0
    %3714 = vmatpush1.bf16.xpose.msra.mxu0 %v3696
    %3715 = vmatprep.subr.bf16.mxu0 0
    %3716 = vmatpush1.bf16.xpose.msra.mxu0 %v3693
    %3717 = vmatprep.subr.bf16.mxu0 0
    %3718 = vmatpush1.bf16.xpose.msra.mxu0 %v3690
    %3719 = vmatprep.subr.bf16.mxu0 0
    %3720 = vmatpush1.bf16.xpose.msra.mxu0 %v3687
    %3721 = vmatprep.subr.bf16.mxu0 0
    %3722 = vmatpush1.bf16.xpose.msra.mxu0 %v3684
    %3723 = vmatprep.subr.bf16.mxu0 0
    %3724 = vmatpush2.bf16.xpose.msra.mxu0 0
    %3725 = vmatprep.subr.bf16.mxu0 0
    %3726 = vmatpush2.bf16.xpose.msra.mxu0 0
    %3727 = vmatprep.subr.bf16.mxu0 0
    %3728 = vmatpush2.bf16.xpose.msra.mxu0 0
    %3729 = vmatprep.subr.bf16.mxu0 0
    %3730 = vmatpush2.bf16.xpose.msra.mxu0 0
    %3731 = vmatprep.subr.bf16.mxu0 0
    %3732 = vmatpush2.bf16.xpose.msra.mxu0 0
    %3733 = vmatprep.subr.bf16.mxu0 0
    %3734 = vmatpush2.bf16.xpose.msra.mxu0 0
    %3735 = vmatprep.subr.bf16.mxu0 0
    %3736 = vmatpush2.bf16.xpose.msra.mxu0 0
    %3737 = vmatprep.subr.bf16.mxu0 0
    %3738 = vmatpush2.bf16.xpose.msra.mxu0 0
    %3739 = vmatprep.mubr.bf16.mxu0 0
    %3740 = vmatmul.mubr.bf16.gmra.mxu0 %v3681
    %v3741 = vpop.f32.mrf.mxu0
    %v3742 = vadd.f32 0.0, %v3741
    %v3743 = vpop.f32.mrf.mxu0
    %v3744 = vpop.f32.mrf.mxu0
    %v3745 = vpop.f32.mrf.mxu0
    %3746 = vdwg.mxu0
    %3747 = vmax.xlane.f32.xlu0 %v3742
    %v3748 = vpop.xlane.xlu0 %3747
    %v3749 = vsub.f32 %v3742, %v3748
    %v3750 = vmul.f32 %v3749, 1.442695
    %v3751 = vpow.pop %v3750
    %3752 = vadd.xlane.f32.xlu0 %v3751
    %v3753 = vpop.xlane.xlu0 %3752
    %v3754 = vrcp.pop %v3753
    %v3755 = vmul.f32 1.0, %v3754
    %v3756 = vmul.f32 %v3751, %v3755
    %v3757 = vadd.f32 %v3611, %v3756
    %v3758 = vpack.c.bf16 %v3756, %v3756
    %3767 = vrot.lane.b32.xlu0 %v3526, 96
    %v3768 = vpop.permute.xlu0 %3767
    %3769 = vrot.lane.b32.xlu0 %v3527, 96
    %v3770 = vpop.permute.xlu0 %3769
    %3771 = vrot.lane.b32.xlu0 %v3528, 96
    %v3772 = vpop.permute.xlu0 %3771
    %3773 = vrot.lane.b32.xlu0 %v3529, 96
    %v3774 = vpop.permute.xlu0 %3773
    %3775 = vrot.lane.b32.xlu0 %v3530, 96
    %v3776 = vpop.permute.xlu0 %3775
    %3777 = vrot.lane.b32.xlu0 %v3531, 96
    %v3778 = vpop.permute.xlu0 %3777
    %3779 = vrot.lane.b32.xlu0 %v3532, 96
    %v3780 = vpop.permute.xlu0 %3779
    %3781 = vrot.lane.b32.xlu0 %v3533, 96
    %v3782 = vpop.permute.xlu0 %3781
    %3791 = vmatprep.subr.bf16.mxu0 0
    %3792 = vmatpush1.bf16.msra.mxu0 %v3782
    %3793 = vmatprep.subr.bf16.mxu0 0
    %3794 = vmatpush1.bf16.msra.mxu0 %v3780
    %3795 = vmatprep.subr.bf16.mxu0 0
    %3796 = vmatpush1.bf16.msra.mxu0 %v3778
    %3797 = vmatprep.subr.bf16.mxu0 0
    %3798 = vmatpush1.bf16.msra.mxu0 %v3776
    %3799 = vmatprep.subr.bf16.mxu0 0
    %3800 = vmatpush1.bf16.msra.mxu0 %v3774
    %3801 = vmatprep.subr.bf16.mxu0 0
    %3802 = vmatpush1.bf16.msra.mxu0 %v3772
    %3803 = vmatprep.subr.bf16.mxu0 0
    %3804 = vmatpush1.bf16.msra.mxu0 %v3770
    %3805 = vmatprep.subr.bf16.mxu0 0
    %3806 = vmatpush1.bf16.msra.mxu0 %v3768
    %3807 = vmatprep.subr.bf16.mxu0 0
    %3808 = vmatpush2.bf16.msra.mxu0 0
    %3809 = vmatprep.subr.bf16.mxu0 0
    %3810 = vmatpush2.bf16.msra.mxu0 0
    %3811 = vmatprep.subr.bf16.mxu0 0
    %3812 = vmatpush2.bf16.msra.mxu0 0
    %3813 = vmatprep.subr.bf16.mxu0 0
    %3814 = vmatpush2.bf16.msra.mxu0 0
    %3815 = vmatprep.subr.bf16.mxu0 0
    %3816 = vmatpush2.bf16.msra.mxu0 0
    %3817 = vmatprep.subr.bf16.mxu0 0
    %3818 = vmatpush2.bf16.msra.mxu0 0
    %3819 = vmatprep.subr.bf16.mxu0 0
    %3820 = vmatpush2.bf16.msra.mxu0 0
    %3821 = vmatprep.subr.bf16.mxu0 0
    %3822 = vmatpush2.bf16.msra.mxu0 0
    %3823 = vmatprep.mubr.bf16.mxu0 0
    %3824 = vmatmul.mubr.bf16.gmra.mxu0 %v3758
    %v3825 = vpop.f32.mrf.mxu0
    %v3826 = vadd.f32 0.0, %v3825
    %v3827 = vpop.f32.mrf.mxu0
    %v3828 = vpop.f32.mrf.mxu0
    %v3829 = vpop.f32.mrf.mxu0
    %3830 = vdwg.mxu0
    %3831 = vrot.lane.b32.xlu0 %v3517, 64
    %v3832 = vpop.permute.xlu0 %3831
    %3833 = vrot.lane.b32.xlu0 %v3518, 64
    %v3834 = vpop.permute.xlu0 %3833
    %3835 = vrot.lane.b32.xlu0 %v3519, 64
    %v3836 = vpop.permute.xlu0 %3835
    %3837 = vrot.lane.b32.xlu0 %v3520, 64
    %v3838 = vpop.permute.xlu0 %3837
    %3839 = vrot.lane.b32.xlu0 %v3521, 64
    %v3840 = vpop.permute.xlu0 %3839
    %3841 = vrot.lane.b32.xlu0 %v3522, 64
    %v3842 = vpop.permute.xlu0 %3841
    %3843 = vrot.lane.b32.xlu0 %v3523, 64
    %v3844 = vpop.permute.xlu0 %3843
    %3845 = vrot.lane.b32.xlu0 %v3524, 64
    %v3846 = vpop.permute.xlu0 %3845
    %3847 = vrot.lane.b32.xlu0 %v3525, 64
    %v3848 = vpop.permute.xlu0 %3847
    %v3850 = vsel %vm1298, %v3832, 0
    %v3853 = vsel %vm1298, %v3834, 0
    %v3856 = vsel %vm1298, %v3836, 0
    %v3859 = vsel %vm1298, %v3838, 0
    %v3862 = vsel %vm1298, %v3840, 0
    %v3865 = vsel %vm1298, %v3842, 0
    %v3868 = vsel %vm1298, %v3844, 0
    %v3871 = vsel %vm1298, %v3846, 0
    %v3874 = vsel %vm1298, %v3848, 0
    %3876 = vmatprep.subr.bf16.mxu0 0
    %3877 = vmatpush1.bf16.xpose.msra.mxu0 %v3874
    %3878 = vmatprep.subr.bf16.mxu0 0
    %3879 = vmatpush1.bf16.xpose.msra.mxu0 %v3871
    %3880 = vmatprep.subr.bf16.mxu0 0
    %3881 = vmatpush1.bf16.xpose.msra.mxu0 %v3868
    %3882 = vmatprep.subr.bf16.mxu0 0
    %3883 = vmatpush1.bf16.xpose.msra.mxu0 %v3865
    %3884 = vmatprep.subr.bf16.mxu0 0
    %3885 = vmatpush1.bf16.xpose.msra.mxu0 %v3862
    %3886 = vmatprep.subr.bf16.mxu0 0
    %3887 = vmatpush1.bf16.xpose.msra.mxu0 %v3859
    %3888 = vmatprep.subr.bf16.mxu0 0
    %3889 = vmatpush1.bf16.xpose.msra.mxu0 %v3856
    %3890 = vmatprep.subr.bf16.mxu0 0
    %3891 = vmatpush1.bf16.xpose.msra.mxu0 %v3853
    %3892 = vmatprep.subr.bf16.mxu0 0
    %3893 = vmatpush2.bf16.xpose.msra.mxu0 0
    %3894 = vmatprep.subr.bf16.mxu0 0
    %3895 = vmatpush2.bf16.xpose.msra.mxu0 0
    %3896 = vmatprep.subr.bf16.mxu0 0
    %3897 = vmatpush2.bf16.xpose.msra.mxu0 0
    %3898 = vmatprep.subr.bf16.mxu0 0
    %3899 = vmatpush2.bf16.xpose.msra.mxu0 0
    %3900 = vmatprep.subr.bf16.mxu0 0
    %3901 = vmatpush2.bf16.xpose.msra.mxu0 0
    %3902 = vmatprep.subr.bf16.mxu0 0
    %3903 = vmatpush2.bf16.xpose.msra.mxu0 0
    %3904 = vmatprep.subr.bf16.mxu0 0
    %3905 = vmatpush2.bf16.xpose.msra.mxu0 0
    %3906 = vmatprep.subr.bf16.mxu0 0
    %3907 = vmatpush2.bf16.xpose.msra.mxu0 0
    %3908 = vmatprep.mubr.bf16.mxu0 0
    %3909 = vmatmul.mubr.bf16.gmra.mxu0 %v3850
    %v3910 = vpop.f32.mrf.mxu0
    %v3911 = vadd.f32 0.0, %v3910
    %v3912 = vpop.f32.mrf.mxu0
    %v3913 = vpop.f32.mrf.mxu0
    %v3914 = vpop.f32.mrf.mxu0
    %3915 = vdwg.mxu0
    %3916 = vmax.xlane.f32.xlu0 %v3911
    %v3917 = vpop.xlane.xlu0 %3916
    %v3918 = vsub.f32 %v3911, %v3917
    %v3919 = vmul.f32 %v3918, 1.442695
    %v3920 = vpow.pop %v3919
    %3921 = vadd.xlane.f32.xlu0 %v3920
    %v3922 = vpop.xlane.xlu0 %3921
    %v3923 = vrcp.pop %v3922
    %v3924 = vmul.f32 1.0, %v3923
    %v3925 = vmul.f32 %v3920, %v3924
    %v3926 = vadd.f32 %v3757, %v3925
    %v3927 = vpack.c.bf16 %v3925, %v3925
    %3928 = vrot.lane.b32.xlu0 %v3526, 64
    %v3929 = vpop.permute.xlu0 %3928
    %3930 = vrot.lane.b32.xlu0 %v3527, 64
    %v3931 = vpop.permute.xlu0 %3930
    %3932 = vrot.lane.b32.xlu0 %v3528, 64
    %v3933 = vpop.permute.xlu0 %3932
    %3934 = vrot.lane.b32.xlu0 %v3529, 64
    %v3935 = vpop.permute.xlu0 %3934
    %3936 = vrot.lane.b32.xlu0 %v3530, 64
    %v3937 = vpop.permute.xlu0 %3936
    %3938 = vrot.lane.b32.xlu0 %v3531, 64
    %v3939 = vpop.permute.xlu0 %3938
    %3940 = vrot.lane.b32.xlu0 %v3532, 64
    %v3941 = vpop.permute.xlu0 %3940
    %3942 = vrot.lane.b32.xlu0 %v3533, 64
    %v3943 = vpop.permute.xlu0 %3942
    %3952 = vmatprep.subr.bf16.mxu0 0
    %3953 = vmatpush1.bf16.msra.mxu0 %v3943
    %3954 = vmatprep.subr.bf16.mxu0 0
    %3955 = vmatpush1.bf16.msra.mxu0 %v3941
    %3956 = vmatprep.subr.bf16.mxu0 0
    %3957 = vmatpush1.bf16.msra.mxu0 %v3939
    %3958 = vmatprep.subr.bf16.mxu0 0
    %3959 = vmatpush1.bf16.msra.mxu0 %v3937
    %3960 = vmatprep.subr.bf16.mxu0 0
    %3961 = vmatpush1.bf16.msra.mxu0 %v3935
    %3962 = vmatprep.subr.bf16.mxu0 0
    %3963 = vmatpush1.bf16.msra.mxu0 %v3933
    %3964 = vmatprep.subr.bf16.mxu0 0
    %3965 = vmatpush1.bf16.msra.mxu0 %v3931
    %3966 = vmatprep.subr.bf16.mxu0 0
    %3967 = vmatpush1.bf16.msra.mxu0 %v3929
    %3968 = vmatprep.subr.bf16.mxu0 0
    %3969 = vmatpush2.bf16.msra.mxu0 0
    %3970 = vmatprep.subr.bf16.mxu0 0
    %3971 = vmatpush2.bf16.msra.mxu0 0
    %3972 = vmatprep.subr.bf16.mxu0 0
    %3973 = vmatpush2.bf16.msra.mxu0 0
    %3974 = vmatprep.subr.bf16.mxu0 0
    %3975 = vmatpush2.bf16.msra.mxu0 0
    %3976 = vmatprep.subr.bf16.mxu0 0
    %3977 = vmatpush2.bf16.msra.mxu0 0
    %3978 = vmatprep.subr.bf16.mxu0 0
    %3979 = vmatpush2.bf16.msra.mxu0 0
    %3980 = vmatprep.subr.bf16.mxu0 0
    %3981 = vmatpush2.bf16.msra.mxu0 0
    %3982 = vmatprep.subr.bf16.mxu0 0
    %3983 = vmatpush2.bf16.msra.mxu0 0
    %3984 = vmatprep.mubr.bf16.mxu0 0
    %3985 = vmatmul.mubr.bf16.gmra.mxu0 %v3927
    %v3986 = vpop.f32.mrf.mxu0
    %v3987 = vadd.f32 0.0, %v3986
    %v3988 = vpop.f32.mrf.mxu0
    %v3989 = vpop.f32.mrf.mxu0
    %v3990 = vpop.f32.mrf.mxu0
    %3991 = vdwg.mxu0
    %3992 = vrot.lane.b32.xlu0 %v3517, 32
    %v3993 = vpop.permute.xlu0 %3992
    %3994 = vrot.lane.b32.xlu0 %v3518, 32
    %v3995 = vpop.permute.xlu0 %3994
    %3996 = vrot.lane.b32.xlu0 %v3519, 32
    %v3997 = vpop.permute.xlu0 %3996
    %3998 = vrot.lane.b32.xlu0 %v3520, 32
    %v3999 = vpop.permute.xlu0 %3998
    %4000 = vrot.lane.b32.xlu0 %v3521, 32
    %v4001 = vpop.permute.xlu0 %4000
    %4002 = vrot.lane.b32.xlu0 %v3522, 32
    %v4003 = vpop.permute.xlu0 %4002
    %4004 = vrot.lane.b32.xlu0 %v3523, 32
    %v4005 = vpop.permute.xlu0 %4004
    %4006 = vrot.lane.b32.xlu0 %v3524, 32
    %v4007 = vpop.permute.xlu0 %4006
    %4008 = vrot.lane.b32.xlu0 %v3525, 32
    %v4009 = vpop.permute.xlu0 %4008
    %v4011 = vsel %vm1298, %v3993, 0
    %v4014 = vsel %vm1298, %v3995, 0
    %v4017 = vsel %vm1298, %v3997, 0
    %v4020 = vsel %vm1298, %v3999, 0
    %v4023 = vsel %vm1298, %v4001, 0
    %v4026 = vsel %vm1298, %v4003, 0
    %v4029 = vsel %vm1298, %v4005, 0
    %v4032 = vsel %vm1298, %v4007, 0
    %v4035 = vsel %vm1298, %v4009, 0
    %4037 = vmatprep.subr.bf16.mxu0 0
    %4038 = vmatpush1.bf16.xpose.msra.mxu0 %v4035
    %4039 = vmatprep.subr.bf16.mxu0 0
    %4040 = vmatpush1.bf16.xpose.msra.mxu0 %v4032
    %4041 = vmatprep.subr.bf16.mxu0 0
    %4042 = vmatpush1.bf16.xpose.msra.mxu0 %v4029
    %4043 = vmatprep.subr.bf16.mxu0 0
    %4044 = vmatpush1.bf16.xpose.msra.mxu0 %v4026
    %4045 = vmatprep.subr.bf16.mxu0 0
    %4046 = vmatpush1.bf16.xpose.msra.mxu0 %v4023
    %4047 = vmatprep.subr.bf16.mxu0 0
    %4048 = vmatpush1.bf16.xpose.msra.mxu0 %v4020
    %4049 = vmatprep.subr.bf16.mxu0 0
    %4050 = vmatpush1.bf16.xpose.msra.mxu0 %v4017
    %4051 = vmatprep.subr.bf16.mxu0 0
    %4052 = vmatpush1.bf16.xpose.msra.mxu0 %v4014
    %4053 = vmatprep.subr.bf16.mxu0 0
    %4054 = vmatpush2.bf16.xpose.msra.mxu0 0
    %4055 = vmatprep.subr.bf16.mxu0 0
    %4056 = vmatpush2.bf16.xpose.msra.mxu0 0
    %4057 = vmatprep.subr.bf16.mxu0 0
    %4058 = vmatpush2.bf16.xpose.msra.mxu0 0
    %4059 = vmatprep.subr.bf16.mxu0 0
    %4060 = vmatpush2.bf16.xpose.msra.mxu0 0
    %4061 = vmatprep.subr.bf16.mxu0 0
    %4062 = vmatpush2.bf16.xpose.msra.mxu0 0
    %4063 = vmatprep.subr.bf16.mxu0 0
    %4064 = vmatpush2.bf16.xpose.msra.mxu0 0
    %4065 = vmatprep.subr.bf16.mxu0 0
    %4066 = vmatpush2.bf16.xpose.msra.mxu0 0
    %4067 = vmatprep.subr.bf16.mxu0 0
    %4068 = vmatpush2.bf16.xpose.msra.mxu0 0
    %4069 = vmatprep.mubr.bf16.mxu0 0
    %4070 = vmatmul.mubr.bf16.gmra.mxu0 %v4011
    %v4071 = vpop.f32.mrf.mxu0
    %v4072 = vadd.f32 0.0, %v4071
    %v4073 = vpop.f32.mrf.mxu0
    %v4074 = vpop.f32.mrf.mxu0
    %v4075 = vpop.f32.mrf.mxu0
    %4076 = vdwg.mxu0
    %4077 = vmax.xlane.f32.xlu0 %v4072
    %v4078 = vpop.xlane.xlu0 %4077
    %v4079 = vsub.f32 %v4072, %v4078
    %v4080 = vmul.f32 %v4079, 1.442695
    %v4081 = vpow.pop %v4080
    %4082 = vadd.xlane.f32.xlu0 %v4081
    %v4083 = vpop.xlane.xlu0 %4082
    %v4084 = vrcp.pop %v4083
    %v4085 = vmul.f32 1.0, %v4084
    %v4086 = vmul.f32 %v4081, %v4085
    %v4087 = vadd.f32 %v3926, %v4086
    %v4088 = vpack.c.bf16 %v4086, %v4086
    %4089 = vrot.lane.b32.xlu0 %v3526, 32
    %v4090 = vpop.permute.xlu0 %4089
    %4091 = vrot.lane.b32.xlu0 %v3527, 32
    %v4092 = vpop.permute.xlu0 %4091
    %4093 = vrot.lane.b32.xlu0 %v3528, 32
    %v4094 = vpop.permute.xlu0 %4093
    %4095 = vrot.lane.b32.xlu0 %v3529, 32
    %v4096 = vpop.permute.xlu0 %4095
    %4097 = vrot.lane.b32.xlu0 %v3530, 32
    %v4098 = vpop.permute.xlu0 %4097
    %4099 = vrot.lane.b32.xlu0 %v3531, 32
    %v4100 = vpop.permute.xlu0 %4099
    %4101 = vrot.lane.b32.xlu0 %v3532, 32
    %v4102 = vpop.permute.xlu0 %4101
    %4103 = vrot.lane.b32.xlu0 %v3533, 32
    %v4104 = vpop.permute.xlu0 %4103
    %4113 = vmatprep.subr.bf16.mxu0 0
    %4114 = vmatpush1.bf16.msra.mxu0 %v4104
    %4115 = vmatprep.subr.bf16.mxu0 0
    %4116 = vmatpush1.bf16.msra.mxu0 %v4102
    %4117 = vmatprep.subr.bf16.mxu0 0
    %4118 = vmatpush1.bf16.msra.mxu0 %v4100
    %4119 = vmatprep.subr.bf16.mxu0 0
    %4120 = vmatpush1.bf16.msra.mxu0 %v4098
    %4121 = vmatprep.subr.bf16.mxu0 0
    %4122 = vmatpush1.bf16.msra.mxu0 %v4096
    %4123 = vmatprep.subr.bf16.mxu0 0
    %4124 = vmatpush1.bf16.msra.mxu0 %v4094
    %4125 = vmatprep.subr.bf16.mxu0 0
    %4126 = vmatpush1.bf16.msra.mxu0 %v4092
    %4127 = vmatprep.subr.bf16.mxu0 0
    %4128 = vmatpush1.bf16.msra.mxu0 %v4090
    %4129 = vmatprep.subr.bf16.mxu0 0
    %4130 = vmatpush2.bf16.msra.mxu0 0
    %4131 = vmatprep.subr.bf16.mxu0 0
    %4132 = vmatpush2.bf16.msra.mxu0 0
    %4133 = vmatprep.subr.bf16.mxu0 0
    %4134 = vmatpush2.bf16.msra.mxu0 0
    %4135 = vmatprep.subr.bf16.mxu0 0
    %4136 = vmatpush2.bf16.msra.mxu0 0
    %4137 = vmatprep.subr.bf16.mxu0 0
    %4138 = vmatpush2.bf16.msra.mxu0 0
    %4139 = vmatprep.subr.bf16.mxu0 0
    %4140 = vmatpush2.bf16.msra.mxu0 0
    %4141 = vmatprep.subr.bf16.mxu0 0
    %4142 = vmatpush2.bf16.msra.mxu0 0
    %4143 = vmatprep.subr.bf16.mxu0 0
    %4144 = vmatpush2.bf16.msra.mxu0 0
    %4145 = vmatprep.mubr.bf16.mxu0 0
    %4146 = vmatmul.mubr.bf16.gmra.mxu0 %v4088
    %v4147 = vpop.f32.mrf.mxu0
    %v4148 = vadd.f32 0.0, %v4147
    %v4149 = vpop.f32.mrf.mxu0
    %v4150 = vpop.f32.mrf.mxu0
    %v4151 = vpop.f32.mrf.mxu0
    %4152 = vdwg.mxu0
    %4154 = vrot.lane.b32.xlu0 %v3190, 32
    %v4155 = vpop.permute.xlu0 %4154
    %4158 = vrot.lane.b32.xlu0 %v3351, 64
    %v4159 = vpop.permute.xlu0 %4158
    %4162 = vrot.lane.b32.xlu0 %v3512, 96
    %v4163 = vpop.permute.xlu0 %4162
    %4166 = vrot.lane.b32.xlu0 %v3826, 32
    %v4167 = vpop.permute.xlu0 %4166
    %4170 = vrot.lane.b32.xlu0 %v3987, 64
    %v4171 = vpop.permute.xlu0 %4170
    %4174 = vrot.lane.b32.xlu0 %v4148, 96
    %v4175 = vpop.permute.xlu0 %4174
    %v4177 = vsel %vm1298, %v3012, %v4155
    %v4178 = vsel %vm2579, %v4177, %v4159
    %v4179 = vsel %vm2581, %v4178, %v4163
    %v4180 = vsel %vm1298, %v3648, %v4167
    %v4181 = vsel %vm2579, %v4180, %v4171
    %v4182 = vsel %vm2581, %v4181, %v4175
    %v4183 = vpack.c.bf16 %v4179, %v4179
    %v4184 = vpack.c.bf16 %v4182, %v4182
    %v4185 = vld [vmem:[%s6] sm:$0xff]
    %v4186 = vld [vmem:[%s6 + $0x8] sm:$0xff]
    %v4187 = vld [vmem:[%s6 + $0x10] sm:$0xff]
    %v4188 = vld [vmem:[%s6 + $0x18] sm:$0xff]
    %v4189 = vld [vmem:[%s6 + $0x20] sm:$0xff]
    %v4190 = vld [vmem:[%s6 + $0x28] sm:$0xff]
    %v4191 = vld [vmem:[%s6 + $0x30] sm:$0xff]
    %v4192 = vld [vmem:[%s6 + $0x38] sm:$0xff]
    %v4193 = vld [vmem:[%s6 + $0x40] sm:$0xff]
    %v4194 = vld [vmem:[%s6 + $0x48] sm:$0xff]
    %v4195 = vld [vmem:[%s6 + $0x50] sm:$0xff]
    %v4196 = vld [vmem:[%s6 + $0x58] sm:$0xff]
    %v4197 = vld [vmem:[%s6 + $0x60] sm:$0xff]
    %v4198 = vld [vmem:[%s6 + $0x68] sm:$0xff]
    %v4199 = vld [vmem:[%s6 + $0x70] sm:$0xff]
    %v4200 = vld [vmem:[%s6 + $0x78] sm:$0xff]
    %v4201 = vld [vmem:[%s6 + $0x80] sm:$0xff]
    %v4202 = vld [vmem:[%s6 + $0x88] sm:$0xff]
    %v4203 = vld [vmem:[%s6 + $0x90] sm:$0xff]
    %v4204 = vld [vmem:[%s6 + $0x98] sm:$0xff]
    %v4205 = vld [vmem:[%s6 + $0xa0] sm:$0xff]
    %v4206 = vld [vmem:[%s6 + $0xa8] sm:$0xff]
    %v4207 = vld [vmem:[%s6 + $0xb0] sm:$0xff]
    %v4208 = vld [vmem:[%s6 + $0xb8] sm:$0xff]
    %v4209 = vld [vmem:[%s6 + $0xc0] sm:$0xff]
    %v4210 = vld [vmem:[%s6 + $0xc8] sm:$0xff]
    %v4211 = vld [vmem:[%s6 + $0xd0] sm:$0xff]
    %v4212 = vld [vmem:[%s6 + $0xd8] sm:$0xff]
    %v4213 = vld [vmem:[%s6 + $0xe0] sm:$0xff]
    %v4214 = vld [vmem:[%s6 + $0xe8] sm:$0xff]
    %v4215 = vld [vmem:[%s6 + $0xf0] sm:$0xff]
    %v4216 = vld [vmem:[%s6 + $0xf8] sm:$0xff]
    %v4249 = vunpack.c.l.b16 %v4185
    %v4250 = vunpack.c.h.b16 %v4185
    %v4251 = vunpack.c.l.b16 %v4186
    %v4252 = vunpack.c.h.b16 %v4186
    %v4253 = vunpack.c.l.b16 %v4187
    %v4254 = vunpack.c.h.b16 %v4187
    %v4255 = vunpack.c.l.b16 %v4188
    %v4256 = vunpack.c.h.b16 %v4188
    %v4257 = vunpack.c.l.b16 %v4189
    %v4258 = vunpack.c.h.b16 %v4189
    %v4259 = vunpack.c.l.b16 %v4190
    %v4260 = vunpack.c.h.b16 %v4190
    %v4261 = vunpack.c.l.b16 %v4191
    %v4262 = vunpack.c.h.b16 %v4191
    %v4263 = vunpack.c.l.b16 %v4192
    %v4264 = vunpack.c.h.b16 %v4192
    %v4265 = vunpack.c.l.b16 %v4193
    %v4266 = vunpack.c.h.b16 %v4193
    %v4267 = vunpack.c.l.b16 %v4194
    %v4268 = vunpack.c.h.b16 %v4194
    %v4269 = vunpack.c.l.b16 %v4195
    %v4270 = vunpack.c.h.b16 %v4195
    %v4271 = vunpack.c.l.b16 %v4196
    %v4272 = vunpack.c.h.b16 %v4196
    %v4273 = vunpack.c.l.b16 %v4197
    %v4274 = vunpack.c.h.b16 %v4197
    %v4275 = vunpack.c.l.b16 %v4198
    %v4276 = vunpack.c.h.b16 %v4198
    %v4277 = vunpack.c.l.b16 %v4199
    %v4278 = vunpack.c.h.b16 %v4199
    %v4279 = vunpack.c.l.b16 %v4200
    %v4280 = vunpack.c.h.b16 %v4200
    %v4281 = vunpack.c.l.b16 %v4201
    %v4282 = vunpack.c.h.b16 %v4201
    %v4283 = vunpack.c.l.b16 %v4202
    %v4284 = vunpack.c.h.b16 %v4202
    %v4285 = vunpack.c.l.b16 %v4203
    %v4286 = vunpack.c.h.b16 %v4203
    %v4287 = vunpack.c.l.b16 %v4204
    %v4288 = vunpack.c.h.b16 %v4204
    %v4289 = vunpack.c.l.b16 %v4205
    %v4290 = vunpack.c.h.b16 %v4205
    %v4291 = vunpack.c.l.b16 %v4206
    %v4292 = vunpack.c.h.b16 %v4206
    %v4293 = vunpack.c.l.b16 %v4207
    %v4294 = vunpack.c.h.b16 %v4207
    %v4295 = vunpack.c.l.b16 %v4208
    %v4296 = vunpack.c.h.b16 %v4208
    %v4297 = vunpack.c.l.b16 %v4209
    %v4298 = vunpack.c.h.b16 %v4209
    %v4299 = vunpack.c.l.b16 %v4210
    %v4300 = vunpack.c.h.b16 %v4210
    %v4301 = vunpack.c.l.b16 %v4211
    %v4302 = vunpack.c.h.b16 %v4211
    %v4303 = vunpack.c.l.b16 %v4212
    %v4304 = vunpack.c.h.b16 %v4212
    %v4305 = vunpack.c.l.b16 %v4213
    %v4306 = vunpack.c.h.b16 %v4213
    %v4307 = vunpack.c.l.b16 %v4214
    %v4308 = vunpack.c.h.b16 %v4214
    %v4309 = vunpack.c.l.b16 %v4215
    %v4310 = vunpack.c.h.b16 %v4215
    %v4311 = vunpack.c.l.b16 %v4216
    %v4312 = vunpack.c.h.b16 %v4216
    %v4313 = vpack.c.b16 %v4251, %v4249
    %v4314 = vpack.c.b16 %v4252, %v4250
    %v4315 = vpack.c.b16 %v4255, %v4253
    %v4316 = vpack.c.b16 %v4256, %v4254
    %v4317 = vpack.c.b16 %v4259, %v4257
    %v4318 = vpack.c.b16 %v4260, %v4258
    %v4319 = vpack.c.b16 %v4263, %v4261
    %v4320 = vpack.c.b16 %v4264, %v4262
    %v4321 = vpack.c.b16 %v4267, %v4265
    %v4322 = vpack.c.b16 %v4268, %v4266
    %v4323 = vpack.c.b16 %v4271, %v4269
    %v4324 = vpack.c.b16 %v4272, %v4270
    %v4325 = vpack.c.b16 %v4275, %v4273
    %v4326 = vpack.c.b16 %v4276, %v4274
    %v4327 = vpack.c.b16 %v4279, %v4277
    %v4328 = vpack.c.b16 %v4280, %v4278
    %v4329 = vpack.c.b16 %v4283, %v4281
    %v4330 = vpack.c.b16 %v4284, %v4282
    %v4331 = vpack.c.b16 %v4287, %v4285
    %v4332 = vpack.c.b16 %v4288, %v4286
    %v4333 = vpack.c.b16 %v4291, %v4289
    %v4334 = vpack.c.b16 %v4292, %v4290
    %v4335 = vpack.c.b16 %v4295, %v4293
    %v4336 = vpack.c.b16 %v4296, %v4294
    %v4337 = vpack.c.b16 %v4299, %v4297
    %v4338 = vpack.c.b16 %v4300, %v4298
    %v4339 = vpack.c.b16 %v4303, %v4301
    %v4340 = vpack.c.b16 %v4304, %v4302
    %v4341 = vpack.c.b16 %v4307, %v4305
    %v4342 = vpack.c.b16 %v4308, %v4306
    %v4343 = vpack.c.b16 %v4311, %v4309
    %v4344 = vpack.c.b16 %v4312, %v4310
    %4377 = vmatprep.subr.bf16.mxu0 %v4328
    %4378 = vmatpush1.bf16.msra.mxu0 %v4327
    %4379 = vmatprep.subr.bf16.mxu0 %v4326
    %4380 = vmatpush1.bf16.msra.mxu0 %v4325
    %4381 = vmatprep.subr.bf16.mxu0 %v4324
    %4382 = vmatpush1.bf16.msra.mxu0 %v4323
    %4383 = vmatprep.subr.bf16.mxu0 %v4322
    %4384 = vmatpush1.bf16.msra.mxu0 %v4321
    %4385 = vmatprep.subr.bf16.mxu0 %v4320
    %4386 = vmatpush1.bf16.msra.mxu0 %v4319
    %4387 = vmatprep.subr.bf16.mxu0 %v4318
    %4388 = vmatpush1.bf16.msra.mxu0 %v4317
    %4389 = vmatprep.subr.bf16.mxu0 %v4316
    %4390 = vmatpush1.bf16.msra.mxu0 %v4315
    %4391 = vmatprep.subr.bf16.mxu0 %v4314
    %4392 = vmatpush1.bf16.msra.mxu0 %v4313
    %4393 = vmatprep.subr.bf16.mxu0 %v4344
    %4394 = vmatpush2.bf16.msra.mxu0 %v4343
    %4395 = vmatprep.subr.bf16.mxu0 %v4342
    %4396 = vmatpush2.bf16.msra.mxu0 %v4341
    %4397 = vmatprep.subr.bf16.mxu0 %v4340
    %4398 = vmatpush2.bf16.msra.mxu0 %v4339
    %4399 = vmatprep.subr.bf16.mxu0 %v4338
    %4400 = vmatpush2.bf16.msra.mxu0 %v4337
    %4401 = vmatprep.subr.bf16.mxu0 %v4336
    %4402 = vmatpush2.bf16.msra.mxu0 %v4335
    %4403 = vmatprep.subr.bf16.mxu0 %v4334
    %4404 = vmatpush2.bf16.msra.mxu0 %v4333
    %4405 = vmatprep.subr.bf16.mxu0 %v4332
    %4406 = vmatpush2.bf16.msra.mxu0 %v4331
    %4407 = vmatprep.subr.bf16.mxu0 %v4330
    %4408 = vmatpush2.bf16.msra.mxu0 %v4329
    %4409 = vmatprep.mubr.bf16.mxu0 %v4184
    %4410 = vmatmul.mubr.bf16.gmra.mxu0 %v4183
    %v4411 = vpop.f32.mrf.mxu0
    %v4412 = vadd.f32 %v2624, %v4411
    %v4413 = vpop.f32.mrf.mxu0
    %v4414 = vadd.f32 %v2628, %v4413
    %v4415 = vpop.f32.mrf.mxu0
    %v4416 = vpop.f32.mrf.mxu0
    %4417 = vdwg.mxu0
    %v4418 = vadd.f32 %v4412, %v47
    %v4419 = vadd.f32 %v4414, %v48
    %v4420 = vadd.f32 %v4418, %v4419
    %4421 = vadd.xlane.f32.xlu0 %v4420
    %v4422 = vpop.xlane.xlu0 %4421
    %v4423 = vmul.f32 %v4422, %v2837
    %v4424 = vsub.f32 %v4418, %v4423
    %v4425 = vsub.f32 %v4419, %v4423
    %v4426 = vmul.f32 %v4424, %v4424
    %v4427 = vmul.f32 %v4425, %v4425
    %v4428 = vadd.f32 %v4426, %v4427
    %4429 = vadd.xlane.f32.xlu0 %v4428
    %v4430 = vpop.xlane.xlu0 %4429
    %v4431 = vmul.f32 %v4430, %v2837
    %v4432 = vadd.f32 %v4431, 1e-05
    %v4433 = vrsqrt.pop %v4432
    %v4434 = vmul.f32 %v4424, %v4433
    %v4435 = vmul.f32 %v4425, %v4433
    %v4436 = vmul.f32 %v4434, %v2855
    %v4437 = vmul.f32 %v4435, %v2859
    %v4438 = vadd.f32 %v4436, %v2868
    %v4439 = vadd.f32 %v4437, %v2872
    %s4440 = scalar_lea.vmem [#allocation2], 16
    %4441 = vst [vmem:[%s4440] sm:$0xff] %v4438
    %4442 = vst [vmem:[%s4440 + $0x8] sm:$0xff] %v4439
    %v4443 = vmul.f32 %v4087, 0.125
    %s4444 = scalar_lea.vmem [#allocation4], 8
    %4445 = vst [vmem:[%s4444] sm:$0xff] %v4443
    // Predicated region
    $region34: #{attention_mechanism.1} parent=1 // pred_check
      _
    $region35: #{attention_mechanism.1} parent=1 // pred_check_branch
      %4447 = sbr.rel (0) target = $region37
    $region36: #{attention_mechanism.1} parent=1 // pred_region
      %s4449 = ssub.s32 512, 512
      %4450 = vsyncadd [#allocation3], %s4449
      %s4451 = sshll.u32 [#allocation2], 4
      %s4452 = int_to_ptr.vmem [resolvable:$true] %s4451
      %4457 = dma.vmem_to_hbm [thread:$0]  %s4452, 512, %s8, [#allocation3], 256, 256, 16
    $region37: #{attention_mechanism.1} parent=1 // pred_fallthru
      _
    // Predicated region
    $region38: #{attention_mechanism.1} parent=1 // pred_check
      _
    $region39: #{attention_mechanism.1} parent=1 // pred_check_branch
      %4459 = sbr.rel (0) target = $region41
    $region40: #{attention_mechanism.1} parent=1 // pred_region
      %s4461 = ssub.s32 256, 256
      %4462 = vsyncadd [#allocation5], %s4461
      %s4463 = sshll.u32 [#allocation4], 4
      %s4464 = int_to_ptr.vmem [resolvable:$true] %s4463
      %4469 = dma.vmem_to_hbm [thread:$0]  %s4464, 256, %s9, [#allocation5], 128, 128, 8
    $region41: #{attention_mechanism.1} parent=1 // pred_fallthru
      _
    // Predicated region
    $region42: #{attention_mechanism.1} parent=1 // pred_check
      _
    $region43: #{attention_mechanism.1} parent=1 // pred_check_branch
      %4471 = sbr.rel (0) target = $region45
    $region44: #{attention_mechanism.1} parent=1 // pred_region
      %4472 = dma.done [#allocation3], 512
    $region45: #{attention_mechanism.1} parent=1 // pred_fallthru
      _
    // Predicated region
    $region46: #{attention_mechanism.1} parent=1 // pred_check
      _
    $region47: #{attention_mechanism.1} parent=1 // pred_check_branch
      %4474 = sbr.rel (0) target = $region49
    $region48: #{attention_mechanism.1} parent=1 // pred_region
      %4475 = dma.done [#allocation5], 256
    $region49: #{attention_mechanism.1} parent=1 // pred_fallthru
      _
    %4476 = vsyncpa [#allocation3], 1
    %4477 = vsyncpa [#allocation5], 1

</llo_original>
